<compile_context>
chip_gen: v6e
topology: v6e:2x2x1
jax: 0.10.0
libtpu: 0.0.40
codegen_flags: <defaults>
</compile_context>

<pallas_src>
import jax
import jax.numpy as jnp
from jax.experimental import pallas as pl
from jax.experimental.pallas import tpu as pltpu

EMBED = 128    # embedding_dim from the reference module
LN_EPS = 1e-5


def _layer_norm_1pass(v, gamma, beta, eps=LN_EPS):
    """LayerNorm via single-pass sum / sum-of-squares; variance clamped at 0."""
    n = v.shape[-1]
    s1 = jnp.sum(v, axis=-1, keepdims=True)
    s2 = jnp.sum(v * v, axis=-1, keepdims=True)
    mean = s1 * (1.0 / n)
    var = jnp.maximum(s2 * (1.0 / n) - mean * mean, 0.0)
    return (v - mean) * jax.lax.rsqrt(var + eps) * gamma + beta


def attention_stream_kernel(
    x_ref, xprev_ref, enc_ref,          # (Bt, T, E), (Bt, T, E), (Bt, E)
    mu_ref,                             # (1, 1) in SMEM  (Shift.mu)
    tm_ref, cm_ref,                     # (1, E) time / context modulation
    ln1_g_ref, ln1_b_ref,               # SequenceMergingSeq LayerNorm
    wf_ref, bf_ref,                     # fused [Wr|Wv]: (E, 2E), (1, 2E)
    ln2_g_ref, ln2_b_ref,               # StateCoupling LayerNorm
    out_ref,                            # (Bt, T, E)
    c_scr,                              # VMEM (T, Bt, E): shifted, t-leading
    decay_scr,                          # VMEM (T, Bt, E)
    bu_scr,                             # VMEM (T, Bt, E): holds u_t, then merged_t
    m_scr, s_scr,                       # VMEM (T, Bt, 1)
):
    Bt, T, E = x_ref.shape

    mu = mu_ref[0, 0]
    omm = 1.0 - mu

    # ---- Shift, relaid out t-leading (static rectangular window per t) ----
    for t in range(T):
        c_scr[t] = mu * x_ref[:, t, :] + omm * xprev_ref[:, t, :]

    # ---- batched, carry-free precompute over the whole (T, Bt, E) slab ----
    c = c_scr[...]
    decay = jax.nn.sigmoid(c * tm_ref[...])                 # (T, Bt, E)
    exp_c = jnp.exp(c)
    enc = enc_ref[...]
    ctx = jax.nn.sigmoid(enc * cm_ref[...]) * enc           # (Bt, E), t-invariant

    decay_scr[...] = decay
    bu_scr[...] = exp_c * c + ctx                           # u_t (overwritten below)
    m_scr[...] = jnp.mean(decay, axis=-1, keepdims=True)
    s_scr[...] = jnp.sum(exp_c, axis=-1, keepdims=True)

    # ---- minimal serial recurrence: two FMAs per step on (Bt, E)/(Bt, 1) ----
    def step(t, carry):
        a, b = carry                                        # (Bt,1), (Bt,E)
        a = m_scr[t] * a + s_scr[t]
        b = decay_scr[t] * b + bu_scr[t]
        d = a + 1e-8
        inv = pl.reciprocal(d, approx=True)
        inv = inv * (2.0 - d * inv)                         # 1 Newton step (~1e-7 rel)
        bu_scr[t] = b * inv                                 # merged_t
        return a, b

    unroll = max(u for u in (1, 2, 4, 8) if T % u == 0)
    jax.lax.fori_loop(
        0, T, step,
        (jnp.zeros((Bt, 1), jnp.float32), jnp.zeros((Bt, E), jnp.float32)),
        unroll=unroll,
    )

    # ---- LayerNorm -> fused [Wr|Wv] matmul -> gate*value -> LayerNorm ----
    merged = _layer_norm_1pass(
        bu_scr[...].reshape(T * Bt, E), ln1_g_ref[...], ln1_b_ref[...])
    h = jnp.dot(merged, wf_ref[...], preferred_element_type=jnp.float32) + bf_ref[...]
    coupled = _layer_norm_1pass(
        jax.nn.sigmoid(h[:, :E]) * h[:, E:], ln2_g_ref[...], ln2_b_ref[...])
    coupled = coupled.reshape(T, Bt, E)

    # ---- residual, written back in natural (Bt, T, E) order ----
    for t in range(T):
        out_ref[:, t, :] = c_scr[t] + coupled[t]


def _round_up(n, m):
    return ((n + m - 1) // m) * m


def attention_stream_block(x, x_prev, encoder_context, params, *, b_tile=32):
    B, T, E = x.shape
    assert E == EMBED

    # Batch tile: multiple of 8 (f32 sublane group); clamp so the batch grid keeps
    # >= 2 steps when the batch allows it (v7x megacore gets work on both TCs).
    bt = min(b_tile, max(8, ((_round_up(B, 8) // 2) // 8) * 8))
    B_pad = _round_up(B, bt)
    if B_pad != B:
        pb = B_pad - B
        x = jnp.pad(x, ((0, pb), (0, 0), (0, 0)))
        x_prev = jnp.pad(x_prev, ((0, pb), (0, 0), (0, 0)))
        encoder_context = jnp.pad(encoder_context, ((0, pb), (0, 0)))

    # Fuse Wr / Wv into one (E, 2E) matmul.
    w_fused = jnp.concatenate([params["wr_w"], params["wv_w"]], axis=1)
    b_fused = jnp.concatenate([params["wr_b"], params["wv_b"]], axis=1)

    grid = (B_pad // bt,)
    seq_spec = pl.BlockSpec((bt, T, E), lambda i: (i, 0, 0))
    enc_spec = pl.BlockSpec((bt, E), lambda i: (i, 0))
    vec_spec = pl.BlockSpec((1, E), lambda i: (0, 0))
    wf_spec = pl.BlockSpec((E, 2 * E), lambda i: (0, 0))
    bf_spec = pl.BlockSpec((1, 2 * E), lambda i: (0, 0))
    mu_spec = pl.BlockSpec(memory_space=pltpu.MemorySpace.SMEM)

    out = pl.pallas_call(
        attention_stream_kernel,
        out_shape=jax.ShapeDtypeStruct((B_pad, T, E), jnp.float32),
        grid=grid,
        in_specs=[
            seq_spec, seq_spec, enc_spec,
            mu_spec,
            vec_spec, vec_spec,            # tm, cm
            vec_spec, vec_spec,            # ln1 gamma/beta
            wf_spec, bf_spec,
            vec_spec, vec_spec,            # ln2 gamma/beta
        ],
        out_specs=seq_spec,
        scratch_shapes=[
            pltpu.VMEM((T, bt, E), jnp.float32),   # c (shifted), t-leading
            pltpu.VMEM((T, bt, E), jnp.float32),   # decay
            pltpu.VMEM((T, bt, E), jnp.float32),   # u -> merged
            pltpu.VMEM((T, bt, 1), jnp.float32),   # m = mean(decay)
            pltpu.VMEM((T, bt, 1), jnp.float32),   # s = sum(exp)
        ],
        compiler_params=pltpu.CompilerParams(
            dimension_semantics=("parallel",),
            # Non-binding at these block sizes; valid on v5e/v6e/v7x.  Raise on
            # v6e (128 MiB physical) if much larger b_tile / T chunks are used.
            vmem_limit_bytes=32 * 1024 * 1024,
        ),
    )(
        x, x_prev, encoder_context,
        params["mu"], params["tm"], params["cm"],
        params["ln1_g"], params["ln1_b"],
        w_fused, b_fused,
        params["ln2_g"], params["ln2_b"],
    )

    return out[:B]


def make_params(key, E):
    """Deterministic synthetic parameters matching the PyTorch module's shapes."""
    k1, k2, k3, k4 = jax.random.split(key, 4)
    bound = 1.0 / (E ** 0.5)
    return dict(
        mu=jnp.full((1, 1), 0.5, jnp.float32),                 # Shift.mu
        tm=jnp.full((1, E), 0.5, jnp.float32),                 # time_modulation
        cm=jnp.full((1, E), 0.5, jnp.float32),                 # context_modulation
        ln1_g=jnp.ones((1, E), jnp.float32),
        ln1_b=jnp.zeros((1, E), jnp.float32),
        # Linear weights stored as (in, out) so kernel does x @ W + b
        wr_w=jax.random.uniform(k1, (E, E), jnp.float32, -bound, bound),
        wr_b=jax.random.uniform(k2, (1, E), jnp.float32, -bound, bound),
        wv_w=jax.random.uniform(k3, (E, E), jnp.float32, -bound, bound),
        wv_b=jax.random.uniform(k4, (1, E), jnp.float32, -bound, bound),
        ln2_g=jnp.ones((1, E), jnp.float32),
        ln2_b=jnp.zeros((1, E), jnp.float32),
    )


def _layer_norm_ref(v, gamma, beta, eps=LN_EPS):
    m = jnp.mean(v, axis=-1, keepdims=True)
    var = jnp.mean((v - m) ** 2, axis=-1, keepdims=True)
    return (v - m) * jax.lax.rsqrt(var + eps) * gamma + beta


def reference(x, x_prev, enc, p):
    """Pure-JAX reference of the PyTorch forward for verification."""
    mu = p["mu"][0, 0]
    shifted = mu * x + (1.0 - mu) * x_prev
    B, T, E = x.shape
    a = jnp.zeros((B, 1), jnp.float32)
    b = jnp.zeros((B, E), jnp.float32)
    outs = []
    for t in range(T):
        c_t = shifted[:, t, :]
        decay = jax.nn.sigmoid(c_t * p["tm"])
        exp_c = jnp.exp(c_t)
        a = jnp.mean(decay, axis=-1, keepdims=True) * a + jnp.sum(exp_c, axis=-1, keepdims=True)
        b = decay * b + exp_c * c_t
        b = b + jax.nn.sigmoid(enc * p["cm"]) * enc
        outs.append(b / (a + 1e-8))
    merged = _layer_norm_ref(jnp.stack(outs, axis=1), p["ln1_g"], p["ln1_b"])
    h = merged.reshape(B * T, E)
    gate = jax.nn.sigmoid(h @ p["wr_w"] + p["wr_b"])
    value = h @ p["wv_w"] + p["wv_b"]
    coupled = _layer_norm_ref(gate * value, p["ln2_g"], p["ln2_b"]).reshape(B, T, E)
    return shifted + coupled


if __name__ == "__main__":
    key = jax.random.PRNGKey(0)
    kdata, kparam = jax.random.split(key)
    params = make_params(kparam, EMBED)
    T, E = 8, EMBED

    # B=16 exercises a grid of 2 batch tiles; B=2 exercises the batch-padding path.
    for B in (16, 2):
        kx, kp, ke = jax.random.split(jax.random.fold_in(kdata, B), 3)
        x = 0.1 * jax.random.normal(kx, (B, T, E), jnp.float32)
        x_prev = 0.1 * jax.random.normal(kp, (B, T, E), jnp.float32)
        encoder_context = 0.1 * jax.random.normal(ke, (B, E), jnp.float32)

        out = jax.block_until_ready(
            attention_stream_block(x, x_prev, encoder_context, params)
        )
        ref = reference(x, x_prev, encoder_context, params)
        assert out.shape == (B, T, E)
        assert jnp.allclose(out, ref, rtol=1e-4, atol=1e-4), f"mismatch vs reference at B={B}"

    print("KERNEL_OK")
</pallas_src>

<mosaic_0001>
module attributes {stable_mosaic.version = 11 : i64} {
  func.func @attention_stream_kernel(%arg0: i32, %arg1: memref<8x8x128xf32, #tpu.memory_space<vmem>>, %arg2: memref<8x8x128xf32, #tpu.memory_space<vmem>>, %arg3: memref<8x128xf32, #tpu.memory_space<vmem>>, %arg4: memref<1x1xf32, #tpu.memory_space<smem>>, %arg5: memref<1x128xf32, #tpu.memory_space<vmem>>, %arg6: memref<1x128xf32, #tpu.memory_space<vmem>>, %arg7: memref<1x128xf32, #tpu.memory_space<vmem>>, %arg8: memref<1x128xf32, #tpu.memory_space<vmem>>, %arg9: memref<128x256xf32, #tpu.memory_space<vmem>>, %arg10: memref<1x256xf32, #tpu.memory_space<vmem>>, %arg11: memref<1x128xf32, #tpu.memory_space<vmem>>, %arg12: memref<1x128xf32, #tpu.memory_space<vmem>>, %arg13: memref<8x8x128xf32, #tpu.memory_space<vmem>>, %arg14: memref<8x8x128xf32, #tpu.memory_space<vmem>>, %arg15: memref<8x8x128xf32, #tpu.memory_space<vmem>>, %arg16: memref<8x8x128xf32, #tpu.memory_space<vmem>>, %arg17: memref<8x8x1xf32, #tpu.memory_space<vmem>>, %arg18: memref<8x8x1xf32, #tpu.memory_space<vmem>>) attributes {dimension_semantics = [#tpu.dimension_semantics<parallel>], iteration_bounds = array<i64: 2>, scalar_prefetch = 0 : i64, scratch_operands = 5 : i64, tpu.core_type = #tpu.core_type<tc>, window_params = [{transform_indices = @transform_0, window_bounds = array<i64: 8, 8, 128>}, {transform_indices = @transform_1, window_bounds = array<i64: 8, 8, 128>}, {transform_indices = @transform_2, window_bounds = array<i64: 8, 128>}, {transform_indices = @transform_3, window_bounds = array<i64: 1, 1>}, {pipeline_mode = #tpu.pipeline_mode<synchronous>, transform_indices = @transform_4, window_bounds = array<i64: 1, 128>}, {pipeline_mode = #tpu.pipeline_mode<synchronous>, transform_indices = @transform_5, window_bounds = array<i64: 1, 128>}, {pipeline_mode = #tpu.pipeline_mode<synchronous>, transform_indices = @transform_6, window_bounds = array<i64: 1, 128>}, {pipeline_mode = #tpu.pipeline_mode<synchronous>, transform_indices = @transform_7, window_bounds = array<i64: 1, 128>}, {pipeline_mode = #tpu.pipeline_mode<synchronous>, transform_indices = @transform_8, window_bounds = array<i64: 128, 256>}, {pipeline_mode = #tpu.pipeline_mode<synchronous>, transform_indices = @transform_9, window_bounds = array<i64: 1, 256>}, {pipeline_mode = #tpu.pipeline_mode<synchronous>, transform_indices = @transform_10, window_bounds = array<i64: 1, 128>}, {pipeline_mode = #tpu.pipeline_mode<synchronous>, transform_indices = @transform_11, window_bounds = array<i64: 1, 128>}, {transform_indices = @transform_12, window_bounds = array<i64: 8, 8, 128>}]} {
    %c0 = arith.constant 0 : index
    %c0_0 = arith.constant 0 : index
    %0 = memref.load %arg4[%c0, %c0_0] : memref<1x1xf32, #tpu.memory_space<smem>>
    %cst = arith.constant 1.000000e+00 : f32
    %1 = arith.subf %cst, %0 : f32
    %c0_1 = arith.constant 0 : index
    %c0_2 = arith.constant 0 : index
    %c0_3 = arith.constant 0 : index
    %2 = vector.load %arg1[%c0_1, %c0_2, %c0_3] : memref<8x8x128xf32, #tpu.memory_space<vmem>>, vector<8x1x128xf32>
    %3 = vector.shape_cast %2 : vector<8x1x128xf32> to vector<8x128xf32>
    %4 = vector.broadcast %0 : f32 to vector<8x128xf32>
    %5 = arith.mulf %4, %3 : vector<8x128xf32>
    %c0_4 = arith.constant 0 : index
    %c0_5 = arith.constant 0 : index
    %c0_6 = arith.constant 0 : index
    %6 = vector.load %arg2[%c0_4, %c0_5, %c0_6] : memref<8x8x128xf32, #tpu.memory_space<vmem>>, vector<8x1x128xf32>
    %7 = vector.shape_cast %6 : vector<8x1x128xf32> to vector<8x128xf32>
    %8 = vector.broadcast %1 : f32 to vector<8x128xf32>
    %9 = arith.mulf %8, %7 : vector<8x128xf32>
    %10 = arith.addf %5, %9 : vector<8x128xf32>
    %c0_7 = arith.constant 0 : index
    %c0_8 = arith.constant 0 : index
    %c0_9 = arith.constant 0 : index
    %11 = vector.load %arg14[%c0_7, %c0_8, %c0_9] : memref<8x8x128xf32, #tpu.memory_space<vmem>>, vector<1x8x128xf32>
    %12 = vector.shape_cast %11 : vector<1x8x128xf32> to vector<8x128xf32>
    %13 = vector.shape_cast %10 : vector<8x128xf32> to vector<1x8x128xf32>
    tpu.vector_store %arg14[%c0_7, %c0_8, %c0_9], %13 {strides = array<i32>} : memref<8x8x128xf32, #tpu.memory_space<vmem>>, vector<1x8x128xf32>,
    %c0_10 = arith.constant 0 : index
    %c1 = arith.constant 1 : index
    %c0_11 = arith.constant 0 : index
    %14 = vector.load %arg1[%c0_10, %c1, %c0_11] : memref<8x8x128xf32, #tpu.memory_space<vmem>>, vector<8x1x128xf32>
    %15 = vector.shape_cast %14 : vector<8x1x128xf32> to vector<8x128xf32>
    %16 = vector.broadcast %0 : f32 to vector<8x128xf32>
    %17 = arith.mulf %16, %15 : vector<8x128xf32>
    %c0_12 = arith.constant 0 : index
    %c1_13 = arith.constant 1 : index
    %c0_14 = arith.constant 0 : index
    %18 = vector.load %arg2[%c0_12, %c1_13, %c0_14] : memref<8x8x128xf32, #tpu.memory_space<vmem>>, vector<8x1x128xf32>
    %19 = vector.shape_cast %18 : vector<8x1x128xf32> to vector<8x128xf32>
    %20 = vector.broadcast %1 : f32 to vector<8x128xf32>
    %21 = arith.mulf %20, %19 : vector<8x128xf32>
    %22 = arith.addf %17, %21 : vector<8x128xf32>
    %c1_15 = arith.constant 1 : index
    %c0_16 = arith.constant 0 : index
    %c0_17 = arith.constant 0 : index
    %23 = vector.load %arg14[%c1_15, %c0_16, %c0_17] : memref<8x8x128xf32, #tpu.memory_space<vmem>>, vector<1x8x128xf32>
    %24 = vector.shape_cast %23 : vector<1x8x128xf32> to vector<8x128xf32>
    %25 = vector.shape_cast %22 : vector<8x128xf32> to vector<1x8x128xf32>
    tpu.vector_store %arg14[%c1_15, %c0_16, %c0_17], %25 {strides = array<i32>} : memref<8x8x128xf32, #tpu.memory_space<vmem>>, vector<1x8x128xf32>,
    %c0_18 = arith.constant 0 : index
    %c2 = arith.constant 2 : index
    %c0_19 = arith.constant 0 : index
    %26 = vector.load %arg1[%c0_18, %c2, %c0_19] : memref<8x8x128xf32, #tpu.memory_space<vmem>>, vector<8x1x128xf32>
    %27 = vector.shape_cast %26 : vector<8x1x128xf32> to vector<8x128xf32>
    %28 = vector.broadcast %0 : f32 to vector<8x128xf32>
    %29 = arith.mulf %28, %27 : vector<8x128xf32>
    %c0_20 = arith.constant 0 : index
    %c2_21 = arith.constant 2 : index
    %c0_22 = arith.constant 0 : index
    %30 = vector.load %arg2[%c0_20, %c2_21, %c0_22] : memref<8x8x128xf32, #tpu.memory_space<vmem>>, vector<8x1x128xf32>
    %31 = vector.shape_cast %30 : vector<8x1x128xf32> to vector<8x128xf32>
    %32 = vector.broadcast %1 : f32 to vector<8x128xf32>
    %33 = arith.mulf %32, %31 : vector<8x128xf32>
    %34 = arith.addf %29, %33 : vector<8x128xf32>
    %c2_23 = arith.constant 2 : index
    %c0_24 = arith.constant 0 : index
    %c0_25 = arith.constant 0 : index
    %35 = vector.load %arg14[%c2_23, %c0_24, %c0_25] : memref<8x8x128xf32, #tpu.memory_space<vmem>>, vector<1x8x128xf32>
    %36 = vector.shape_cast %35 : vector<1x8x128xf32> to vector<8x128xf32>
    %37 = vector.shape_cast %34 : vector<8x128xf32> to vector<1x8x128xf32>
    tpu.vector_store %arg14[%c2_23, %c0_24, %c0_25], %37 {strides = array<i32>} : memref<8x8x128xf32, #tpu.memory_space<vmem>>, vector<1x8x128xf32>,
    %c0_26 = arith.constant 0 : index
    %c3 = arith.constant 3 : index
    %c0_27 = arith.constant 0 : index
    %38 = vector.load %arg1[%c0_26, %c3, %c0_27] : memref<8x8x128xf32, #tpu.memory_space<vmem>>, vector<8x1x128xf32>
    %39 = vector.shape_cast %38 : vector<8x1x128xf32> to vector<8x128xf32>
    %40 = vector.broadcast %0 : f32 to vector<8x128xf32>
    %41 = arith.mulf %40, %39 : vector<8x128xf32>
    %c0_28 = arith.constant 0 : index
    %c3_29 = arith.constant 3 : index
    %c0_30 = arith.constant 0 : index
    %42 = vector.load %arg2[%c0_28, %c3_29, %c0_30] : memref<8x8x128xf32, #tpu.memory_space<vmem>>, vector<8x1x128xf32>
    %43 = vector.shape_cast %42 : vector<8x1x128xf32> to vector<8x128xf32>
    %44 = vector.broadcast %1 : f32 to vector<8x128xf32>
    %45 = arith.mulf %44, %43 : vector<8x128xf32>
    %46 = arith.addf %41, %45 : vector<8x128xf32>
    %c3_31 = arith.constant 3 : index
    %c0_32 = arith.constant 0 : index
    %c0_33 = arith.constant 0 : index
    %47 = vector.load %arg14[%c3_31, %c0_32, %c0_33] : memref<8x8x128xf32, #tpu.memory_space<vmem>>, vector<1x8x128xf32>
    %48 = vector.shape_cast %47 : vector<1x8x128xf32> to vector<8x128xf32>
    %49 = vector.shape_cast %46 : vector<8x128xf32> to vector<1x8x128xf32>
    tpu.vector_store %arg14[%c3_31, %c0_32, %c0_33], %49 {strides = array<i32>} : memref<8x8x128xf32, #tpu.memory_space<vmem>>, vector<1x8x128xf32>,
    %c0_34 = arith.constant 0 : index
    %c4 = arith.constant 4 : index
    %c0_35 = arith.constant 0 : index
    %50 = vector.load %arg1[%c0_34, %c4, %c0_35] : memref<8x8x128xf32, #tpu.memory_space<vmem>>, vector<8x1x128xf32>
    %51 = vector.shape_cast %50 : vector<8x1x128xf32> to vector<8x128xf32>
    %52 = vector.broadcast %0 : f32 to vector<8x128xf32>
    %53 = arith.mulf %52, %51 : vector<8x128xf32>
    %c0_36 = arith.constant 0 : index
    %c4_37 = arith.constant 4 : index
    %c0_38 = arith.constant 0 : index
    %54 = vector.load %arg2[%c0_36, %c4_37, %c0_38] : memref<8x8x128xf32, #tpu.memory_space<vmem>>, vector<8x1x128xf32>
    %55 = vector.shape_cast %54 : vector<8x1x128xf32> to vector<8x128xf32>
    %56 = vector.broadcast %1 : f32 to vector<8x128xf32>
    %57 = arith.mulf %56, %55 : vector<8x128xf32>
    %58 = arith.addf %53, %57 : vector<8x128xf32>
    %c4_39 = arith.constant 4 : index
    %c0_40 = arith.constant 0 : index
    %c0_41 = arith.constant 0 : index
    %59 = vector.load %arg14[%c4_39, %c0_40, %c0_41] : memref<8x8x128xf32, #tpu.memory_space<vmem>>, vector<1x8x128xf32>
    %60 = vector.shape_cast %59 : vector<1x8x128xf32> to vector<8x128xf32>
    %61 = vector.shape_cast %58 : vector<8x128xf32> to vector<1x8x128xf32>
    tpu.vector_store %arg14[%c4_39, %c0_40, %c0_41], %61 {strides = array<i32>} : memref<8x8x128xf32, #tpu.memory_space<vmem>>, vector<1x8x128xf32>,
    %c0_42 = arith.constant 0 : index
    %c5 = arith.constant 5 : index
    %c0_43 = arith.constant 0 : index
    %62 = vector.load %arg1[%c0_42, %c5, %c0_43] : memref<8x8x128xf32, #tpu.memory_space<vmem>>, vector<8x1x128xf32>
    %63 = vector.shape_cast %62 : vector<8x1x128xf32> to vector<8x128xf32>
    %64 = vector.broadcast %0 : f32 to vector<8x128xf32>
    %65 = arith.mulf %64, %63 : vector<8x128xf32>
    %c0_44 = arith.constant 0 : index
    %c5_45 = arith.constant 5 : index
    %c0_46 = arith.constant 0 : index
    %66 = vector.load %arg2[%c0_44, %c5_45, %c0_46] : memref<8x8x128xf32, #tpu.memory_space<vmem>>, vector<8x1x128xf32>
    %67 = vector.shape_cast %66 : vector<8x1x128xf32> to vector<8x128xf32>
    %68 = vector.broadcast %1 : f32 to vector<8x128xf32>
    %69 = arith.mulf %68, %67 : vector<8x128xf32>
    %70 = arith.addf %65, %69 : vector<8x128xf32>
    %c5_47 = arith.constant 5 : index
    %c0_48 = arith.constant 0 : index
    %c0_49 = arith.constant 0 : index
    %71 = vector.load %arg14[%c5_47, %c0_48, %c0_49] : memref<8x8x128xf32, #tpu.memory_space<vmem>>, vector<1x8x128xf32>
    %72 = vector.shape_cast %71 : vector<1x8x128xf32> to vector<8x128xf32>
    %73 = vector.shape_cast %70 : vector<8x128xf32> to vector<1x8x128xf32>
    tpu.vector_store %arg14[%c5_47, %c0_48, %c0_49], %73 {strides = array<i32>} : memref<8x8x128xf32, #tpu.memory_space<vmem>>, vector<1x8x128xf32>,
    %c0_50 = arith.constant 0 : index
    %c6 = arith.constant 6 : index
    %c0_51 = arith.constant 0 : index
    %74 = vector.load %arg1[%c0_50, %c6, %c0_51] : memref<8x8x128xf32, #tpu.memory_space<vmem>>, vector<8x1x128xf32>
    %75 = vector.shape_cast %74 : vector<8x1x128xf32> to vector<8x128xf32>
    %76 = vector.broadcast %0 : f32 to vector<8x128xf32>
    %77 = arith.mulf %76, %75 : vector<8x128xf32>
    %c0_52 = arith.constant 0 : index
    %c6_53 = arith.constant 6 : index
    %c0_54 = arith.constant 0 : index
    %78 = vector.load %arg2[%c0_52, %c6_53, %c0_54] : memref<8x8x128xf32, #tpu.memory_space<vmem>>, vector<8x1x128xf32>
    %79 = vector.shape_cast %78 : vector<8x1x128xf32> to vector<8x128xf32>
    %80 = vector.broadcast %1 : f32 to vector<8x128xf32>
    %81 = arith.mulf %80, %79 : vector<8x128xf32>
    %82 = arith.addf %77, %81 : vector<8x128xf32>
    %c6_55 = arith.constant 6 : index
    %c0_56 = arith.constant 0 : index
    %c0_57 = arith.constant 0 : index
    %83 = vector.load %arg14[%c6_55, %c0_56, %c0_57] : memref<8x8x128xf32, #tpu.memory_space<vmem>>, vector<1x8x128xf32>
    %84 = vector.shape_cast %83 : vector<1x8x128xf32> to vector<8x128xf32>
    %85 = vector.shape_cast %82 : vector<8x128xf32> to vector<1x8x128xf32>
    tpu.vector_store %arg14[%c6_55, %c0_56, %c0_57], %85 {strides = array<i32>} : memref<8x8x128xf32, #tpu.memory_space<vmem>>, vector<1x8x128xf32>,
    %c0_58 = arith.constant 0 : index
    %c7 = arith.constant 7 : index
    %c0_59 = arith.constant 0 : index
    %86 = vector.load %arg1[%c0_58, %c7, %c0_59] : memref<8x8x128xf32, #tpu.memory_space<vmem>>, vector<8x1x128xf32>
    %87 = vector.shape_cast %86 : vector<8x1x128xf32> to vector<8x128xf32>
    %88 = vector.broadcast %0 : f32 to vector<8x128xf32>
    %89 = arith.mulf %88, %87 : vector<8x128xf32>
    %c0_60 = arith.constant 0 : index
    %c7_61 = arith.constant 7 : index
    %c0_62 = arith.constant 0 : index
    %90 = vector.load %arg2[%c0_60, %c7_61, %c0_62] : memref<8x8x128xf32, #tpu.memory_space<vmem>>, vector<8x1x128xf32>
    %91 = vector.shape_cast %90 : vector<8x1x128xf32> to vector<8x128xf32>
    %92 = vector.broadcast %1 : f32 to vector<8x128xf32>
    %93 = arith.mulf %92, %91 : vector<8x128xf32>
    %94 = arith.addf %89, %93 : vector<8x128xf32>
    %c7_63 = arith.constant 7 : index
    %c0_64 = arith.constant 0 : index
    %c0_65 = arith.constant 0 : index
    %95 = vector.load %arg14[%c7_63, %c0_64, %c0_65] : memref<8x8x128xf32, #tpu.memory_space<vmem>>, vector<1x8x128xf32>
    %96 = vector.shape_cast %95 : vector<1x8x128xf32> to vector<8x128xf32>
    %97 = vector.shape_cast %94 : vector<8x128xf32> to vector<1x8x128xf32>
    tpu.vector_store %arg14[%c7_63, %c0_64, %c0_65], %97 {strides = array<i32>} : memref<8x8x128xf32, #tpu.memory_space<vmem>>, vector<1x8x128xf32>,
    %c0_66 = arith.constant 0 : index
    %c0_67 = arith.constant 0 : index
    %c0_68 = arith.constant 0 : index
    %98 = vector.load %arg14[%c0_66, %c0_67, %c0_68] : memref<8x8x128xf32, #tpu.memory_space<vmem>>, vector<8x8x128xf32>
    %c0_69 = arith.constant 0 : index
    %c0_70 = arith.constant 0 : index
    %99 = vector.load %arg5[%c0_69, %c0_70] : memref<1x128xf32, #tpu.memory_space<vmem>>, vector<1x128xf32>
    %100 = vector.shape_cast %99 : vector<1x128xf32> to vector<1x1x128xf32>
    %101 = vector.broadcast %100 : vector<1x1x128xf32> to vector<8x8x128xf32>
    %102 = arith.mulf %98, %101 : vector<8x8x128xf32>
    %103 = arith.negf %102 : vector<8x8x128xf32>
    %104 = math.exp %103 : vector<8x8x128xf32>
    %cst_71 = arith.constant 1.000000e+00 : f32
    %105 = vector.broadcast %cst_71 : f32 to vector<8x8x128xf32>
    %106 = arith.addf %105, %104 : vector<8x8x128xf32>
    %107 = arith.divf %105, %106 : vector<8x8x128xf32>
    %108 = math.exp %98 : vector<8x8x128xf32>
    %c0_72 = arith.constant 0 : index
    %c0_73 = arith.constant 0 : index
    %109 = vector.load %arg3[%c0_72, %c0_73] : memref<8x128xf32, #tpu.memory_space<vmem>>, vector<8x128xf32>
    %c0_74 = arith.constant 0 : index
    %c0_75 = arith.constant 0 : index
    %110 = vector.load %arg6[%c0_74, %c0_75] : memref<1x128xf32, #tpu.memory_space<vmem>>, vector<1x128xf32>
    %111 = vector.broadcast %110 : vector<1x128xf32> to vector<8x128xf32>
    %112 = arith.mulf %109, %111 : vector<8x128xf32>
    %113 = arith.negf %112 : vector<8x128xf32>
    %114 = math.exp %113 : vector<8x128xf32>
    %cst_76 = arith.constant 1.000000e+00 : f32
    %115 = vector.broadcast %cst_76 : f32 to vector<8x128xf32>
    %116 = arith.addf %115, %114 : vector<8x128xf32>
    %117 = arith.divf %115, %116 : vector<8x128xf32>
    %118 = arith.mulf %117, %109 : vector<8x128xf32>
    %c0_77 = arith.constant 0 : index
    %c0_78 = arith.constant 0 : index
    %c0_79 = arith.constant 0 : index
    %119 = vector.load %arg15[%c0_77, %c0_78, %c0_79] : memref<8x8x128xf32, #tpu.memory_space<vmem>>, vector<8x8x128xf32>
    tpu.vector_store %arg15[%c0_77, %c0_78, %c0_79], %107 {strides = array<i32>} : memref<8x8x128xf32, #tpu.memory_space<vmem>>, vector<8x8x128xf32>,
    %120 = arith.mulf %108, %98 : vector<8x8x128xf32>
    %121 = vector.shape_cast %118 : vector<8x128xf32> to vector<1x8x128xf32>
    %122 = vector.broadcast %121 : vector<1x8x128xf32> to vector<8x8x128xf32>
    %123 = arith.addf %120, %122 : vector<8x8x128xf32>
    %c0_80 = arith.constant 0 : index
    %c0_81 = arith.constant 0 : index
    %c0_82 = arith.constant 0 : index
    %124 = vector.load %arg16[%c0_80, %c0_81, %c0_82] : memref<8x8x128xf32, #tpu.memory_space<vmem>>, vector<8x8x128xf32>
    tpu.vector_store %arg16[%c0_80, %c0_81, %c0_82], %123 {strides = array<i32>} : memref<8x8x128xf32, #tpu.memory_space<vmem>>, vector<8x8x128xf32>,
    %cst_83 = arith.constant dense<0.000000e+00> : vector<8x8xf32>
    %125 = vector.multi_reduction <add>, %107, %cst_83 [2] : vector<8x8x128xf32> to vector<8x8xf32>
    %126 = vector.shape_cast %125 : vector<8x8xf32> to vector<8x8x1xf32>
    %cst_84 = arith.constant 1.280000e+02 : f32
    %127 = vector.broadcast %cst_84 : f32 to vector<8x8x1xf32>
    %128 = arith.divf %126, %127 : vector<8x8x1xf32>
    %c0_85 = arith.constant 0 : index
    %c0_86 = arith.constant 0 : index
    %c0_87 = arith.constant 0 : index
    %129 = vector.load %arg17[%c0_85, %c0_86, %c0_87] : memref<8x8x1xf32, #tpu.memory_space<vmem>>, vector<8x8x1xf32>
    tpu.vector_store %arg17[%c0_85, %c0_86, %c0_87], %128 {strides = array<i32>} : memref<8x8x1xf32, #tpu.memory_space<vmem>>, vector<8x8x1xf32>,
    %cst_88 = arith.constant dense<0.000000e+00> : vector<8x8xf32>
    %130 = vector.multi_reduction <add>, %108, %cst_88 [2] : vector<8x8x128xf32> to vector<8x8xf32>
    %131 = vector.shape_cast %130 : vector<8x8xf32> to vector<8x8x1xf32>
    %c0_89 = arith.constant 0 : index
    %c0_90 = arith.constant 0 : index
    %c0_91 = arith.constant 0 : index
    %132 = vector.load %arg18[%c0_89, %c0_90, %c0_91] : memref<8x8x1xf32, #tpu.memory_space<vmem>>, vector<8x8x1xf32>
    tpu.vector_store %arg18[%c0_89, %c0_90, %c0_91], %131 {strides = array<i32>} : memref<8x8x1xf32, #tpu.memory_space<vmem>>, vector<8x8x1xf32>,
    %cst_92 = arith.constant 0.000000e+00 : f32
    %133 = vector.broadcast %cst_92 : f32 to vector<8x1xf32>
    %cst_93 = arith.constant 0.000000e+00 : f32
    %134 = vector.broadcast %cst_93 : f32 to vector<8x128xf32>
    %c0_i32 = arith.constant 0 : i32
    %135 = arith.index_cast %c0_i32 : i32 to index
    %c0_94 = arith.constant 0 : index
    %c0_95 = arith.constant 0 : index
    %136 = vector.load %arg17[%135, %c0_94, %c0_95] : memref<8x8x1xf32, #tpu.memory_space<vmem>>, vector<1x8x1xf32>
    %137 = vector.shape_cast %136 : vector<1x8x1xf32> to vector<8x1xf32>
    %138 = arith.mulf %137, %133 : vector<8x1xf32>
    %139 = arith.index_cast %c0_i32 : i32 to index
    %c0_96 = arith.constant 0 : index
    %c0_97 = arith.constant 0 : index
    %140 = vector.load %arg18[%139, %c0_96, %c0_97] : memref<8x8x1xf32, #tpu.memory_space<vmem>>, vector<1x8x1xf32>
    %141 = vector.shape_cast %140 : vector<1x8x1xf32> to vector<8x1xf32>
    %142 = arith.addf %138, %141 : vector<8x1xf32>
    %143 = arith.index_cast %c0_i32 : i32 to index
    %c0_98 = arith.constant 0 : index
    %c0_99 = arith.constant 0 : index
    %144 = vector.load %arg15[%143, %c0_98, %c0_99] : memref<8x8x128xf32, #tpu.memory_space<vmem>>, vector<1x8x128xf32>
    %145 = vector.shape_cast %144 : vector<1x8x128xf32> to vector<8x128xf32>
    %146 = arith.mulf %145, %134 : vector<8x128xf32>
    %147 = arith.index_cast %c0_i32 : i32 to index
    %c0_100 = arith.constant 0 : index
    %c0_101 = arith.constant 0 : index
    %148 = vector.load %arg16[%147, %c0_100, %c0_101] : memref<8x8x128xf32, #tpu.memory_space<vmem>>, vector<1x8x128xf32>
    %149 = vector.shape_cast %148 : vector<1x8x128xf32> to vector<8x128xf32>
    %150 = arith.addf %146, %149 : vector<8x128xf32>
    %cst_102 = arith.constant 9.99999993E-9 : f32
    %151 = vector.broadcast %cst_102 : f32 to vector<8x1xf32>
    %152 = arith.addf %142, %151 : vector<8x1xf32>
    %153 = tpu.reciprocal %152 {approx = true} : vector<8x1xf32> -> vector<8x1xf32>
    %154 = arith.mulf %152, %153 : vector<8x1xf32>
    %cst_103 = arith.constant 2.000000e+00 : f32
    %155 = vector.broadcast %cst_103 : f32 to vector<8x1xf32>
    %156 = arith.subf %155, %154 : vector<8x1xf32>
    %157 = arith.mulf %153, %156 : vector<8x1xf32>
    %158 = vector.broadcast %157 : vector<8x1xf32> to vector<8x128xf32>
    %159 = arith.mulf %150, %158 : vector<8x128xf32>
    %160 = arith.index_cast %c0_i32 : i32 to index
    %c0_104 = arith.constant 0 : index
    %c0_105 = arith.constant 0 : index
    %161 = vector.load %arg16[%160, %c0_104, %c0_105] : memref<8x8x128xf32, #tpu.memory_space<vmem>>, vector<1x8x128xf32>
    %162 = vector.shape_cast %161 : vector<1x8x128xf32> to vector<8x128xf32>
    %163 = vector.shape_cast %159 : vector<8x128xf32> to vector<1x8x128xf32>
    tpu.vector_store %arg16[%160, %c0_104, %c0_105], %163 {strides = array<i32>} : memref<8x8x128xf32, #tpu.memory_space<vmem>>, vector<1x8x128xf32>,
    %c1_i32 = arith.constant 1 : i32
    %164 = arith.index_cast %c1_i32 : i32 to index
    %c0_106 = arith.constant 0 : index
    %c0_107 = arith.constant 0 : index
    %165 = vector.load %arg17[%164, %c0_106, %c0_107] : memref<8x8x1xf32, #tpu.memory_space<vmem>>, vector<1x8x1xf32>
    %166 = vector.shape_cast %165 : vector<1x8x1xf32> to vector<8x1xf32>
    %167 = arith.mulf %166, %142 : vector<8x1xf32>
    %168 = arith.index_cast %c1_i32 : i32 to index
    %c0_108 = arith.constant 0 : index
    %c0_109 = arith.constant 0 : index
    %169 = vector.load %arg18[%168, %c0_108, %c0_109] : memref<8x8x1xf32, #tpu.memory_space<vmem>>, vector<1x8x1xf32>
    %170 = vector.shape_cast %169 : vector<1x8x1xf32> to vector<8x1xf32>
    %171 = arith.addf %167, %170 : vector<8x1xf32>
    %172 = arith.index_cast %c1_i32 : i32 to index
    %c0_110 = arith.constant 0 : index
    %c0_111 = arith.constant 0 : index
    %173 = vector.load %arg15[%172, %c0_110, %c0_111] : memref<8x8x128xf32, #tpu.memory_space<vmem>>, vector<1x8x128xf32>
    %174 = vector.shape_cast %173 : vector<1x8x128xf32> to vector<8x128xf32>
    %175 = arith.mulf %174, %150 : vector<8x128xf32>
    %176 = arith.index_cast %c1_i32 : i32 to index
    %c0_112 = arith.constant 0 : index
    %c0_113 = arith.constant 0 : index
    %177 = vector.load %arg16[%176, %c0_112, %c0_113] : memref<8x8x128xf32, #tpu.memory_space<vmem>>, vector<1x8x128xf32>
    %178 = vector.shape_cast %177 : vector<1x8x128xf32> to vector<8x128xf32>
    %179 = arith.addf %175, %178 : vector<8x128xf32>
    %cst_114 = arith.constant 9.99999993E-9 : f32
    %180 = vector.broadcast %cst_114 : f32 to vector<8x1xf32>
    %181 = arith.addf %171, %180 : vector<8x1xf32>
    %182 = tpu.reciprocal %181 {approx = true} : vector<8x1xf32> -> vector<8x1xf32>
    %183 = arith.mulf %181, %182 : vector<8x1xf32>
    %cst_115 = arith.constant 2.000000e+00 : f32
    %184 = vector.broadcast %cst_115 : f32 to vector<8x1xf32>
    %185 = arith.subf %184, %183 : vector<8x1xf32>
    %186 = arith.mulf %182, %185 : vector<8x1xf32>
    %187 = vector.broadcast %186 : vector<8x1xf32> to vector<8x128xf32>
    %188 = arith.mulf %179, %187 : vector<8x128xf32>
    %189 = arith.index_cast %c1_i32 : i32 to index
    %c0_116 = arith.constant 0 : index
    %c0_117 = arith.constant 0 : index
    %190 = vector.load %arg16[%189, %c0_116, %c0_117] : memref<8x8x128xf32, #tpu.memory_space<vmem>>, vector<1x8x128xf32>
    %191 = vector.shape_cast %190 : vector<1x8x128xf32> to vector<8x128xf32>
    %192 = vector.shape_cast %188 : vector<8x128xf32> to vector<1x8x128xf32>
    tpu.vector_store %arg16[%189, %c0_116, %c0_117], %192 {strides = array<i32>} : memref<8x8x128xf32, #tpu.memory_space<vmem>>, vector<1x8x128xf32>,
    %c2_i32 = arith.constant 2 : i32
    %193 = arith.index_cast %c2_i32 : i32 to index
    %c0_118 = arith.constant 0 : index
    %c0_119 = arith.constant 0 : index
    %194 = vector.load %arg17[%193, %c0_118, %c0_119] : memref<8x8x1xf32, #tpu.memory_space<vmem>>, vector<1x8x1xf32>
    %195 = vector.shape_cast %194 : vector<1x8x1xf32> to vector<8x1xf32>
    %196 = arith.mulf %195, %171 : vector<8x1xf32>
    %197 = arith.index_cast %c2_i32 : i32 to index
    %c0_120 = arith.constant 0 : index
    %c0_121 = arith.constant 0 : index
    %198 = vector.load %arg18[%197, %c0_120, %c0_121] : memref<8x8x1xf32, #tpu.memory_space<vmem>>, vector<1x8x1xf32>
    %199 = vector.shape_cast %198 : vector<1x8x1xf32> to vector<8x1xf32>
    %200 = arith.addf %196, %199 : vector<8x1xf32>
    %201 = arith.index_cast %c2_i32 : i32 to index
    %c0_122 = arith.constant 0 : index
    %c0_123 = arith.constant 0 : index
    %202 = vector.load %arg15[%201, %c0_122, %c0_123] : memref<8x8x128xf32, #tpu.memory_space<vmem>>, vector<1x8x128xf32>
    %203 = vector.shape_cast %202 : vector<1x8x128xf32> to vector<8x128xf32>
    %204 = arith.mulf %203, %179 : vector<8x128xf32>
    %205 = arith.index_cast %c2_i32 : i32 to index
    %c0_124 = arith.constant 0 : index
    %c0_125 = arith.constant 0 : index
    %206 = vector.load %arg16[%205, %c0_124, %c0_125] : memref<8x8x128xf32, #tpu.memory_space<vmem>>, vector<1x8x128xf32>
    %207 = vector.shape_cast %206 : vector<1x8x128xf32> to vector<8x128xf32>
    %208 = arith.addf %204, %207 : vector<8x128xf32>
    %cst_126 = arith.constant 9.99999993E-9 : f32
    %209 = vector.broadcast %cst_126 : f32 to vector<8x1xf32>
    %210 = arith.addf %200, %209 : vector<8x1xf32>
    %211 = tpu.reciprocal %210 {approx = true} : vector<8x1xf32> -> vector<8x1xf32>
    %212 = arith.mulf %210, %211 : vector<8x1xf32>
    %cst_127 = arith.constant 2.000000e+00 : f32
    %213 = vector.broadcast %cst_127 : f32 to vector<8x1xf32>
    %214 = arith.subf %213, %212 : vector<8x1xf32>
    %215 = arith.mulf %211, %214 : vector<8x1xf32>
    %216 = vector.broadcast %215 : vector<8x1xf32> to vector<8x128xf32>
    %217 = arith.mulf %208, %216 : vector<8x128xf32>
    %218 = arith.index_cast %c2_i32 : i32 to index
    %c0_128 = arith.constant 0 : index
    %c0_129 = arith.constant 0 : index
    %219 = vector.load %arg16[%218, %c0_128, %c0_129] : memref<8x8x128xf32, #tpu.memory_space<vmem>>, vector<1x8x128xf32>
    %220 = vector.shape_cast %219 : vector<1x8x128xf32> to vector<8x128xf32>
    %221 = vector.shape_cast %217 : vector<8x128xf32> to vector<1x8x128xf32>
    tpu.vector_store %arg16[%218, %c0_128, %c0_129], %221 {strides = array<i32>} : memref<8x8x128xf32, #tpu.memory_space<vmem>>, vector<1x8x128xf32>,
    %c3_i32 = arith.constant 3 : i32
    %222 = arith.index_cast %c3_i32 : i32 to index
    %c0_130 = arith.constant 0 : index
    %c0_131 = arith.constant 0 : index
    %223 = vector.load %arg17[%222, %c0_130, %c0_131] : memref<8x8x1xf32, #tpu.memory_space<vmem>>, vector<1x8x1xf32>
    %224 = vector.shape_cast %223 : vector<1x8x1xf32> to vector<8x1xf32>
    %225 = arith.mulf %224, %200 : vector<8x1xf32>
    %226 = arith.index_cast %c3_i32 : i32 to index
    %c0_132 = arith.constant 0 : index
    %c0_133 = arith.constant 0 : index
    %227 = vector.load %arg18[%226, %c0_132, %c0_133] : memref<8x8x1xf32, #tpu.memory_space<vmem>>, vector<1x8x1xf32>
    %228 = vector.shape_cast %227 : vector<1x8x1xf32> to vector<8x1xf32>
    %229 = arith.addf %225, %228 : vector<8x1xf32>
    %230 = arith.index_cast %c3_i32 : i32 to index
    %c0_134 = arith.constant 0 : index
    %c0_135 = arith.constant 0 : index
    %231 = vector.load %arg15[%230, %c0_134, %c0_135] : memref<8x8x128xf32, #tpu.memory_space<vmem>>, vector<1x8x128xf32>
    %232 = vector.shape_cast %231 : vector<1x8x128xf32> to vector<8x128xf32>
    %233 = arith.mulf %232, %208 : vector<8x128xf32>
    %234 = arith.index_cast %c3_i32 : i32 to index
    %c0_136 = arith.constant 0 : index
    %c0_137 = arith.constant 0 : index
    %235 = vector.load %arg16[%234, %c0_136, %c0_137] : memref<8x8x128xf32, #tpu.memory_space<vmem>>, vector<1x8x128xf32>
    %236 = vector.shape_cast %235 : vector<1x8x128xf32> to vector<8x128xf32>
    %237 = arith.addf %233, %236 : vector<8x128xf32>
    %cst_138 = arith.constant 9.99999993E-9 : f32
    %238 = vector.broadcast %cst_138 : f32 to vector<8x1xf32>
    %239 = arith.addf %229, %238 : vector<8x1xf32>
    %240 = tpu.reciprocal %239 {approx = true} : vector<8x1xf32> -> vector<8x1xf32>
    %241 = arith.mulf %239, %240 : vector<8x1xf32>
    %cst_139 = arith.constant 2.000000e+00 : f32
    %242 = vector.broadcast %cst_139 : f32 to vector<8x1xf32>
    %243 = arith.subf %242, %241 : vector<8x1xf32>
    %244 = arith.mulf %240, %243 : vector<8x1xf32>
    %245 = vector.broadcast %244 : vector<8x1xf32> to vector<8x128xf32>
    %246 = arith.mulf %237, %245 : vector<8x128xf32>
    %247 = arith.index_cast %c3_i32 : i32 to index
    %c0_140 = arith.constant 0 : index
    %c0_141 = arith.constant 0 : index
    %248 = vector.load %arg16[%247, %c0_140, %c0_141] : memref<8x8x128xf32, #tpu.memory_space<vmem>>, vector<1x8x128xf32>
    %249 = vector.shape_cast %248 : vector<1x8x128xf32> to vector<8x128xf32>
    %250 = vector.shape_cast %246 : vector<8x128xf32> to vector<1x8x128xf32>
    tpu.vector_store %arg16[%247, %c0_140, %c0_141], %250 {strides = array<i32>} : memref<8x8x128xf32, #tpu.memory_space<vmem>>, vector<1x8x128xf32>,
    %c4_i32 = arith.constant 4 : i32
    %251 = arith.index_cast %c4_i32 : i32 to index
    %c0_142 = arith.constant 0 : index
    %c0_143 = arith.constant 0 : index
    %252 = vector.load %arg17[%251, %c0_142, %c0_143] : memref<8x8x1xf32, #tpu.memory_space<vmem>>, vector<1x8x1xf32>
    %253 = vector.shape_cast %252 : vector<1x8x1xf32> to vector<8x1xf32>
    %254 = arith.mulf %253, %229 : vector<8x1xf32>
    %255 = arith.index_cast %c4_i32 : i32 to index
    %c0_144 = arith.constant 0 : index
    %c0_145 = arith.constant 0 : index
    %256 = vector.load %arg18[%255, %c0_144, %c0_145] : memref<8x8x1xf32, #tpu.memory_space<vmem>>, vector<1x8x1xf32>
    %257 = vector.shape_cast %256 : vector<1x8x1xf32> to vector<8x1xf32>
    %258 = arith.addf %254, %257 : vector<8x1xf32>
    %259 = arith.index_cast %c4_i32 : i32 to index
    %c0_146 = arith.constant 0 : index
    %c0_147 = arith.constant 0 : index
    %260 = vector.load %arg15[%259, %c0_146, %c0_147] : memref<8x8x128xf32, #tpu.memory_space<vmem>>, vector<1x8x128xf32>
    %261 = vector.shape_cast %260 : vector<1x8x128xf32> to vector<8x128xf32>
    %262 = arith.mulf %261, %237 : vector<8x128xf32>
    %263 = arith.index_cast %c4_i32 : i32 to index
    %c0_148 = arith.constant 0 : index
    %c0_149 = arith.constant 0 : index
    %264 = vector.load %arg16[%263, %c0_148, %c0_149] : memref<8x8x128xf32, #tpu.memory_space<vmem>>, vector<1x8x128xf32>
    %265 = vector.shape_cast %264 : vector<1x8x128xf32> to vector<8x128xf32>
    %266 = arith.addf %262, %265 : vector<8x128xf32>
    %cst_150 = arith.constant 9.99999993E-9 : f32
    %267 = vector.broadcast %cst_150 : f32 to vector<8x1xf32>
    %268 = arith.addf %258, %267 : vector<8x1xf32>
    %269 = tpu.reciprocal %268 {approx = true} : vector<8x1xf32> -> vector<8x1xf32>
    %270 = arith.mulf %268, %269 : vector<8x1xf32>
    %cst_151 = arith.constant 2.000000e+00 : f32
    %271 = vector.broadcast %cst_151 : f32 to vector<8x1xf32>
    %272 = arith.subf %271, %270 : vector<8x1xf32>
    %273 = arith.mulf %269, %272 : vector<8x1xf32>
    %274 = vector.broadcast %273 : vector<8x1xf32> to vector<8x128xf32>
    %275 = arith.mulf %266, %274 : vector<8x128xf32>
    %276 = arith.index_cast %c4_i32 : i32 to index
    %c0_152 = arith.constant 0 : index
    %c0_153 = arith.constant 0 : index
    %277 = vector.load %arg16[%276, %c0_152, %c0_153] : memref<8x8x128xf32, #tpu.memory_space<vmem>>, vector<1x8x128xf32>
    %278 = vector.shape_cast %277 : vector<1x8x128xf32> to vector<8x128xf32>
    %279 = vector.shape_cast %275 : vector<8x128xf32> to vector<1x8x128xf32>
    tpu.vector_store %arg16[%276, %c0_152, %c0_153], %279 {strides = array<i32>} : memref<8x8x128xf32, #tpu.memory_space<vmem>>, vector<1x8x128xf32>,
    %c5_i32 = arith.constant 5 : i32
    %280 = arith.index_cast %c5_i32 : i32 to index
    %c0_154 = arith.constant 0 : index
    %c0_155 = arith.constant 0 : index
    %281 = vector.load %arg17[%280, %c0_154, %c0_155] : memref<8x8x1xf32, #tpu.memory_space<vmem>>, vector<1x8x1xf32>
    %282 = vector.shape_cast %281 : vector<1x8x1xf32> to vector<8x1xf32>
    %283 = arith.mulf %282, %258 : vector<8x1xf32>
    %284 = arith.index_cast %c5_i32 : i32 to index
    %c0_156 = arith.constant 0 : index
    %c0_157 = arith.constant 0 : index
    %285 = vector.load %arg18[%284, %c0_156, %c0_157] : memref<8x8x1xf32, #tpu.memory_space<vmem>>, vector<1x8x1xf32>
    %286 = vector.shape_cast %285 : vector<1x8x1xf32> to vector<8x1xf32>
    %287 = arith.addf %283, %286 : vector<8x1xf32>
    %288 = arith.index_cast %c5_i32 : i32 to index
    %c0_158 = arith.constant 0 : index
    %c0_159 = arith.constant 0 : index
    %289 = vector.load %arg15[%288, %c0_158, %c0_159] : memref<8x8x128xf32, #tpu.memory_space<vmem>>, vector<1x8x128xf32>
    %290 = vector.shape_cast %289 : vector<1x8x128xf32> to vector<8x128xf32>
    %291 = arith.mulf %290, %266 : vector<8x128xf32>
    %292 = arith.index_cast %c5_i32 : i32 to index
    %c0_160 = arith.constant 0 : index
    %c0_161 = arith.constant 0 : index
    %293 = vector.load %arg16[%292, %c0_160, %c0_161] : memref<8x8x128xf32, #tpu.memory_space<vmem>>, vector<1x8x128xf32>
    %294 = vector.shape_cast %293 : vector<1x8x128xf32> to vector<8x128xf32>
    %295 = arith.addf %291, %294 : vector<8x128xf32>
    %cst_162 = arith.constant 9.99999993E-9 : f32
    %296 = vector.broadcast %cst_162 : f32 to vector<8x1xf32>
    %297 = arith.addf %287, %296 : vector<8x1xf32>
    %298 = tpu.reciprocal %297 {approx = true} : vector<8x1xf32> -> vector<8x1xf32>
    %299 = arith.mulf %297, %298 : vector<8x1xf32>
    %cst_163 = arith.constant 2.000000e+00 : f32
    %300 = vector.broadcast %cst_163 : f32 to vector<8x1xf32>
    %301 = arith.subf %300, %299 : vector<8x1xf32>
    %302 = arith.mulf %298, %301 : vector<8x1xf32>
    %303 = vector.broadcast %302 : vector<8x1xf32> to vector<8x128xf32>
    %304 = arith.mulf %295, %303 : vector<8x128xf32>
    %305 = arith.index_cast %c5_i32 : i32 to index
    %c0_164 = arith.constant 0 : index
    %c0_165 = arith.constant 0 : index
    %306 = vector.load %arg16[%305, %c0_164, %c0_165] : memref<8x8x128xf32, #tpu.memory_space<vmem>>, vector<1x8x128xf32>
    %307 = vector.shape_cast %306 : vector<1x8x128xf32> to vector<8x128xf32>
    %308 = vector.shape_cast %304 : vector<8x128xf32> to vector<1x8x128xf32>
    tpu.vector_store %arg16[%305, %c0_164, %c0_165], %308 {strides = array<i32>} : memref<8x8x128xf32, #tpu.memory_space<vmem>>, vector<1x8x128xf32>,
    %c6_i32 = arith.constant 6 : i32
    %309 = arith.index_cast %c6_i32 : i32 to index
    %c0_166 = arith.constant 0 : index
    %c0_167 = arith.constant 0 : index
    %310 = vector.load %arg17[%309, %c0_166, %c0_167] : memref<8x8x1xf32, #tpu.memory_space<vmem>>, vector<1x8x1xf32>
    %311 = vector.shape_cast %310 : vector<1x8x1xf32> to vector<8x1xf32>
    %312 = arith.mulf %311, %287 : vector<8x1xf32>
    %313 = arith.index_cast %c6_i32 : i32 to index
    %c0_168 = arith.constant 0 : index
    %c0_169 = arith.constant 0 : index
    %314 = vector.load %arg18[%313, %c0_168, %c0_169] : memref<8x8x1xf32, #tpu.memory_space<vmem>>, vector<1x8x1xf32>
    %315 = vector.shape_cast %314 : vector<1x8x1xf32> to vector<8x1xf32>
    %316 = arith.addf %312, %315 : vector<8x1xf32>
    %317 = arith.index_cast %c6_i32 : i32 to index
    %c0_170 = arith.constant 0 : index
    %c0_171 = arith.constant 0 : index
    %318 = vector.load %arg15[%317, %c0_170, %c0_171] : memref<8x8x128xf32, #tpu.memory_space<vmem>>, vector<1x8x128xf32>
    %319 = vector.shape_cast %318 : vector<1x8x128xf32> to vector<8x128xf32>
    %320 = arith.mulf %319, %295 : vector<8x128xf32>
    %321 = arith.index_cast %c6_i32 : i32 to index
    %c0_172 = arith.constant 0 : index
    %c0_173 = arith.constant 0 : index
    %322 = vector.load %arg16[%321, %c0_172, %c0_173] : memref<8x8x128xf32, #tpu.memory_space<vmem>>, vector<1x8x128xf32>
    %323 = vector.shape_cast %322 : vector<1x8x128xf32> to vector<8x128xf32>
    %324 = arith.addf %320, %323 : vector<8x128xf32>
    %cst_174 = arith.constant 9.99999993E-9 : f32
    %325 = vector.broadcast %cst_174 : f32 to vector<8x1xf32>
    %326 = arith.addf %316, %325 : vector<8x1xf32>
    %327 = tpu.reciprocal %326 {approx = true} : vector<8x1xf32> -> vector<8x1xf32>
    %328 = arith.mulf %326, %327 : vector<8x1xf32>
    %cst_175 = arith.constant 2.000000e+00 : f32
    %329 = vector.broadcast %cst_175 : f32 to vector<8x1xf32>
    %330 = arith.subf %329, %328 : vector<8x1xf32>
    %331 = arith.mulf %327, %330 : vector<8x1xf32>
    %332 = vector.broadcast %331 : vector<8x1xf32> to vector<8x128xf32>
    %333 = arith.mulf %324, %332 : vector<8x128xf32>
    %334 = arith.index_cast %c6_i32 : i32 to index
    %c0_176 = arith.constant 0 : index
    %c0_177 = arith.constant 0 : index
    %335 = vector.load %arg16[%334, %c0_176, %c0_177] : memref<8x8x128xf32, #tpu.memory_space<vmem>>, vector<1x8x128xf32>
    %336 = vector.shape_cast %335 : vector<1x8x128xf32> to vector<8x128xf32>
    %337 = vector.shape_cast %333 : vector<8x128xf32> to vector<1x8x128xf32>
    tpu.vector_store %arg16[%334, %c0_176, %c0_177], %337 {strides = array<i32>} : memref<8x8x128xf32, #tpu.memory_space<vmem>>, vector<1x8x128xf32>,
    %c7_i32 = arith.constant 7 : i32
    %338 = arith.index_cast %c7_i32 : i32 to index
    %c0_178 = arith.constant 0 : index
    %c0_179 = arith.constant 0 : index
    %339 = vector.load %arg17[%338, %c0_178, %c0_179] : memref<8x8x1xf32, #tpu.memory_space<vmem>>, vector<1x8x1xf32>
    %340 = vector.shape_cast %339 : vector<1x8x1xf32> to vector<8x1xf32>
    %341 = arith.mulf %340, %316 : vector<8x1xf32>
    %342 = arith.index_cast %c7_i32 : i32 to index
    %c0_180 = arith.constant 0 : index
    %c0_181 = arith.constant 0 : index
    %343 = vector.load %arg18[%342, %c0_180, %c0_181] : memref<8x8x1xf32, #tpu.memory_space<vmem>>, vector<1x8x1xf32>
    %344 = vector.shape_cast %343 : vector<1x8x1xf32> to vector<8x1xf32>
    %345 = arith.addf %341, %344 : vector<8x1xf32>
    %346 = arith.index_cast %c7_i32 : i32 to index
    %c0_182 = arith.constant 0 : index
    %c0_183 = arith.constant 0 : index
    %347 = vector.load %arg15[%346, %c0_182, %c0_183] : memref<8x8x128xf32, #tpu.memory_space<vmem>>, vector<1x8x128xf32>
    %348 = vector.shape_cast %347 : vector<1x8x128xf32> to vector<8x128xf32>
    %349 = arith.mulf %348, %324 : vector<8x128xf32>
    %350 = arith.index_cast %c7_i32 : i32 to index
    %c0_184 = arith.constant 0 : index
    %c0_185 = arith.constant 0 : index
    %351 = vector.load %arg16[%350, %c0_184, %c0_185] : memref<8x8x128xf32, #tpu.memory_space<vmem>>, vector<1x8x128xf32>
    %352 = vector.shape_cast %351 : vector<1x8x128xf32> to vector<8x128xf32>
    %353 = arith.addf %349, %352 : vector<8x128xf32>
    %cst_186 = arith.constant 9.99999993E-9 : f32
    %354 = vector.broadcast %cst_186 : f32 to vector<8x1xf32>
    %355 = arith.addf %345, %354 : vector<8x1xf32>
    %356 = tpu.reciprocal %355 {approx = true} : vector<8x1xf32> -> vector<8x1xf32>
    %357 = arith.mulf %355, %356 : vector<8x1xf32>
    %cst_187 = arith.constant 2.000000e+00 : f32
    %358 = vector.broadcast %cst_187 : f32 to vector<8x1xf32>
    %359 = arith.subf %358, %357 : vector<8x1xf32>
    %360 = arith.mulf %356, %359 : vector<8x1xf32>
    %361 = vector.broadcast %360 : vector<8x1xf32> to vector<8x128xf32>
    %362 = arith.mulf %353, %361 : vector<8x128xf32>
    %363 = arith.index_cast %c7_i32 : i32 to index
    %c0_188 = arith.constant 0 : index
    %c0_189 = arith.constant 0 : index
    %364 = vector.load %arg16[%363, %c0_188, %c0_189] : memref<8x8x128xf32, #tpu.memory_space<vmem>>, vector<1x8x128xf32>
    %365 = vector.shape_cast %364 : vector<1x8x128xf32> to vector<8x128xf32>
    %366 = vector.shape_cast %362 : vector<8x128xf32> to vector<1x8x128xf32>
    tpu.vector_store %arg16[%363, %c0_188, %c0_189], %366 {strides = array<i32>} : memref<8x8x128xf32, #tpu.memory_space<vmem>>, vector<1x8x128xf32>,
    %c8_i32 = arith.constant 8 : i32
    %c0_190 = arith.constant 0 : index
    %c0_191 = arith.constant 0 : index
    %c0_192 = arith.constant 0 : index
    %367 = vector.load %arg16[%c0_190, %c0_191, %c0_192] : memref<8x8x128xf32, #tpu.memory_space<vmem>>, vector<8x8x128xf32>
    %368 = vector.shape_cast %367 : vector<8x8x128xf32> to vector<64x128xf32>
    %c0_193 = arith.constant 0 : index
    %c0_194 = arith.constant 0 : index
    %369 = vector.load %arg7[%c0_193, %c0_194] : memref<1x128xf32, #tpu.memory_space<vmem>>, vector<1x128xf32>
    %c0_195 = arith.constant 0 : index
    %c0_196 = arith.constant 0 : index
    %370 = vector.load %arg8[%c0_195, %c0_196] : memref<1x128xf32, #tpu.memory_space<vmem>>, vector<1x128xf32>
    %cst_197 = arith.constant dense<0.000000e+00> : vector<64xf32>
    %371 = vector.multi_reduction <add>, %368, %cst_197 [1] : vector<64x128xf32> to vector<64xf32>
    %372 = vector.shape_cast %371 : vector<64xf32> to vector<64x1xf32>
    %373 = arith.mulf %368, %368 : vector<64x128xf32>
    %cst_198 = arith.constant dense<0.000000e+00> : vector<64xf32>
    %374 = vector.multi_reduction <add>, %373, %cst_198 [1] : vector<64x128xf32> to vector<64xf32>
    %375 = vector.shape_cast %374 : vector<64xf32> to vector<64x1xf32>
    %cst_199 = arith.constant 7.812500e-03 : f32
    %376 = vector.broadcast %cst_199 : f32 to vector<64x1xf32>
    %377 = arith.mulf %372, %376 : vector<64x1xf32>
    %cst_200 = arith.constant 7.812500e-03 : f32
    %378 = vector.broadcast %cst_200 : f32 to vector<64x1xf32>
    %379 = arith.mulf %375, %378 : vector<64x1xf32>
    %380 = arith.mulf %377, %377 : vector<64x1xf32>
    %381 = arith.subf %379, %380 : vector<64x1xf32>
    %cst_201 = arith.constant 0.000000e+00 : f32
    %382 = vector.broadcast %cst_201 : f32 to vector<64x1xf32>
    %383 = arith.maximumf %381, %382 : vector<64x1xf32>
    %384 = vector.broadcast %377 : vector<64x1xf32> to vector<64x128xf32>
    %385 = arith.subf %368, %384 : vector<64x128xf32>
    %cst_202 = arith.constant 9.99999974E-6 : f32
    %386 = vector.broadcast %cst_202 : f32 to vector<64x1xf32>
    %387 = arith.addf %383, %386 : vector<64x1xf32>
    %388 = math.rsqrt %387 : vector<64x1xf32>
    %389 = vector.broadcast %388 : vector<64x1xf32> to vector<64x128xf32>
    %390 = arith.mulf %385, %389 : vector<64x128xf32>
    %391 = vector.broadcast %369 : vector<1x128xf32> to vector<64x128xf32>
    %392 = arith.mulf %390, %391 : vector<64x128xf32>
    %393 = vector.broadcast %370 : vector<1x128xf32> to vector<64x128xf32>
    %394 = arith.addf %392, %393 : vector<64x128xf32>
    %c0_203 = arith.constant 0 : index
    %c0_204 = arith.constant 0 : index
    %395 = vector.load %arg9[%c0_203, %c0_204] : memref<128x256xf32, #tpu.memory_space<vmem>>, vector<128x256xf32>
    %cst_205 = arith.constant dense<0.000000e+00> : vector<64x256xf32>
    %396 = tpu.matmul %394, %395, %cst_205 {dimension_numbers = #tpu.dot_dimension_numbers<[1], [0], [0], [1], [0, 0, 1, 1], [], []>} : vector<64x128xf32>, vector<128x256xf32>, vector<64x256xf32> -> vector<64x256xf32>
    %c0_206 = arith.constant 0 : index
    %c0_207 = arith.constant 0 : index
    %397 = vector.load %arg10[%c0_206, %c0_207] : memref<1x256xf32, #tpu.memory_space<vmem>>, vector<1x256xf32>
    %398 = vector.broadcast %397 : vector<1x256xf32> to vector<64x256xf32>
    %399 = arith.addf %396, %398 : vector<64x256xf32>
    %400 = vector.extract_strided_slice %399 {offsets = [0, 0], sizes = [64, 128], strides = [1, 1]} : vector<64x256xf32> to vector<64x128xf32>
    %401 = arith.negf %400 : vector<64x128xf32>
    %402 = math.exp %401 : vector<64x128xf32>
    %cst_208 = arith.constant 1.000000e+00 : f32
    %403 = vector.broadcast %cst_208 : f32 to vector<64x128xf32>
    %404 = arith.addf %403, %402 : vector<64x128xf32>
    %405 = arith.divf %403, %404 : vector<64x128xf32>
    %406 = vector.extract_strided_slice %399 {offsets = [0, 128], sizes = [64, 128], strides = [1, 1]} : vector<64x256xf32> to vector<64x128xf32>
    %407 = arith.mulf %405, %406 : vector<64x128xf32>
    %c0_209 = arith.constant 0 : index
    %c0_210 = arith.constant 0 : index
    %408 = vector.load %arg11[%c0_209, %c0_210] : memref<1x128xf32, #tpu.memory_space<vmem>>, vector<1x128xf32>
    %c0_211 = arith.constant 0 : index
    %c0_212 = arith.constant 0 : index
    %409 = vector.load %arg12[%c0_211, %c0_212] : memref<1x128xf32, #tpu.memory_space<vmem>>, vector<1x128xf32>
    %cst_213 = arith.constant dense<0.000000e+00> : vector<64xf32>
    %410 = vector.multi_reduction <add>, %407, %cst_213 [1] : vector<64x128xf32> to vector<64xf32>
    %411 = vector.shape_cast %410 : vector<64xf32> to vector<64x1xf32>
    %412 = arith.mulf %407, %407 : vector<64x128xf32>
    %cst_214 = arith.constant dense<0.000000e+00> : vector<64xf32>
    %413 = vector.multi_reduction <add>, %412, %cst_214 [1] : vector<64x128xf32> to vector<64xf32>
    %414 = vector.shape_cast %413 : vector<64xf32> to vector<64x1xf32>
    %cst_215 = arith.constant 7.812500e-03 : f32
    %415 = vector.broadcast %cst_215 : f32 to vector<64x1xf32>
    %416 = arith.mulf %411, %415 : vector<64x1xf32>
    %cst_216 = arith.constant 7.812500e-03 : f32
    %417 = vector.broadcast %cst_216 : f32 to vector<64x1xf32>
    %418 = arith.mulf %414, %417 : vector<64x1xf32>
    %419 = arith.mulf %416, %416 : vector<64x1xf32>
    %420 = arith.subf %418, %419 : vector<64x1xf32>
    %cst_217 = arith.constant 0.000000e+00 : f32
    %421 = vector.broadcast %cst_217 : f32 to vector<64x1xf32>
    %422 = arith.maximumf %420, %421 : vector<64x1xf32>
    %423 = vector.broadcast %416 : vector<64x1xf32> to vector<64x128xf32>
    %424 = arith.subf %407, %423 : vector<64x128xf32>
    %cst_218 = arith.constant 9.99999974E-6 : f32
    %425 = vector.broadcast %cst_218 : f32 to vector<64x1xf32>
    %426 = arith.addf %422, %425 : vector<64x1xf32>
    %427 = math.rsqrt %426 : vector<64x1xf32>
    %428 = vector.broadcast %427 : vector<64x1xf32> to vector<64x128xf32>
    %429 = arith.mulf %424, %428 : vector<64x128xf32>
    %430 = vector.broadcast %408 : vector<1x128xf32> to vector<64x128xf32>
    %431 = arith.mulf %429, %430 : vector<64x128xf32>
    %432 = vector.broadcast %409 : vector<1x128xf32> to vector<64x128xf32>
    %433 = arith.addf %431, %432 : vector<64x128xf32>
    %434 = vector.shape_cast %433 : vector<64x128xf32> to vector<8x8x128xf32>
    %c0_219 = arith.constant 0 : index
    %c0_220 = arith.constant 0 : index
    %c0_221 = arith.constant 0 : index
    %435 = vector.load %arg14[%c0_219, %c0_220, %c0_221] : memref<8x8x128xf32, #tpu.memory_space<vmem>>, vector<1x8x128xf32>
    %436 = vector.shape_cast %435 : vector<1x8x128xf32> to vector<8x128xf32>
    %437 = vector.extract_strided_slice %434 {offsets = [0, 0, 0], sizes = [1, 8, 128], strides = [1, 1, 1]} : vector<8x8x128xf32> to vector<1x8x128xf32>
    %438 = vector.shape_cast %437 : vector<1x8x128xf32> to vector<8x128xf32>
    %439 = arith.addf %436, %438 : vector<8x128xf32>
    %c0_222 = arith.constant 0 : index
    %c0_223 = arith.constant 0 : index
    %c0_224 = arith.constant 0 : index
    %440 = vector.load %arg13[%c0_222, %c0_223, %c0_224] : memref<8x8x128xf32, #tpu.memory_space<vmem>>, vector<8x1x128xf32>
    %441 = vector.shape_cast %440 : vector<8x1x128xf32> to vector<8x128xf32>
    %442 = vector.shape_cast %439 : vector<8x128xf32> to vector<8x1x128xf32>
    tpu.vector_store %arg13[%c0_222, %c0_223, %c0_224], %442 {strides = array<i32>} : memref<8x8x128xf32, #tpu.memory_space<vmem>>, vector<8x1x128xf32>,
    %c1_225 = arith.constant 1 : index
    %c0_226 = arith.constant 0 : index
    %c0_227 = arith.constant 0 : index
    %443 = vector.load %arg14[%c1_225, %c0_226, %c0_227] : memref<8x8x128xf32, #tpu.memory_space<vmem>>, vector<1x8x128xf32>
    %444 = vector.shape_cast %443 : vector<1x8x128xf32> to vector<8x128xf32>
    %445 = vector.extract_strided_slice %434 {offsets = [1, 0, 0], sizes = [1, 8, 128], strides = [1, 1, 1]} : vector<8x8x128xf32> to vector<1x8x128xf32>
    %446 = vector.shape_cast %445 : vector<1x8x128xf32> to vector<8x128xf32>
    %447 = arith.addf %444, %446 : vector<8x128xf32>
    %c0_228 = arith.constant 0 : index
    %c1_229 = arith.constant 1 : index
    %c0_230 = arith.constant 0 : index
    %448 = vector.load %arg13[%c0_228, %c1_229, %c0_230] : memref<8x8x128xf32, #tpu.memory_space<vmem>>, vector<8x1x128xf32>
    %449 = vector.shape_cast %448 : vector<8x1x128xf32> to vector<8x128xf32>
    %450 = vector.shape_cast %447 : vector<8x128xf32> to vector<8x1x128xf32>
    tpu.vector_store %arg13[%c0_228, %c1_229, %c0_230], %450 {strides = array<i32>} : memref<8x8x128xf32, #tpu.memory_space<vmem>>, vector<8x1x128xf32>,
    %c2_231 = arith.constant 2 : index
    %c0_232 = arith.constant 0 : index
    %c0_233 = arith.constant 0 : index
    %451 = vector.load %arg14[%c2_231, %c0_232, %c0_233] : memref<8x8x128xf32, #tpu.memory_space<vmem>>, vector<1x8x128xf32>
    %452 = vector.shape_cast %451 : vector<1x8x128xf32> to vector<8x128xf32>
    %453 = vector.extract_strided_slice %434 {offsets = [2, 0, 0], sizes = [1, 8, 128], strides = [1, 1, 1]} : vector<8x8x128xf32> to vector<1x8x128xf32>
    %454 = vector.shape_cast %453 : vector<1x8x128xf32> to vector<8x128xf32>
    %455 = arith.addf %452, %454 : vector<8x128xf32>
    %c0_234 = arith.constant 0 : index
    %c2_235 = arith.constant 2 : index
    %c0_236 = arith.constant 0 : index
    %456 = vector.load %arg13[%c0_234, %c2_235, %c0_236] : memref<8x8x128xf32, #tpu.memory_space<vmem>>, vector<8x1x128xf32>
    %457 = vector.shape_cast %456 : vector<8x1x128xf32> to vector<8x128xf32>
    %458 = vector.shape_cast %455 : vector<8x128xf32> to vector<8x1x128xf32>
    tpu.vector_store %arg13[%c0_234, %c2_235, %c0_236], %458 {strides = array<i32>} : memref<8x8x128xf32, #tpu.memory_space<vmem>>, vector<8x1x128xf32>,
    %c3_237 = arith.constant 3 : index
    %c0_238 = arith.constant 0 : index
    %c0_239 = arith.constant 0 : index
    %459 = vector.load %arg14[%c3_237, %c0_238, %c0_239] : memref<8x8x128xf32, #tpu.memory_space<vmem>>, vector<1x8x128xf32>
    %460 = vector.shape_cast %459 : vector<1x8x128xf32> to vector<8x128xf32>
    %461 = vector.extract_strided_slice %434 {offsets = [3, 0, 0], sizes = [1, 8, 128], strides = [1, 1, 1]} : vector<8x8x128xf32> to vector<1x8x128xf32>
    %462 = vector.shape_cast %461 : vector<1x8x128xf32> to vector<8x128xf32>
    %463 = arith.addf %460, %462 : vector<8x128xf32>
    %c0_240 = arith.constant 0 : index
    %c3_241 = arith.constant 3 : index
    %c0_242 = arith.constant 0 : index
    %464 = vector.load %arg13[%c0_240, %c3_241, %c0_242] : memref<8x8x128xf32, #tpu.memory_space<vmem>>, vector<8x1x128xf32>
    %465 = vector.shape_cast %464 : vector<8x1x128xf32> to vector<8x128xf32>
    %466 = vector.shape_cast %463 : vector<8x128xf32> to vector<8x1x128xf32>
    tpu.vector_store %arg13[%c0_240, %c3_241, %c0_242], %466 {strides = array<i32>} : memref<8x8x128xf32, #tpu.memory_space<vmem>>, vector<8x1x128xf32>,
    %c4_243 = arith.constant 4 : index
    %c0_244 = arith.constant 0 : index
    %c0_245 = arith.constant 0 : index
    %467 = vector.load %arg14[%c4_243, %c0_244, %c0_245] : memref<8x8x128xf32, #tpu.memory_space<vmem>>, vector<1x8x128xf32>
    %468 = vector.shape_cast %467 : vector<1x8x128xf32> to vector<8x128xf32>
    %469 = vector.extract_strided_slice %434 {offsets = [4, 0, 0], sizes = [1, 8, 128], strides = [1, 1, 1]} : vector<8x8x128xf32> to vector<1x8x128xf32>
    %470 = vector.shape_cast %469 : vector<1x8x128xf32> to vector<8x128xf32>
    %471 = arith.addf %468, %470 : vector<8x128xf32>
    %c0_246 = arith.constant 0 : index
    %c4_247 = arith.constant 4 : index
    %c0_248 = arith.constant 0 : index
    %472 = vector.load %arg13[%c0_246, %c4_247, %c0_248] : memref<8x8x128xf32, #tpu.memory_space<vmem>>, vector<8x1x128xf32>
    %473 = vector.shape_cast %472 : vector<8x1x128xf32> to vector<8x128xf32>
    %474 = vector.shape_cast %471 : vector<8x128xf32> to vector<8x1x128xf32>
    tpu.vector_store %arg13[%c0_246, %c4_247, %c0_248], %474 {strides = array<i32>} : memref<8x8x128xf32, #tpu.memory_space<vmem>>, vector<8x1x128xf32>,
    %c5_249 = arith.constant 5 : index
    %c0_250 = arith.constant 0 : index
    %c0_251 = arith.constant 0 : index
    %475 = vector.load %arg14[%c5_249, %c0_250, %c0_251] : memref<8x8x128xf32, #tpu.memory_space<vmem>>, vector<1x8x128xf32>
    %476 = vector.shape_cast %475 : vector<1x8x128xf32> to vector<8x128xf32>
    %477 = vector.extract_strided_slice %434 {offsets = [5, 0, 0], sizes = [1, 8, 128], strides = [1, 1, 1]} : vector<8x8x128xf32> to vector<1x8x128xf32>
    %478 = vector.shape_cast %477 : vector<1x8x128xf32> to vector<8x128xf32>
    %479 = arith.addf %476, %478 : vector<8x128xf32>
    %c0_252 = arith.constant 0 : index
    %c5_253 = arith.constant 5 : index
    %c0_254 = arith.constant 0 : index
    %480 = vector.load %arg13[%c0_252, %c5_253, %c0_254] : memref<8x8x128xf32, #tpu.memory_space<vmem>>, vector<8x1x128xf32>
    %481 = vector.shape_cast %480 : vector<8x1x128xf32> to vector<8x128xf32>
    %482 = vector.shape_cast %479 : vector<8x128xf32> to vector<8x1x128xf32>
    tpu.vector_store %arg13[%c0_252, %c5_253, %c0_254], %482 {strides = array<i32>} : memref<8x8x128xf32, #tpu.memory_space<vmem>>, vector<8x1x128xf32>,
    %c6_255 = arith.constant 6 : index
    %c0_256 = arith.constant 0 : index
    %c0_257 = arith.constant 0 : index
    %483 = vector.load %arg14[%c6_255, %c0_256, %c0_257] : memref<8x8x128xf32, #tpu.memory_space<vmem>>, vector<1x8x128xf32>
    %484 = vector.shape_cast %483 : vector<1x8x128xf32> to vector<8x128xf32>
    %485 = vector.extract_strided_slice %434 {offsets = [6, 0, 0], sizes = [1, 8, 128], strides = [1, 1, 1]} : vector<8x8x128xf32> to vector<1x8x128xf32>
    %486 = vector.shape_cast %485 : vector<1x8x128xf32> to vector<8x128xf32>
    %487 = arith.addf %484, %486 : vector<8x128xf32>
    %c0_258 = arith.constant 0 : index
    %c6_259 = arith.constant 6 : index
    %c0_260 = arith.constant 0 : index
    %488 = vector.load %arg13[%c0_258, %c6_259, %c0_260] : memref<8x8x128xf32, #tpu.memory_space<vmem>>, vector<8x1x128xf32>
    %489 = vector.shape_cast %488 : vector<8x1x128xf32> to vector<8x128xf32>
    %490 = vector.shape_cast %487 : vector<8x128xf32> to vector<8x1x128xf32>
    tpu.vector_store %arg13[%c0_258, %c6_259, %c0_260], %490 {strides = array<i32>} : memref<8x8x128xf32, #tpu.memory_space<vmem>>, vector<8x1x128xf32>,
    %c7_261 = arith.constant 7 : index
    %c0_262 = arith.constant 0 : index
    %c0_263 = arith.constant 0 : index
    %491 = vector.load %arg14[%c7_261, %c0_262, %c0_263] : memref<8x8x128xf32, #tpu.memory_space<vmem>>, vector<1x8x128xf32>
    %492 = vector.shape_cast %491 : vector<1x8x128xf32> to vector<8x128xf32>
    %493 = vector.extract_strided_slice %434 {offsets = [7, 0, 0], sizes = [1, 8, 128], strides = [1, 1, 1]} : vector<8x8x128xf32> to vector<1x8x128xf32>
    %494 = vector.shape_cast %493 : vector<1x8x128xf32> to vector<8x128xf32>
    %495 = arith.addf %492, %494 : vector<8x128xf32>
    %c0_264 = arith.constant 0 : index
    %c7_265 = arith.constant 7 : index
    %c0_266 = arith.constant 0 : index
    %496 = vector.load %arg13[%c0_264, %c7_265, %c0_266] : memref<8x8x128xf32, #tpu.memory_space<vmem>>, vector<8x1x128xf32>
    %497 = vector.shape_cast %496 : vector<8x1x128xf32> to vector<8x128xf32>
    %498 = vector.shape_cast %495 : vector<8x128xf32> to vector<8x1x128xf32>
    tpu.vector_store %arg13[%c0_264, %c7_265, %c0_266], %498 {strides = array<i32>} : memref<8x8x128xf32, #tpu.memory_space<vmem>>, vector<8x1x128xf32>,
    return
  }
  func.func @transform_0(%arg0: i32) -> (i32, i32, i32) {
    %c0_i32 = arith.constant 0 : i32
    %c0_i32_0 = arith.constant 0 : i32
    %c0_i32_1 = arith.constant 0 : i32
    return %arg0, %c0_i32, %c0_i32_0 : i32, i32, i32
  }
  func.func @transform_1(%arg0: i32) -> (i32, i32, i32) {
    %c0_i32 = arith.constant 0 : i32
    %c0_i32_0 = arith.constant 0 : i32
    %c0_i32_1 = arith.constant 0 : i32
    return %arg0, %c0_i32, %c0_i32_0 : i32, i32, i32
  }
  func.func @transform_2(%arg0: i32) -> (i32, i32) {
    %c0_i32 = arith.constant 0 : i32
    %c0_i32_0 = arith.constant 0 : i32
    return %arg0, %c0_i32 : i32, i32
  }
  func.func @transform_3(%arg0: i32) -> (i32, i32) {
    %c0_i32 = arith.constant 0 : i32
    %c0_i32_0 = arith.constant 0 : i32
    %c0_i32_1 = arith.constant 0 : i32
    return %c0_i32, %c0_i32_0 : i32, i32
  }
  func.func @transform_4(%arg0: i32) -> (i32, i32) {
    %c0_i32 = arith.constant 0 : i32
    %c0_i32_0 = arith.constant 0 : i32
    %c0_i32_1 = arith.constant 0 : i32
    return %c0_i32, %c0_i32_0 : i32, i32
  }
  func.func @transform_5(%arg0: i32) -> (i32, i32) {
    %c0_i32 = arith.constant 0 : i32
    %c0_i32_0 = arith.constant 0 : i32
    %c0_i32_1 = arith.constant 0 : i32
    return %c0_i32, %c0_i32_0 : i32, i32
  }
  func.func @transform_6(%arg0: i32) -> (i32, i32) {
    %c0_i32 = arith.constant 0 : i32
    %c0_i32_0 = arith.constant 0 : i32
    %c0_i32_1 = arith.constant 0 : i32
    return %c0_i32, %c0_i32_0 : i32, i32
  }
  func.func @transform_7(%arg0: i32) -> (i32, i32) {
    %c0_i32 = arith.constant 0 : i32
    %c0_i32_0 = arith.constant 0 : i32
    %c0_i32_1 = arith.constant 0 : i32
    return %c0_i32, %c0_i32_0 : i32, i32
  }
  func.func @transform_8(%arg0: i32) -> (i32, i32) {
    %c0_i32 = arith.constant 0 : i32
    %c0_i32_0 = arith.constant 0 : i32
    %c0_i32_1 = arith.constant 0 : i32
    return %c0_i32, %c0_i32_0 : i32, i32
  }
  func.func @transform_9(%arg0: i32) -> (i32, i32) {
    %c0_i32 = arith.constant 0 : i32
    %c0_i32_0 = arith.constant 0 : i32
    %c0_i32_1 = arith.constant 0 : i32
    return %c0_i32, %c0_i32_0 : i32, i32
  }
  func.func @transform_10(%arg0: i32) -> (i32, i32) {
    %c0_i32 = arith.constant 0 : i32
    %c0_i32_0 = arith.constant 0 : i32
    %c0_i32_1 = arith.constant 0 : i32
    return %c0_i32, %c0_i32_0 : i32, i32
  }
  func.func @transform_11(%arg0: i32) -> (i32, i32) {
    %c0_i32 = arith.constant 0 : i32
    %c0_i32_0 = arith.constant 0 : i32
    %c0_i32_1 = arith.constant 0 : i32
    return %c0_i32, %c0_i32_0 : i32, i32
  }
  func.func @transform_12(%arg0: i32) -> (i32, i32, i32) {
    %c0_i32 = arith.constant 0 : i32
    %c0_i32_0 = arith.constant 0 : i32
    %c0_i32_1 = arith.constant 0 : i32
    return %arg0, %c0_i32, %c0_i32_0 : i32, i32, i32
  }
}

</mosaic_0001>

<llo_original>
// kernel: tpu_custom_call.1
$region0: #{tpu_custom_call.1}
  #allocation0 [shape = 'u32[]', space=smem, size = 0x4, offset = 0x4, fixed_abs, tag = 'smem constant byte address 0x4 - core index']
  #allocation1 [shape = 'u32[144,128]{1,0:T(1,128)}', space=vmem, size = 0x12000, scoped, tag = 'internal scratch']
  #allocation2 [shape = 'f32[8,8,128]{2,1,0:T(8,128)}', space=vmem, size = 0x8000, scoped, tag = 'scratch operand']
  #allocation3 [shape = 'f32[8,8,128]{2,1,0:T(8,128)}', space=vmem, size = 0x8000, scoped, tag = 'scratch operand']
  #allocation4 [shape = 'f32[8,8,128]{2,1,0:T(8,128)}', space=vmem, size = 0x8000, scoped, tag = 'scratch operand']
  #allocation5 [shape = 'f32[8,8,1]{2,1,0:T(8,128)}', space=vmem, size = 0x8000, scoped, tag = 'scratch operand']
  #allocation6 [shape = 'f32[8,8,1]{2,1,0:T(8,128)}', space=vmem, size = 0x8000, scoped, tag = 'scratch operand']
  #allocation7 [shape = 'f32[1,1]{1,0:T(1,128)S(6)}', space=smem, size = 0x200, scoped, tag = 'scoped memory for tpu_custom_call.1']
  %s0 = inlined_call_operand.hbm [shape: f32[16,8,128], index: 0, kind: input, shape index: {}]
  %s1 = inlined_call_operand.hbm [shape: f32[16,8,128], index: 1, kind: input, shape index: {}]
  %s2 = inlined_call_operand.hbm [shape: f32[16,128], index: 2, kind: input, shape index: {}]
  %s3 = inlined_call_operand.<no memory space> [shape: f32[1,1], index: 3, kind: input, shape index: {}]
  %s4 = inlined_call_operand.vmem [shape: f32[1,128], index: 4, kind: input, shape index: {}]
  %s5 = inlined_call_operand.vmem [shape: f32[1,128], index: 5, kind: input, shape index: {}]
  %s6 = inlined_call_operand.vmem [shape: f32[1,128], index: 6, kind: input, shape index: {}]
  %s7 = inlined_call_operand.vmem [shape: f32[1,128], index: 7, kind: input, shape index: {}]
  %s8 = inlined_call_operand.hbm [shape: f32[128,256], index: 8, kind: input, shape index: {}]
  %s9 = inlined_call_operand.vmem [shape: f32[1,256], index: 9, kind: input, shape index: {}]
  %s10 = inlined_call_operand.vmem [shape: f32[1,128], index: 10, kind: input, shape index: {}]
  %s11 = inlined_call_operand.vmem [shape: f32[1,128], index: 11, kind: input, shape index: {}]
  %s12 = inlined_call_operand.hbm [shape: f32[16,8,128], index: 12, kind: output, shape index: {}]
  %s13 = sld [smem:[#allocation0]]
  $region97: #{tpu_custom_call.1} parent=0
    _
  %s15 = ssub.s32 1, %s13
  %s16 = scalar_select 0, %s15, %s13
  %17 = sst [smem:[#allocation7]] %s3
  $region1: #{tpu_custom_call.1} parent=0
    #allocation8 [shape = 'u8[65536]{0}', space=vmem, size = 0x10000, scoped, tag = 'input window, operand 0']
    #allocation9 [shape = 's32[2]{0}', space=sflag, size = 0x8, scoped, tag = 'scoped memory for tpu_custom_call.1']
    #allocation10 [shape = 's32[2]{0}', space=sflag, size = 0x8, scoped, tag = 'scoped memory for tpu_custom_call.1']
    #allocation11 [shape = 'u8[65536]{0}', space=vmem, size = 0x10000, scoped, tag = 'input window, operand 1']
    #allocation12 [shape = 's32[2]{0}', space=sflag, size = 0x8, scoped, tag = 'scoped memory for tpu_custom_call.1']
    #allocation13 [shape = 'u8[8192]{0}', space=vmem, size = 0x2000, scoped, tag = 'input window, operand 2']
    #allocation14 [shape = 'u8[131072]{0}', space=vmem, size = 0x20000, scoped, tag = 'input window, operand 8, single buffered']
    #allocation15 [shape = 's32[1]{0}', space=sflag, size = 0x4, scoped, tag = 'scoped memory for tpu_custom_call.1']
    #allocation16 [shape = 'u8[65536]{0}', space=vmem, size = 0x10000, scoped, tag = 'output window, operand 0']
    %18 = vsyncpa [#allocation9], 0
    %s19 = scalar_lea.sflag [#allocation9], 1
    %20 = vsyncpa %s19, 0
    %21 = vsyncpa [#allocation12], 0
    %s22 = scalar_lea.sflag [#allocation12], 1
    %23 = vsyncpa %s22, 0
    %24 = vsyncpa [#allocation15], 0
    %25 = vsyncpa [#allocation10], 0
    %s26 = scalar_lea.sflag [#allocation10], 1
    %27 = vsyncpa %s26, 0
    loop: start=0, step=1, limit=4
    $region2: #{tpu_custom_call.1} parent=1 // loop_pre_header
      _
    $region3: #{tpu_custom_call.1} parent=1 // loop_header
      %s29 = sphi 0, %s33
      %p30 = scmp.ge.s32.totalorder %s29, 4
      %s39 = sphi 0, %s41
      %s42 = sphi 0, %s39
      %s43 = sphi 0, %s42
      %s59 = sphi 0, %s43
      %s65 = sphi 0, %s67
      %s68 = sphi 0, %s65
      %s69 = sphi 0, %s68
      %s85 = sphi 0, %s69
      %s91 = sphi 0, %s93
      %s94 = sphi 0, %s91
      %s95 = sphi 0, %s94
      %s111 = sphi 0, %s95
      %s115 = sphi 0, %s115
      %s117 = sphi 0, %s115
      %s118 = sphi 0, %s117
      %s132 = sphi 0, %s118
      %s136 = sphi 0, %s136
      %s138 = sphi 0, %s136
      %s139 = sphi 0, %s138
      %s153 = sphi 0, %s139
      %s157 = sphi 0, %s157
      %s159 = sphi 0, %s157
      %s160 = sphi 0, %s159
      %s174 = sphi 0, %s160
      %s178 = sphi 0, %s178
      %s180 = sphi 0, %s178
      %s181 = sphi 0, %s180
      %s195 = sphi 0, %s181
      %s199 = sphi 0, %s199
      %s201 = sphi 0, %s199
      %s202 = sphi 0, %s201
      %s216 = sphi 0, %s202
      %s220 = sphi 0, %s220
      %s222 = sphi 0, %s220
      %s223 = sphi 0, %s222
      %s237 = sphi 0, %s223
      %s241 = sphi 0, %s241
      %s243 = sphi 0, %s241
      %s244 = sphi 0, %s243
      %s258 = sphi 0, %s244
      %s262 = sphi 0, %s262
      %s264 = sphi 0, %s262
      %s265 = sphi 0, %s264
      %s279 = sphi 0, %s265
      %s283 = sphi 0, %s283
      %s285 = sphi 0, %s283
      %s286 = sphi 0, %s285
      %s300 = sphi 0, %s286
      %s306 = sphi 0, %s308
      %s309 = sphi 0, %s306
      %s310 = sphi 0, %s309
      %s326 = sphi 0, %s310
    $region4: #{tpu_custom_call.1} parent=1 // loop_header_branch
      %32 = sbr.rel (%p30) target = $region8
    $region5: #{tpu_custom_call.1} parent=1 // loop_body
      %s34 = ssub.s32 %s29, 1
      %s35 = ssub.s32 %s29, 2
      %s36 = sadd.s32 %s29, 1
      %s37 = ssub.s32 %s29, %s36
      %p38 = scmp.eq.s32.totalorder %s37, 0
      %s40 = sadd.s32 %s39, 1
      %s41 = scalar_select %p38, %s39, %s40
      %p44 = pneg %p38
      %p45 = scmp.eq.s32.totalorder %s29, 1
      %p46 = por %p44, %p45
      %p47 = scmp.ne.s32.totalorder %s39, %s42
      %p48 = scmp.eq.s32.totalorder %s29, 0
      %p49 = por %p47, %p48
      %p50 = scmp.ne.s32.totalorder %s39, %s42
      %p51 = scmp.eq.s32.totalorder %s34, 1
      %p52 = por %p50, %p51
      %p53 = scmp.ne.s32.totalorder %s42, %s43
      %p54 = scmp.eq.s32.totalorder %s34, 0
      %p55 = por %p53, %p54
      %p56 = scmp.ne.s32.totalorder %s42, %s43
      %p57 = scmp.eq.s32.totalorder %s35, 1
      %p58 = por %p56, %p57
      %p60 = scmp.ne.s32.totalorder %s43, %s59
      %p61 = scmp.eq.s32.totalorder %s35, 0
      %p62 = por %p60, %p61
      %s63 = ssub.s32 %s29, %s36
      %p64 = scmp.eq.s32.totalorder %s63, 0
      %s66 = sadd.s32 %s65, 1
      %s67 = scalar_select %p64, %s65, %s66
      %p70 = pneg %p64
      %p71 = scmp.eq.s32.totalorder %s29, 1
      %p72 = por %p70, %p71
      %p73 = scmp.ne.s32.totalorder %s65, %s68
      %p74 = scmp.eq.s32.totalorder %s29, 0
      %p75 = por %p73, %p74
      %p76 = scmp.ne.s32.totalorder %s65, %s68
      %p77 = scmp.eq.s32.totalorder %s34, 1
      %p78 = por %p76, %p77
      %p79 = scmp.ne.s32.totalorder %s68, %s69
      %p80 = scmp.eq.s32.totalorder %s34, 0
      %p81 = por %p79, %p80
      %p82 = scmp.ne.s32.totalorder %s68, %s69
      %p83 = scmp.eq.s32.totalorder %s35, 1
      %p84 = por %p82, %p83
      %p86 = scmp.ne.s32.totalorder %s69, %s85
      %p87 = scmp.eq.s32.totalorder %s35, 0
      %p88 = por %p86, %p87
      %s89 = ssub.s32 %s29, %s36
      %p90 = scmp.eq.s32.totalorder %s89, 0
      %s92 = sadd.s32 %s91, 1
      %s93 = scalar_select %p90, %s91, %s92
      %p96 = pneg %p90
      %p97 = scmp.eq.s32.totalorder %s29, 1
      %p98 = por %p96, %p97
      %p99 = scmp.ne.s32.totalorder %s91, %s94
      %p100 = scmp.eq.s32.totalorder %s29, 0
      %p101 = por %p99, %p100
      %p102 = scmp.ne.s32.totalorder %s91, %s94
      %p103 = scmp.eq.s32.totalorder %s34, 1
      %p104 = por %p102, %p103
      %p105 = scmp.ne.s32.totalorder %s94, %s95
      %p106 = scmp.eq.s32.totalorder %s34, 0
      %p107 = por %p105, %p106
      %p108 = scmp.ne.s32.totalorder %s94, %s95
      %p109 = scmp.eq.s32.totalorder %s35, 1
      %p110 = por %p108, %p109
      %p112 = scmp.ne.s32.totalorder %s95, %s111
      %p113 = scmp.eq.s32.totalorder %s35, 0
      %p114 = por %p112, %p113
      %s116 = sadd.s32 %s115, 1
      %p119 = scmp.eq.s32.totalorder %s29, 1
      %p120 = scmp.ne.s32.totalorder %s115, %s117
      %p121 = scmp.eq.s32.totalorder %s29, 0
      %p122 = por %p120, %p121
      %p123 = scmp.ne.s32.totalorder %s115, %s117
      %p124 = scmp.eq.s32.totalorder %s34, 1
      %p125 = por %p123, %p124
      %p126 = scmp.ne.s32.totalorder %s117, %s118
      %p127 = scmp.eq.s32.totalorder %s34, 0
      %p128 = por %p126, %p127
      %p129 = scmp.ne.s32.totalorder %s117, %s118
      %p130 = scmp.eq.s32.totalorder %s35, 1
      %p131 = por %p129, %p130
      %p133 = scmp.ne.s32.totalorder %s118, %s132
      %p134 = scmp.eq.s32.totalorder %s35, 0
      %p135 = por %p133, %p134
      %s137 = sadd.s32 %s136, 1
      %p140 = scmp.eq.s32.totalorder %s29, 1
      %p141 = scmp.ne.s32.totalorder %s136, %s138
      %p142 = scmp.eq.s32.totalorder %s29, 0
      %p143 = por %p141, %p142
      %p144 = scmp.ne.s32.totalorder %s136, %s138
      %p145 = scmp.eq.s32.totalorder %s34, 1
      %p146 = por %p144, %p145
      %p147 = scmp.ne.s32.totalorder %s138, %s139
      %p148 = scmp.eq.s32.totalorder %s34, 0
      %p149 = por %p147, %p148
      %p150 = scmp.ne.s32.totalorder %s138, %s139
      %p151 = scmp.eq.s32.totalorder %s35, 1
      %p152 = por %p150, %p151
      %p154 = scmp.ne.s32.totalorder %s139, %s153
      %p155 = scmp.eq.s32.totalorder %s35, 0
      %p156 = por %p154, %p155
      %s158 = sadd.s32 %s157, 1
      %p161 = scmp.eq.s32.totalorder %s29, 1
      %p162 = scmp.ne.s32.totalorder %s157, %s159
      %p163 = scmp.eq.s32.totalorder %s29, 0
      %p164 = por %p162, %p163
      %p165 = scmp.ne.s32.totalorder %s157, %s159
      %p166 = scmp.eq.s32.totalorder %s34, 1
      %p167 = por %p165, %p166
      %p168 = scmp.ne.s32.totalorder %s159, %s160
      %p169 = scmp.eq.s32.totalorder %s34, 0
      %p170 = por %p168, %p169
      %p171 = scmp.ne.s32.totalorder %s159, %s160
      %p172 = scmp.eq.s32.totalorder %s35, 1
      %p173 = por %p171, %p172
      %p175 = scmp.ne.s32.totalorder %s160, %s174
      %p176 = scmp.eq.s32.totalorder %s35, 0
      %p177 = por %p175, %p176
      %s179 = sadd.s32 %s178, 1
      %p182 = scmp.eq.s32.totalorder %s29, 1
      %p183 = scmp.ne.s32.totalorder %s178, %s180
      %p184 = scmp.eq.s32.totalorder %s29, 0
      %p185 = por %p183, %p184
      %p186 = scmp.ne.s32.totalorder %s178, %s180
      %p187 = scmp.eq.s32.totalorder %s34, 1
      %p188 = por %p186, %p187
      %p189 = scmp.ne.s32.totalorder %s180, %s181
      %p190 = scmp.eq.s32.totalorder %s34, 0
      %p191 = por %p189, %p190
      %p192 = scmp.ne.s32.totalorder %s180, %s181
      %p193 = scmp.eq.s32.totalorder %s35, 1
      %p194 = por %p192, %p193
      %p196 = scmp.ne.s32.totalorder %s181, %s195
      %p197 = scmp.eq.s32.totalorder %s35, 0
      %p198 = por %p196, %p197
      %s200 = sadd.s32 %s199, 1
      %p203 = scmp.eq.s32.totalorder %s29, 1
      %p204 = scmp.ne.s32.totalorder %s199, %s201
      %p205 = scmp.eq.s32.totalorder %s29, 0
      %p206 = por %p204, %p205
      %p207 = scmp.ne.s32.totalorder %s199, %s201
      %p208 = scmp.eq.s32.totalorder %s34, 1
      %p209 = por %p207, %p208
      %p210 = scmp.ne.s32.totalorder %s201, %s202
      %p211 = scmp.eq.s32.totalorder %s34, 0
      %p212 = por %p210, %p211
      %p213 = scmp.ne.s32.totalorder %s201, %s202
      %p214 = scmp.eq.s32.totalorder %s35, 1
      %p215 = por %p213, %p214
      %p217 = scmp.ne.s32.totalorder %s202, %s216
      %p218 = scmp.eq.s32.totalorder %s35, 0
      %p219 = por %p217, %p218
      %s221 = sadd.s32 %s220, 1
      %p224 = scmp.eq.s32.totalorder %s29, 1
      %p225 = scmp.ne.s32.totalorder %s220, %s222
      %p226 = scmp.eq.s32.totalorder %s29, 0
      %p227 = por %p225, %p226
      %p228 = scmp.ne.s32.totalorder %s220, %s222
      %p229 = scmp.eq.s32.totalorder %s34, 1
      %p230 = por %p228, %p229
      %p231 = scmp.ne.s32.totalorder %s222, %s223
      %p232 = scmp.eq.s32.totalorder %s34, 0
      %p233 = por %p231, %p232
      %p234 = scmp.ne.s32.totalorder %s222, %s223
      %p235 = scmp.eq.s32.totalorder %s35, 1
      %p236 = por %p234, %p235
      %p238 = scmp.ne.s32.totalorder %s223, %s237
      %p239 = scmp.eq.s32.totalorder %s35, 0
      %p240 = por %p238, %p239
      %s242 = sadd.s32 %s241, 1
      %p245 = scmp.eq.s32.totalorder %s29, 1
      %p246 = scmp.ne.s32.totalorder %s241, %s243
      %p247 = scmp.eq.s32.totalorder %s29, 0
      %p248 = por %p246, %p247
      %p249 = scmp.ne.s32.totalorder %s241, %s243
      %p250 = scmp.eq.s32.totalorder %s34, 1
      %p251 = por %p249, %p250
      %p252 = scmp.ne.s32.totalorder %s243, %s244
      %p253 = scmp.eq.s32.totalorder %s34, 0
      %p254 = por %p252, %p253
      %p255 = scmp.ne.s32.totalorder %s243, %s244
      %p256 = scmp.eq.s32.totalorder %s35, 1
      %p257 = por %p255, %p256
      %p259 = scmp.ne.s32.totalorder %s244, %s258
      %p260 = scmp.eq.s32.totalorder %s35, 0
      %p261 = por %p259, %p260
      %s263 = sadd.s32 %s262, 1
      %p266 = scmp.eq.s32.totalorder %s29, 1
      %p267 = scmp.ne.s32.totalorder %s262, %s264
      %p268 = scmp.eq.s32.totalorder %s29, 0
      %p269 = por %p267, %p268
      %p270 = scmp.ne.s32.totalorder %s262, %s264
      %p271 = scmp.eq.s32.totalorder %s34, 1
      %p272 = por %p270, %p271
      %p273 = scmp.ne.s32.totalorder %s264, %s265
      %p274 = scmp.eq.s32.totalorder %s34, 0
      %p275 = por %p273, %p274
      %p276 = scmp.ne.s32.totalorder %s264, %s265
      %p277 = scmp.eq.s32.totalorder %s35, 1
      %p278 = por %p276, %p277
      %p280 = scmp.ne.s32.totalorder %s265, %s279
      %p281 = scmp.eq.s32.totalorder %s35, 0
      %p282 = por %p280, %p281
      %s284 = sadd.s32 %s283, 1
      %p287 = scmp.eq.s32.totalorder %s29, 1
      %p288 = scmp.ne.s32.totalorder %s283, %s285
      %p289 = scmp.eq.s32.totalorder %s29, 0
      %p290 = por %p288, %p289
      %p291 = scmp.ne.s32.totalorder %s283, %s285
      %p292 = scmp.eq.s32.totalorder %s34, 1
      %p293 = por %p291, %p292
      %p294 = scmp.ne.s32.totalorder %s285, %s286
      %p295 = scmp.eq.s32.totalorder %s34, 0
      %p296 = por %p294, %p295
      %p297 = scmp.ne.s32.totalorder %s285, %s286
      %p298 = scmp.eq.s32.totalorder %s35, 1
      %p299 = por %p297, %p298
      %p301 = scmp.ne.s32.totalorder %s286, %s300
      %p302 = scmp.eq.s32.totalorder %s35, 0
      %p303 = por %p301, %p302
      %s304 = ssub.s32 %s29, %s36
      %p305 = scmp.eq.s32.totalorder %s304, 0
      %s307 = sadd.s32 %s306, 1
      %s308 = scalar_select %p305, %s306, %s307
      %p311 = pneg %p305
      %p312 = scmp.eq.s32.totalorder %s29, 1
      %p313 = por %p311, %p312
      %p314 = scmp.ne.s32.totalorder %s306, %s309
      %p315 = scmp.eq.s32.totalorder %s29, 0
      %p316 = por %p314, %p315
      %p317 = scmp.ne.s32.totalorder %s306, %s309
      %p318 = scmp.eq.s32.totalorder %s34, 1
      %p319 = por %p317, %p318
      %p320 = scmp.ne.s32.totalorder %s309, %s310
      %p321 = scmp.eq.s32.totalorder %s34, 0
      %p322 = por %p320, %p321
      %p323 = scmp.ne.s32.totalorder %s309, %s310
      %p324 = scmp.eq.s32.totalorder %s35, 1
      %p325 = por %p323, %p324
      %p327 = scmp.ne.s32.totalorder %s310, %s326
      %p328 = scmp.eq.s32.totalorder %s35, 0
      %p329 = por %p327, %p328
      %p330 = scmp.le.s32.totalorder 1, %s29
      %p331 = scmp.lt.s32.totalorder %s29, 3
      %p332 = pnand %p330, %p331
      %p333 = pneg %p332
      // Predicated region
      $region9: #{tpu_custom_call.1} parent=5 // pred_check
        _
      $region10: #{tpu_custom_call.1} parent=5 // pred_check_branch
        %335 = sbr.rel (%p332) target = $region12
      $region11: #{tpu_custom_call.1} parent=5 // pred_region
        %s336 = ssub.s32 %s29, 1
        // Predicated region
        $region13: #{tpu_custom_call.1} parent=11 // pred_check
          %p337 = pneg %p128
        $region14: #{tpu_custom_call.1} parent=11 // pred_check_branch
          %339 = sbr.rel (%p337) target = $region16
        $region15: #{tpu_custom_call.1} parent=11 // pred_region
          _
        $region16: #{tpu_custom_call.1} parent=11 // pred_fallthru
          _
        // Predicated region
        $region17: #{tpu_custom_call.1} parent=11 // pred_check
          %p340 = pneg %p149
        $region18: #{tpu_custom_call.1} parent=11 // pred_check_branch
          %342 = sbr.rel (%p340) target = $region20
        $region19: #{tpu_custom_call.1} parent=11 // pred_region
          _
        $region20: #{tpu_custom_call.1} parent=11 // pred_fallthru
          _
        // Predicated region
        $region21: #{tpu_custom_call.1} parent=11 // pred_check
          %p343 = pneg %p170
        $region22: #{tpu_custom_call.1} parent=11 // pred_check_branch
          %345 = sbr.rel (%p343) target = $region24
        $region23: #{tpu_custom_call.1} parent=11 // pred_region
          _
        $region24: #{tpu_custom_call.1} parent=11 // pred_fallthru
          _
        // Predicated region
        $region25: #{tpu_custom_call.1} parent=11 // pred_check
          %p346 = pneg %p191
        $region26: #{tpu_custom_call.1} parent=11 // pred_check_branch
          %348 = sbr.rel (%p346) target = $region28
        $region27: #{tpu_custom_call.1} parent=11 // pred_region
          _
        $region28: #{tpu_custom_call.1} parent=11 // pred_fallthru
          _
        // Predicated region
        $region29: #{tpu_custom_call.1} parent=11 // pred_check
          %p349 = pneg %p212
        $region30: #{tpu_custom_call.1} parent=11 // pred_check_branch
          %351 = sbr.rel (%p349) target = $region32
        $region31: #{tpu_custom_call.1} parent=11 // pred_region
          _
        $region32: #{tpu_custom_call.1} parent=11 // pred_fallthru
          _
        // Predicated region
        $region33: #{tpu_custom_call.1} parent=11 // pred_check
          %p352 = pneg %p233
        $region34: #{tpu_custom_call.1} parent=11 // pred_check_branch
          %354 = sbr.rel (%p352) target = $region36
        $region35: #{tpu_custom_call.1} parent=11 // pred_region
          %s356 = ssub.s32 4096, 4096
          %357 = vsyncadd [#allocation15], %s356
          %s358 = sshll.u32 [#allocation14], 4
          %s359 = int_to_ptr.vmem [resolvable:$true] %s358
          %364 = dma.hbm_to_vmem [thread:$0]  %s8, 4096, %s359, [#allocation15], 256, 256, 16
        $region36: #{tpu_custom_call.1} parent=11 // pred_fallthru
          _
        // Predicated region
        $region37: #{tpu_custom_call.1} parent=11 // pred_check
          %p365 = pneg %p254
        $region38: #{tpu_custom_call.1} parent=11 // pred_check_branch
          %367 = sbr.rel (%p365) target = $region40
        $region39: #{tpu_custom_call.1} parent=11 // pred_region
          _
        $region40: #{tpu_custom_call.1} parent=11 // pred_fallthru
          _
        // Predicated region
        $region41: #{tpu_custom_call.1} parent=11 // pred_check
          %p368 = pneg %p275
        $region42: #{tpu_custom_call.1} parent=11 // pred_check_branch
          %370 = sbr.rel (%p368) target = $region44
        $region43: #{tpu_custom_call.1} parent=11 // pred_region
          _
        $region44: #{tpu_custom_call.1} parent=11 // pred_fallthru
          _
        // Predicated region
        $region45: #{tpu_custom_call.1} parent=11 // pred_check
          %p371 = pneg %p296
        $region46: #{tpu_custom_call.1} parent=11 // pred_check_branch
          %373 = sbr.rel (%p371) target = $region48
        $region47: #{tpu_custom_call.1} parent=11 // pred_region
          _
        $region48: #{tpu_custom_call.1} parent=11 // pred_fallthru
          _
      $region12: #{tpu_custom_call.1} parent=5 // pred_fallthru
        _
      %p374 = scmp.lt.s32.totalorder %s29, 2
      // Predicated region
      $region49: #{tpu_custom_call.1} parent=5 // pred_check
        %p375 = pneg %p374
      $region50: #{tpu_custom_call.1} parent=5 // pred_check_branch
        %377 = sbr.rel (%p375) target = $region52
      $region51: #{tpu_custom_call.1} parent=5 // pred_region
        // Predicated region
        $region53: #{tpu_custom_call.1} parent=51 // pred_check
          %p378 = pneg %p49
        $region54: #{tpu_custom_call.1} parent=51 // pred_check_branch
          %380 = sbr.rel (%p378) target = $region56
        $region55: #{tpu_custom_call.1} parent=51 // pred_region
          %s381 = sand.u32 %s39, 1
          %s382 = scalar_lea.sflag [#allocation9], %s381
          %s383 = sand.u32 %s39, 1
          %s384 = smul.addr %s383, 64
          %s385 = scalar_lea.vmem [#allocation8], %s384
          %s386 = smul.u32 8, %s29
          %s388 = ssub.s32 1024, 1024
          %389 = vsyncadd %s382, %s388
          %s390 = smul.addr %s386, 128
          %s391 = scalar_lea.hbm %s0, %s390
          %s392 = sshll.u32 %s385, 4
          %s393 = int_to_ptr.vmem [resolvable:$true] %s392
          %398 = dma.hbm_to_vmem [thread:$0]  %s391, 1024, %s393, %s382, 128, 128, 8
        $region56: #{tpu_custom_call.1} parent=51 // pred_fallthru
          _
        // Predicated region
        $region57: #{tpu_custom_call.1} parent=51 // pred_check
          %p399 = pneg %p75
        $region58: #{tpu_custom_call.1} parent=51 // pred_check_branch
          %401 = sbr.rel (%p399) target = $region60
        $region59: #{tpu_custom_call.1} parent=51 // pred_region
          %s402 = sand.u32 %s29, 1
          %s403 = scalar_lea.sflag [#allocation12], %s402
          %s404 = sand.u32 %s65, 1
          %s405 = smul.addr %s404, 64
          %s406 = scalar_lea.vmem [#allocation11], %s405
          %s407 = smul.u32 8, %s29
          %s409 = ssub.s32 1024, 1024
          %410 = vsyncadd %s403, %s409
          %s411 = smul.addr %s407, 128
          %s412 = scalar_lea.hbm %s1, %s411
          %s413 = sshll.u32 %s406, 4
          %s414 = int_to_ptr.vmem [resolvable:$true] %s413
          %419 = dma.hbm_to_vmem [thread:$0]  %s412, 1024, %s414, %s403, 128, 128, 8
        $region60: #{tpu_custom_call.1} parent=51 // pred_fallthru
          _
        // Predicated region
        $region61: #{tpu_custom_call.1} parent=51 // pred_check
          %p420 = pneg %p101
        $region62: #{tpu_custom_call.1} parent=51 // pred_check_branch
          %422 = sbr.rel (%p420) target = $region64
        $region63: #{tpu_custom_call.1} parent=51 // pred_region
          %s423 = sand.u32 %s29, 1
          %s424 = scalar_lea.sflag [#allocation12], %s423
          %s425 = sand.u32 %s91, 1
          %s426 = smul.addr %s425, 8
          %s427 = scalar_lea.vmem [#allocation13], %s426
          %s429 = ssub.s32 128, 128
          %430 = vsyncadd %s424, %s429
          %s431 = smul.addr %s29, 128
          %s432 = scalar_lea.hbm %s2, %s431
          %s434 = sshll.u32 %s427, 4
          %s435 = int_to_ptr.vmem [resolvable:$true] %s434
          %437 = dma.hbm_to_vmem [thread:$0]  %s432, 128, %s435, %s424
        $region64: #{tpu_custom_call.1} parent=51 // pred_fallthru
          _
      $region52: #{tpu_custom_call.1} parent=5 // pred_fallthru
        _
      %p438 = scmp.le.s32.totalorder 1, %s29
      %p439 = scmp.lt.s32.totalorder %s29, 3
      %p440 = pnand %p438, %p439
      %p441 = pneg %p440
      // Predicated region
      $region65: #{tpu_custom_call.1} parent=5 // pred_check
        _
      $region66: #{tpu_custom_call.1} parent=5 // pred_check_branch
        %443 = sbr.rel (%p440) target = $region68
      $region67: #{tpu_custom_call.1} parent=5 // pred_region
        %s444 = ssub.s32 %s29, 1
        %s445 = sand.u32 %s42, 1
        %s446 = scalar_lea.sflag [#allocation9], %s445
        %s447 = sand.u32 %s42, 1
        %s448 = smul.addr %s447, 64
        %s449 = scalar_lea.vmem [#allocation8], %s448
        // Predicated region
        $region69: #{tpu_custom_call.1} parent=67 // pred_check
          %p450 = pneg %p55
        $region70: #{tpu_custom_call.1} parent=67 // pred_check_branch
          %452 = sbr.rel (%p450) target = $region72
        $region71: #{tpu_custom_call.1} parent=67 // pred_region
          %453 = dma.done %s446, 1024
        $region72: #{tpu_custom_call.1} parent=67 // pred_fallthru
          _
        %s454 = sand.u32 %s34, 1
        %s455 = scalar_lea.sflag [#allocation12], %s454
        %s456 = sand.u32 %s68, 1
        %s457 = smul.addr %s456, 64
        %s458 = scalar_lea.vmem [#allocation11], %s457
        // Predicated region
        $region73: #{tpu_custom_call.1} parent=67 // pred_check
          %p459 = pneg %p81
        $region74: #{tpu_custom_call.1} parent=67 // pred_check_branch
          %461 = sbr.rel (%p459) target = $region76
        $region75: #{tpu_custom_call.1} parent=67 // pred_region
          %462 = dma.done %s455, 1024
        $region76: #{tpu_custom_call.1} parent=67 // pred_fallthru
          _
        %s463 = sand.u32 %s34, 1
        %s464 = scalar_lea.sflag [#allocation12], %s463
        %s465 = sand.u32 %s94, 1
        %s466 = smul.addr %s465, 8
        %s467 = scalar_lea.vmem [#allocation13], %s466
        // Predicated region
        $region77: #{tpu_custom_call.1} parent=67 // pred_check
          %p468 = pneg %p107
        $region78: #{tpu_custom_call.1} parent=67 // pred_check_branch
          %470 = sbr.rel (%p468) target = $region80
        $region79: #{tpu_custom_call.1} parent=67 // pred_region
          %471 = dma.done %s464, 128
        $region80: #{tpu_custom_call.1} parent=67 // pred_fallthru
          _
        // Predicated region
        $region81: #{tpu_custom_call.1} parent=67 // pred_check
          %p472 = pneg %p233
        $region82: #{tpu_custom_call.1} parent=67 // pred_check_branch
          %474 = sbr.rel (%p472) target = $region84
        $region83: #{tpu_custom_call.1} parent=67 // pred_region
          %475 = dma.done [#allocation15], 4096
        $region84: #{tpu_custom_call.1} parent=67 // pred_fallthru
          _
        %s476 = sand.u32 %s42, 1
        %s477 = scalar_lea.sflag [#allocation9], %s476
        %s478 = sand.u32 %s42, 1
        %s479 = smul.addr %s478, 64
        %s480 = scalar_lea.vmem [#allocation8], %s479
        %p481 = pneg %p55
        %p482 = pneg %p52
        %s483 = sand.u32 %s34, 1
        %s484 = scalar_lea.sflag [#allocation12], %s483
        %s485 = sand.u32 %s68, 1
        %s486 = smul.addr %s485, 64
        %s487 = scalar_lea.vmem [#allocation11], %s486
        %p488 = pneg %p81
        %p489 = pneg %p78
        %s490 = sand.u32 %s34, 1
        %s491 = scalar_lea.sflag [#allocation12], %s490
        %s492 = sand.u32 %s94, 1
        %s493 = smul.addr %s492, 8
        %s494 = scalar_lea.vmem [#allocation13], %s493
        %p495 = pneg %p107
        %p496 = pneg %p104
        %p497 = pneg %p128
        %p498 = pneg %p125
        %p499 = pneg %p149
        %p500 = pneg %p146
        %p501 = pneg %p170
        %p502 = pneg %p167
        %p503 = pneg %p191
        %p504 = pneg %p188
        %p505 = pneg %p212
        %p506 = pneg %p209
        %p507 = pneg %p233
        %p508 = pneg %p230
        %p509 = pneg %p254
        %p510 = pneg %p251
        %p511 = pneg %p275
        %p512 = pneg %p272
        %p513 = pneg %p296
        %p514 = pneg %p293
        %p515 = pneg %p322
        %p516 = pneg %p319
        %s517 = sand.u32 %s309, 1
        %s518 = scalar_lea.sflag [#allocation10], %s517
        %s519 = sand.u32 %s309, 1
        %s520 = smul.addr %s519, 64
        %s521 = scalar_lea.vmem [#allocation16], %s520
        %s522 = smul.u32 8, %s34
        %s523 = smul.u32 8, %s34
        %s524 = smul.u32 8, %s34
        %s525 = sld [smem:[#allocation7]]
        %s526 = ssub.f32 1.0, %s525
        %v527 = vld [vmem:[%s449] sm:$0x1]
        %v528 = vld [vmem:[%s449 + $0x8] sm:$0x1]
        %v529 = vld [vmem:[%s449 + $0x10] sm:$0x1]
        %v530 = vld [vmem:[%s449 + $0x18] sm:$0x1]
        %v531 = vld [vmem:[%s449 + $0x20] sm:$0x1]
        %v532 = vld [vmem:[%s449 + $0x28] sm:$0x1]
        %v533 = vld [vmem:[%s449 + $0x30] sm:$0x1]
        %v534 = vld [vmem:[%s449 + $0x38] sm:$0x1]
        %v535 = vstv %s525
        %v536 = vmul.f32 %v535, %v527
        %v537 = vmul.f32 %v535, %v528
        %v538 = vmul.f32 %v535, %v529
        %v539 = vmul.f32 %v535, %v530
        %v540 = vmul.f32 %v535, %v531
        %v541 = vmul.f32 %v535, %v532
        %v542 = vmul.f32 %v535, %v533
        %v543 = vmul.f32 %v535, %v534
        %v544 = vld [vmem:[%s458] sm:$0x1]
        %v545 = vld [vmem:[%s458 + $0x8] sm:$0x1]
        %v546 = vld [vmem:[%s458 + $0x10] sm:$0x1]
        %v547 = vld [vmem:[%s458 + $0x18] sm:$0x1]
        %v548 = vld [vmem:[%s458 + $0x20] sm:$0x1]
        %v549 = vld [vmem:[%s458 + $0x28] sm:$0x1]
        %v550 = vld [vmem:[%s458 + $0x30] sm:$0x1]
        %v551 = vld [vmem:[%s458 + $0x38] sm:$0x1]
        %v552 = vstv %s526
        %v553 = vmul.f32 %v552, %v544
        %v554 = vmul.f32 %v552, %v545
        %v555 = vmul.f32 %v552, %v546
        %v556 = vmul.f32 %v552, %v547
        %v557 = vmul.f32 %v552, %v548
        %v558 = vmul.f32 %v552, %v549
        %v559 = vmul.f32 %v552, %v550
        %v560 = vmul.f32 %v552, %v551
        %v561 = vadd.f32 %v536, %v553
        %v562 = vadd.f32 %v537, %v554
        %v563 = vadd.f32 %v538, %v555
        %v564 = vadd.f32 %v539, %v556
        %v565 = vadd.f32 %v540, %v557
        %v566 = vadd.f32 %v541, %v558
        %v567 = vadd.f32 %v542, %v559
        %v568 = vadd.f32 %v543, %v560
        %v577 = vrot.slane %v562, 7
        %vm578 = vcmask 1041409
        %v579 = vsel %vm578, %v577, %v561
        %v580 = vrot.slane %v563, 6
        %vm581 = vcmask 1042434
        %v582 = vsel %vm581, %v580, %v579
        %v583 = vrot.slane %v564, 5
        %vm584 = vcmask 1043459
        %v585 = vsel %vm584, %v583, %v582
        %v586 = vrot.slane %v565, 4
        %vm587 = vcmask 1044484
        %v588 = vsel %vm587, %v586, %v585
        %v589 = vrot.slane %v566, 3
        %vm590 = vcmask 1045509
        %v591 = vsel %vm590, %v589, %v588
        %v592 = vrot.slane %v567, 2
        %vm593 = vcmask 1046534
        %v594 = vsel %vm593, %v592, %v591
        %v595 = vrot.slane %v568, 1
        %vm596 = vcmask 1047559
        %v597 = vsel %vm596, %v595, %v594
        %599 = vst [vmem:[#allocation2] sm:$0xff] %v597
        %v600 = vld [vmem:[%s449 + $0x1] sm:$0x1]
        %v601 = vld [vmem:[%s449 + $0x9] sm:$0x1]
        %v602 = vld [vmem:[%s449 + $0x11] sm:$0x1]
        %v603 = vld [vmem:[%s449 + $0x19] sm:$0x1]
        %v604 = vld [vmem:[%s449 + $0x21] sm:$0x1]
        %v605 = vld [vmem:[%s449 + $0x29] sm:$0x1]
        %v606 = vld [vmem:[%s449 + $0x31] sm:$0x1]
        %v607 = vld [vmem:[%s449 + $0x39] sm:$0x1]
        %v608 = vmul.f32 %v535, %v600
        %v609 = vmul.f32 %v535, %v601
        %v610 = vmul.f32 %v535, %v602
        %v611 = vmul.f32 %v535, %v603
        %v612 = vmul.f32 %v535, %v604
        %v613 = vmul.f32 %v535, %v605
        %v614 = vmul.f32 %v535, %v606
        %v615 = vmul.f32 %v535, %v607
        %v616 = vld [vmem:[%s458 + $0x1] sm:$0x1]
        %v617 = vld [vmem:[%s458 + $0x9] sm:$0x1]
        %v618 = vld [vmem:[%s458 + $0x11] sm:$0x1]
        %v619 = vld [vmem:[%s458 + $0x19] sm:$0x1]
        %v620 = vld [vmem:[%s458 + $0x21] sm:$0x1]
        %v621 = vld [vmem:[%s458 + $0x29] sm:$0x1]
        %v622 = vld [vmem:[%s458 + $0x31] sm:$0x1]
        %v623 = vld [vmem:[%s458 + $0x39] sm:$0x1]
        %v624 = vmul.f32 %v552, %v616
        %v625 = vmul.f32 %v552, %v617
        %v626 = vmul.f32 %v552, %v618
        %v627 = vmul.f32 %v552, %v619
        %v628 = vmul.f32 %v552, %v620
        %v629 = vmul.f32 %v552, %v621
        %v630 = vmul.f32 %v552, %v622
        %v631 = vmul.f32 %v552, %v623
        %v632 = vadd.f32 %v608, %v624
        %v633 = vadd.f32 %v609, %v625
        %v634 = vadd.f32 %v610, %v626
        %v635 = vadd.f32 %v611, %v627
        %v636 = vadd.f32 %v612, %v628
        %v637 = vadd.f32 %v613, %v629
        %v638 = vadd.f32 %v614, %v630
        %v639 = vadd.f32 %v615, %v631
        %v648 = vrot.slane %v633, 7
        %v649 = vsel %vm578, %v648, %v632
        %v650 = vrot.slane %v634, 6
        %v651 = vsel %vm581, %v650, %v649
        %v652 = vrot.slane %v635, 5
        %v653 = vsel %vm584, %v652, %v651
        %v654 = vrot.slane %v636, 4
        %v655 = vsel %vm587, %v654, %v653
        %v656 = vrot.slane %v637, 3
        %v657 = vsel %vm590, %v656, %v655
        %v658 = vrot.slane %v638, 2
        %v659 = vsel %vm593, %v658, %v657
        %v660 = vrot.slane %v639, 1
        %v661 = vsel %vm596, %v660, %v659
        %s663 = scalar_lea.vmem [#allocation2], 8
        %664 = vst [vmem:[%s663] sm:$0xff] %v661
        %v665 = vld [vmem:[%s449 + $0x2] sm:$0x1]
        %v666 = vld [vmem:[%s449 + $0xa] sm:$0x1]
        %v667 = vld [vmem:[%s449 + $0x12] sm:$0x1]
        %v668 = vld [vmem:[%s449 + $0x1a] sm:$0x1]
        %v669 = vld [vmem:[%s449 + $0x22] sm:$0x1]
        %v670 = vld [vmem:[%s449 + $0x2a] sm:$0x1]
        %v671 = vld [vmem:[%s449 + $0x32] sm:$0x1]
        %v672 = vld [vmem:[%s449 + $0x3a] sm:$0x1]
        %v673 = vmul.f32 %v535, %v665
        %v674 = vmul.f32 %v535, %v666
        %v675 = vmul.f32 %v535, %v667
        %v676 = vmul.f32 %v535, %v668
        %v677 = vmul.f32 %v535, %v669
        %v678 = vmul.f32 %v535, %v670
        %v679 = vmul.f32 %v535, %v671
        %v680 = vmul.f32 %v535, %v672
        %v681 = vld [vmem:[%s458 + $0x2] sm:$0x1]
        %v682 = vld [vmem:[%s458 + $0xa] sm:$0x1]
        %v683 = vld [vmem:[%s458 + $0x12] sm:$0x1]
        %v684 = vld [vmem:[%s458 + $0x1a] sm:$0x1]
        %v685 = vld [vmem:[%s458 + $0x22] sm:$0x1]
        %v686 = vld [vmem:[%s458 + $0x2a] sm:$0x1]
        %v687 = vld [vmem:[%s458 + $0x32] sm:$0x1]
        %v688 = vld [vmem:[%s458 + $0x3a] sm:$0x1]
        %v689 = vmul.f32 %v552, %v681
        %v690 = vmul.f32 %v552, %v682
        %v691 = vmul.f32 %v552, %v683
        %v692 = vmul.f32 %v552, %v684
        %v693 = vmul.f32 %v552, %v685
        %v694 = vmul.f32 %v552, %v686
        %v695 = vmul.f32 %v552, %v687
        %v696 = vmul.f32 %v552, %v688
        %v697 = vadd.f32 %v673, %v689
        %v698 = vadd.f32 %v674, %v690
        %v699 = vadd.f32 %v675, %v691
        %v700 = vadd.f32 %v676, %v692
        %v701 = vadd.f32 %v677, %v693
        %v702 = vadd.f32 %v678, %v694
        %v703 = vadd.f32 %v679, %v695
        %v704 = vadd.f32 %v680, %v696
        %v713 = vrot.slane %v698, 7
        %v714 = vsel %vm578, %v713, %v697
        %v715 = vrot.slane %v699, 6
        %v716 = vsel %vm581, %v715, %v714
        %v717 = vrot.slane %v700, 5
        %v718 = vsel %vm584, %v717, %v716
        %v719 = vrot.slane %v701, 4
        %v720 = vsel %vm587, %v719, %v718
        %v721 = vrot.slane %v702, 3
        %v722 = vsel %vm590, %v721, %v720
        %v723 = vrot.slane %v703, 2
        %v724 = vsel %vm593, %v723, %v722
        %v725 = vrot.slane %v704, 1
        %v726 = vsel %vm596, %v725, %v724
        %s728 = scalar_lea.vmem [#allocation2], 16
        %729 = vst [vmem:[%s728] sm:$0xff] %v726
        %v730 = vld [vmem:[%s449 + $0x3] sm:$0x1]
        %v731 = vld [vmem:[%s449 + $0xb] sm:$0x1]
        %v732 = vld [vmem:[%s449 + $0x13] sm:$0x1]
        %v733 = vld [vmem:[%s449 + $0x1b] sm:$0x1]
        %v734 = vld [vmem:[%s449 + $0x23] sm:$0x1]
        %v735 = vld [vmem:[%s449 + $0x2b] sm:$0x1]
        %v736 = vld [vmem:[%s449 + $0x33] sm:$0x1]
        %v737 = vld [vmem:[%s449 + $0x3b] sm:$0x1]
        %v738 = vmul.f32 %v535, %v730
        %v739 = vmul.f32 %v535, %v731
        %v740 = vmul.f32 %v535, %v732
        %v741 = vmul.f32 %v535, %v733
        %v742 = vmul.f32 %v535, %v734
        %v743 = vmul.f32 %v535, %v735
        %v744 = vmul.f32 %v535, %v736
        %v745 = vmul.f32 %v535, %v737
        %v746 = vld [vmem:[%s458 + $0x3] sm:$0x1]
        %v747 = vld [vmem:[%s458 + $0xb] sm:$0x1]
        %v748 = vld [vmem:[%s458 + $0x13] sm:$0x1]
        %v749 = vld [vmem:[%s458 + $0x1b] sm:$0x1]
        %v750 = vld [vmem:[%s458 + $0x23] sm:$0x1]
        %v751 = vld [vmem:[%s458 + $0x2b] sm:$0x1]
        %v752 = vld [vmem:[%s458 + $0x33] sm:$0x1]
        %v753 = vld [vmem:[%s458 + $0x3b] sm:$0x1]
        %v754 = vmul.f32 %v552, %v746
        %v755 = vmul.f32 %v552, %v747
        %v756 = vmul.f32 %v552, %v748
        %v757 = vmul.f32 %v552, %v749
        %v758 = vmul.f32 %v552, %v750
        %v759 = vmul.f32 %v552, %v751
        %v760 = vmul.f32 %v552, %v752
        %v761 = vmul.f32 %v552, %v753
        %v762 = vadd.f32 %v738, %v754
        %v763 = vadd.f32 %v739, %v755
        %v764 = vadd.f32 %v740, %v756
        %v765 = vadd.f32 %v741, %v757
        %v766 = vadd.f32 %v742, %v758
        %v767 = vadd.f32 %v743, %v759
        %v768 = vadd.f32 %v744, %v760
        %v769 = vadd.f32 %v745, %v761
        %v778 = vrot.slane %v763, 7
        %v779 = vsel %vm578, %v778, %v762
        %v780 = vrot.slane %v764, 6
        %v781 = vsel %vm581, %v780, %v779
        %v782 = vrot.slane %v765, 5
        %v783 = vsel %vm584, %v782, %v781
        %v784 = vrot.slane %v766, 4
        %v785 = vsel %vm587, %v784, %v783
        %v786 = vrot.slane %v767, 3
        %v787 = vsel %vm590, %v786, %v785
        %v788 = vrot.slane %v768, 2
        %v789 = vsel %vm593, %v788, %v787
        %v790 = vrot.slane %v769, 1
        %v791 = vsel %vm596, %v790, %v789
        %s793 = scalar_lea.vmem [#allocation2], 24
        %794 = vst [vmem:[%s793] sm:$0xff] %v791
        %v795 = vld [vmem:[%s449 + $0x4] sm:$0x1]
        %v796 = vld [vmem:[%s449 + $0xc] sm:$0x1]
        %v797 = vld [vmem:[%s449 + $0x14] sm:$0x1]
        %v798 = vld [vmem:[%s449 + $0x1c] sm:$0x1]
        %v799 = vld [vmem:[%s449 + $0x24] sm:$0x1]
        %v800 = vld [vmem:[%s449 + $0x2c] sm:$0x1]
        %v801 = vld [vmem:[%s449 + $0x34] sm:$0x1]
        %v802 = vld [vmem:[%s449 + $0x3c] sm:$0x1]
        %v803 = vmul.f32 %v535, %v795
        %v804 = vmul.f32 %v535, %v796
        %v805 = vmul.f32 %v535, %v797
        %v806 = vmul.f32 %v535, %v798
        %v807 = vmul.f32 %v535, %v799
        %v808 = vmul.f32 %v535, %v800
        %v809 = vmul.f32 %v535, %v801
        %v810 = vmul.f32 %v535, %v802
        %v811 = vld [vmem:[%s458 + $0x4] sm:$0x1]
        %v812 = vld [vmem:[%s458 + $0xc] sm:$0x1]
        %v813 = vld [vmem:[%s458 + $0x14] sm:$0x1]
        %v814 = vld [vmem:[%s458 + $0x1c] sm:$0x1]
        %v815 = vld [vmem:[%s458 + $0x24] sm:$0x1]
        %v816 = vld [vmem:[%s458 + $0x2c] sm:$0x1]
        %v817 = vld [vmem:[%s458 + $0x34] sm:$0x1]
        %v818 = vld [vmem:[%s458 + $0x3c] sm:$0x1]
        %v819 = vmul.f32 %v552, %v811
        %v820 = vmul.f32 %v552, %v812
        %v821 = vmul.f32 %v552, %v813
        %v822 = vmul.f32 %v552, %v814
        %v823 = vmul.f32 %v552, %v815
        %v824 = vmul.f32 %v552, %v816
        %v825 = vmul.f32 %v552, %v817
        %v826 = vmul.f32 %v552, %v818
        %v827 = vadd.f32 %v803, %v819
        %v828 = vadd.f32 %v804, %v820
        %v829 = vadd.f32 %v805, %v821
        %v830 = vadd.f32 %v806, %v822
        %v831 = vadd.f32 %v807, %v823
        %v832 = vadd.f32 %v808, %v824
        %v833 = vadd.f32 %v809, %v825
        %v834 = vadd.f32 %v810, %v826
        %v843 = vrot.slane %v828, 7
        %v844 = vsel %vm578, %v843, %v827
        %v845 = vrot.slane %v829, 6
        %v846 = vsel %vm581, %v845, %v844
        %v847 = vrot.slane %v830, 5
        %v848 = vsel %vm584, %v847, %v846
        %v849 = vrot.slane %v831, 4
        %v850 = vsel %vm587, %v849, %v848
        %v851 = vrot.slane %v832, 3
        %v852 = vsel %vm590, %v851, %v850
        %v853 = vrot.slane %v833, 2
        %v854 = vsel %vm593, %v853, %v852
        %v855 = vrot.slane %v834, 1
        %v856 = vsel %vm596, %v855, %v854
        %s858 = scalar_lea.vmem [#allocation2], 32
        %859 = vst [vmem:[%s858] sm:$0xff] %v856
        %v860 = vld [vmem:[%s449 + $0x5] sm:$0x1]
        %v861 = vld [vmem:[%s449 + $0xd] sm:$0x1]
        %v862 = vld [vmem:[%s449 + $0x15] sm:$0x1]
        %v863 = vld [vmem:[%s449 + $0x1d] sm:$0x1]
        %v864 = vld [vmem:[%s449 + $0x25] sm:$0x1]
        %v865 = vld [vmem:[%s449 + $0x2d] sm:$0x1]
        %v866 = vld [vmem:[%s449 + $0x35] sm:$0x1]
        %v867 = vld [vmem:[%s449 + $0x3d] sm:$0x1]
        %v868 = vmul.f32 %v535, %v860
        %v869 = vmul.f32 %v535, %v861
        %v870 = vmul.f32 %v535, %v862
        %v871 = vmul.f32 %v535, %v863
        %v872 = vmul.f32 %v535, %v864
        %v873 = vmul.f32 %v535, %v865
        %v874 = vmul.f32 %v535, %v866
        %v875 = vmul.f32 %v535, %v867
        %v876 = vld [vmem:[%s458 + $0x5] sm:$0x1]
        %v877 = vld [vmem:[%s458 + $0xd] sm:$0x1]
        %v878 = vld [vmem:[%s458 + $0x15] sm:$0x1]
        %v879 = vld [vmem:[%s458 + $0x1d] sm:$0x1]
        %v880 = vld [vmem:[%s458 + $0x25] sm:$0x1]
        %v881 = vld [vmem:[%s458 + $0x2d] sm:$0x1]
        %v882 = vld [vmem:[%s458 + $0x35] sm:$0x1]
        %v883 = vld [vmem:[%s458 + $0x3d] sm:$0x1]
        %v884 = vmul.f32 %v552, %v876
        %v885 = vmul.f32 %v552, %v877
        %v886 = vmul.f32 %v552, %v878
        %v887 = vmul.f32 %v552, %v879
        %v888 = vmul.f32 %v552, %v880
        %v889 = vmul.f32 %v552, %v881
        %v890 = vmul.f32 %v552, %v882
        %v891 = vmul.f32 %v552, %v883
        %v892 = vadd.f32 %v868, %v884
        %v893 = vadd.f32 %v869, %v885
        %v894 = vadd.f32 %v870, %v886
        %v895 = vadd.f32 %v871, %v887
        %v896 = vadd.f32 %v872, %v888
        %v897 = vadd.f32 %v873, %v889
        %v898 = vadd.f32 %v874, %v890
        %v899 = vadd.f32 %v875, %v891
        %v908 = vrot.slane %v893, 7
        %v909 = vsel %vm578, %v908, %v892
        %v910 = vrot.slane %v894, 6
        %v911 = vsel %vm581, %v910, %v909
        %v912 = vrot.slane %v895, 5
        %v913 = vsel %vm584, %v912, %v911
        %v914 = vrot.slane %v896, 4
        %v915 = vsel %vm587, %v914, %v913
        %v916 = vrot.slane %v897, 3
        %v917 = vsel %vm590, %v916, %v915
        %v918 = vrot.slane %v898, 2
        %v919 = vsel %vm593, %v918, %v917
        %v920 = vrot.slane %v899, 1
        %v921 = vsel %vm596, %v920, %v919
        %s923 = scalar_lea.vmem [#allocation2], 40
        %924 = vst [vmem:[%s923] sm:$0xff] %v921
        %v925 = vld [vmem:[%s449 + $0x6] sm:$0x1]
        %v926 = vld [vmem:[%s449 + $0xe] sm:$0x1]
        %v927 = vld [vmem:[%s449 + $0x16] sm:$0x1]
        %v928 = vld [vmem:[%s449 + $0x1e] sm:$0x1]
        %v929 = vld [vmem:[%s449 + $0x26] sm:$0x1]
        %v930 = vld [vmem:[%s449 + $0x2e] sm:$0x1]
        %v931 = vld [vmem:[%s449 + $0x36] sm:$0x1]
        %v932 = vld [vmem:[%s449 + $0x3e] sm:$0x1]
        %v933 = vmul.f32 %v535, %v925
        %v934 = vmul.f32 %v535, %v926
        %v935 = vmul.f32 %v535, %v927
        %v936 = vmul.f32 %v535, %v928
        %v937 = vmul.f32 %v535, %v929
        %v938 = vmul.f32 %v535, %v930
        %v939 = vmul.f32 %v535, %v931
        %v940 = vmul.f32 %v535, %v932
        %v941 = vld [vmem:[%s458 + $0x6] sm:$0x1]
        %v942 = vld [vmem:[%s458 + $0xe] sm:$0x1]
        %v943 = vld [vmem:[%s458 + $0x16] sm:$0x1]
        %v944 = vld [vmem:[%s458 + $0x1e] sm:$0x1]
        %v945 = vld [vmem:[%s458 + $0x26] sm:$0x1]
        %v946 = vld [vmem:[%s458 + $0x2e] sm:$0x1]
        %v947 = vld [vmem:[%s458 + $0x36] sm:$0x1]
        %v948 = vld [vmem:[%s458 + $0x3e] sm:$0x1]
        %v949 = vmul.f32 %v552, %v941
        %v950 = vmul.f32 %v552, %v942
        %v951 = vmul.f32 %v552, %v943
        %v952 = vmul.f32 %v552, %v944
        %v953 = vmul.f32 %v552, %v945
        %v954 = vmul.f32 %v552, %v946
        %v955 = vmul.f32 %v552, %v947
        %v956 = vmul.f32 %v552, %v948
        %v957 = vadd.f32 %v933, %v949
        %v958 = vadd.f32 %v934, %v950
        %v959 = vadd.f32 %v935, %v951
        %v960 = vadd.f32 %v936, %v952
        %v961 = vadd.f32 %v937, %v953
        %v962 = vadd.f32 %v938, %v954
        %v963 = vadd.f32 %v939, %v955
        %v964 = vadd.f32 %v940, %v956
        %v973 = vrot.slane %v958, 7
        %v974 = vsel %vm578, %v973, %v957
        %v975 = vrot.slane %v959, 6
        %v976 = vsel %vm581, %v975, %v974
        %v977 = vrot.slane %v960, 5
        %v978 = vsel %vm584, %v977, %v976
        %v979 = vrot.slane %v961, 4
        %v980 = vsel %vm587, %v979, %v978
        %v981 = vrot.slane %v962, 3
        %v982 = vsel %vm590, %v981, %v980
        %v983 = vrot.slane %v963, 2
        %v984 = vsel %vm593, %v983, %v982
        %v985 = vrot.slane %v964, 1
        %v986 = vsel %vm596, %v985, %v984
        %s988 = scalar_lea.vmem [#allocation2], 48
        %989 = vst [vmem:[%s988] sm:$0xff] %v986
        %v990 = vld [vmem:[%s449 + $0x7] sm:$0x1]
        %v991 = vld [vmem:[%s449 + $0xf] sm:$0x1]
        %v992 = vld [vmem:[%s449 + $0x17] sm:$0x1]
        %v993 = vld [vmem:[%s449 + $0x1f] sm:$0x1]
        %v994 = vld [vmem:[%s449 + $0x27] sm:$0x1]
        %v995 = vld [vmem:[%s449 + $0x2f] sm:$0x1]
        %v996 = vld [vmem:[%s449 + $0x37] sm:$0x1]
        %v997 = vld [vmem:[%s449 + $0x3f] sm:$0x1]
        %v998 = vmul.f32 %v535, %v990
        %v999 = vmul.f32 %v535, %v991
        %v1000 = vmul.f32 %v535, %v992
        %v1001 = vmul.f32 %v535, %v993
        %v1002 = vmul.f32 %v535, %v994
        %v1003 = vmul.f32 %v535, %v995
        %v1004 = vmul.f32 %v535, %v996
        %v1005 = vmul.f32 %v535, %v997
        %v1006 = vld [vmem:[%s458 + $0x7] sm:$0x1]
        %v1007 = vld [vmem:[%s458 + $0xf] sm:$0x1]
        %v1008 = vld [vmem:[%s458 + $0x17] sm:$0x1]
        %v1009 = vld [vmem:[%s458 + $0x1f] sm:$0x1]
        %v1010 = vld [vmem:[%s458 + $0x27] sm:$0x1]
        %v1011 = vld [vmem:[%s458 + $0x2f] sm:$0x1]
        %v1012 = vld [vmem:[%s458 + $0x37] sm:$0x1]
        %v1013 = vld [vmem:[%s458 + $0x3f] sm:$0x1]
        %v1014 = vmul.f32 %v552, %v1006
        %v1015 = vmul.f32 %v552, %v1007
        %v1016 = vmul.f32 %v552, %v1008
        %v1017 = vmul.f32 %v552, %v1009
        %v1018 = vmul.f32 %v552, %v1010
        %v1019 = vmul.f32 %v552, %v1011
        %v1020 = vmul.f32 %v552, %v1012
        %v1021 = vmul.f32 %v552, %v1013
        %v1022 = vadd.f32 %v998, %v1014
        %v1023 = vadd.f32 %v999, %v1015
        %v1024 = vadd.f32 %v1000, %v1016
        %v1025 = vadd.f32 %v1001, %v1017
        %v1026 = vadd.f32 %v1002, %v1018
        %v1027 = vadd.f32 %v1003, %v1019
        %v1028 = vadd.f32 %v1004, %v1020
        %v1029 = vadd.f32 %v1005, %v1021
        %v1038 = vrot.slane %v1023, 7
        %v1039 = vsel %vm578, %v1038, %v1022
        %v1040 = vrot.slane %v1024, 6
        %v1041 = vsel %vm581, %v1040, %v1039
        %v1042 = vrot.slane %v1025, 5
        %v1043 = vsel %vm584, %v1042, %v1041
        %v1044 = vrot.slane %v1026, 4
        %v1045 = vsel %vm587, %v1044, %v1043
        %v1046 = vrot.slane %v1027, 3
        %v1047 = vsel %vm590, %v1046, %v1045
        %v1048 = vrot.slane %v1028, 2
        %v1049 = vsel %vm593, %v1048, %v1047
        %v1050 = vrot.slane %v1029, 1
        %v1051 = vsel %vm596, %v1050, %v1049
        %s1053 = scalar_lea.vmem [#allocation2], 56
        %1054 = vst [vmem:[%s1053] sm:$0xff] %v1051
        %v1055 = vld [vmem:[#allocation2] sm:$0xff]
        %v1056 = vld [vmem:[#allocation2 + $0x8] sm:$0xff]
        %v1057 = vld [vmem:[#allocation2 + $0x10] sm:$0xff]
        %v1058 = vld [vmem:[#allocation2 + $0x18] sm:$0xff]
        %v1059 = vld [vmem:[#allocation2 + $0x20] sm:$0xff]
        %v1060 = vld [vmem:[#allocation2 + $0x28] sm:$0xff]
        %v1061 = vld [vmem:[#allocation2 + $0x30] sm:$0xff]
        %v1062 = vld [vmem:[#allocation2 + $0x38] sm:$0xff]
        %v1063 = vld [vmem:[%s4] sm:$0x1]
        %v1065 = vlaneseq
        %v1066 = vshrl.u32 %v1065, 7
        %v1067 = vsub.s32 0, %v1066
        %v1068 = vrot.slane %v1063, %v1067
        %v1070 = vmul.f32 %v1055, %v1068
        %v1071 = vmul.f32 %v1056, %v1068
        %v1072 = vmul.f32 %v1057, %v1068
        %v1073 = vmul.f32 %v1058, %v1068
        %v1074 = vmul.f32 %v1059, %v1068
        %v1075 = vmul.f32 %v1060, %v1068
        %v1076 = vmul.f32 %v1061, %v1068
        %v1077 = vmul.f32 %v1062, %v1068
        %v1078 = vxor.u32 %v1070, 2147483648
        %v1079 = vxor.u32 %v1071, 2147483648
        %v1080 = vxor.u32 %v1072, 2147483648
        %v1081 = vxor.u32 %v1073, 2147483648
        %v1082 = vxor.u32 %v1074, 2147483648
        %v1083 = vxor.u32 %v1075, 2147483648
        %v1084 = vxor.u32 %v1076, 2147483648
        %v1085 = vxor.u32 %v1077, 2147483648
        %v1086 = vmul.f32 %v1078, 1.442695
        %v1087 = vpow.pop %v1086
        %v1088 = vmul.f32 %v1079, 1.442695
        %v1089 = vpow.pop %v1088
        %v1090 = vmul.f32 %v1080, 1.442695
        %v1091 = vpow.pop %v1090
        %v1092 = vmul.f32 %v1081, 1.442695
        %v1093 = vpow.pop %v1092
        %v1094 = vmul.f32 %v1082, 1.442695
        %v1095 = vpow.pop %v1094
        %v1096 = vmul.f32 %v1083, 1.442695
        %v1097 = vpow.pop %v1096
        %v1098 = vmul.f32 %v1084, 1.442695
        %v1099 = vpow.pop %v1098
        %v1100 = vmul.f32 %v1085, 1.442695
        %v1101 = vpow.pop %v1100
        %v1102 = vadd.f32 %v1087, 1.0
        %v1103 = vadd.f32 %v1089, 1.0
        %v1104 = vadd.f32 %v1091, 1.0
        %v1105 = vadd.f32 %v1093, 1.0
        %v1106 = vadd.f32 %v1095, 1.0
        %v1107 = vadd.f32 %v1097, 1.0
        %v1108 = vadd.f32 %v1099, 1.0
        %v1109 = vadd.f32 %v1101, 1.0
        %v1110 = vrcp.pop %v1102
        %v1111 = vmul.f32 1.0, %v1110
        %v1112 = vrcp.pop %v1103
        %v1113 = vmul.f32 1.0, %v1112
        %v1114 = vrcp.pop %v1104
        %v1115 = vmul.f32 1.0, %v1114
        %v1116 = vrcp.pop %v1105
        %v1117 = vmul.f32 1.0, %v1116
        %v1118 = vrcp.pop %v1106
        %v1119 = vmul.f32 1.0, %v1118
        %v1120 = vrcp.pop %v1107
        %v1121 = vmul.f32 1.0, %v1120
        %v1122 = vrcp.pop %v1108
        %v1123 = vmul.f32 1.0, %v1122
        %v1124 = vrcp.pop %v1109
        %v1125 = vmul.f32 1.0, %v1124
        %v1126 = vmul.f32 %v1055, 1.442695
        %v1127 = vpow.pop %v1126
        %v1128 = vmul.f32 %v1056, 1.442695
        %v1129 = vpow.pop %v1128
        %v1130 = vmul.f32 %v1057, 1.442695
        %v1131 = vpow.pop %v1130
        %v1132 = vmul.f32 %v1058, 1.442695
        %v1133 = vpow.pop %v1132
        %v1134 = vmul.f32 %v1059, 1.442695
        %v1135 = vpow.pop %v1134
        %v1136 = vmul.f32 %v1060, 1.442695
        %v1137 = vpow.pop %v1136
        %v1138 = vmul.f32 %v1061, 1.442695
        %v1139 = vpow.pop %v1138
        %v1140 = vmul.f32 %v1062, 1.442695
        %v1141 = vpow.pop %v1140
        %v1142 = vld [vmem:[%s467] sm:$0xff]
        %v1143 = vld [vmem:[%s5] sm:$0x1]
        %v1145 = vlaneseq
        %v1146 = vshrl.u32 %v1145, 7
        %v1147 = vsub.s32 0, %v1146
        %v1148 = vrot.slane %v1143, %v1147
        %v1150 = vmul.f32 %v1142, %v1148
        %v1151 = vxor.u32 %v1150, 2147483648
        %v1152 = vmul.f32 %v1151, 1.442695
        %v1153 = vpow.pop %v1152
        %v1154 = vadd.f32 %v1153, 1.0
        %v1155 = vrcp.pop %v1154
        %v1156 = vmul.f32 1.0, %v1155
        %v1157 = vmul.f32 %v1156, %v1142
        %1158 = vst [vmem:[#allocation3] sm:$0xff] %v1111
        %1159 = vst [vmem:[#allocation3 + $0x8] sm:$0xff] %v1113
        %1160 = vst [vmem:[#allocation3 + $0x10] sm:$0xff] %v1115
        %1161 = vst [vmem:[#allocation3 + $0x18] sm:$0xff] %v1117
        %1162 = vst [vmem:[#allocation3 + $0x20] sm:$0xff] %v1119
        %1163 = vst [vmem:[#allocation3 + $0x28] sm:$0xff] %v1121
        %1164 = vst [vmem:[#allocation3 + $0x30] sm:$0xff] %v1123
        %1165 = vst [vmem:[#allocation3 + $0x38] sm:$0xff] %v1125
        %v1166 = vmul.f32 %v1127, %v1055
        %v1167 = vmul.f32 %v1129, %v1056
        %v1168 = vmul.f32 %v1131, %v1057
        %v1169 = vmul.f32 %v1133, %v1058
        %v1170 = vmul.f32 %v1135, %v1059
        %v1171 = vmul.f32 %v1137, %v1060
        %v1172 = vmul.f32 %v1139, %v1061
        %v1173 = vmul.f32 %v1141, %v1062
        %v1174 = vadd.f32 %v1166, %v1157
        %v1175 = vadd.f32 %v1167, %v1157
        %v1176 = vadd.f32 %v1168, %v1157
        %v1177 = vadd.f32 %v1169, %v1157
        %v1178 = vadd.f32 %v1170, %v1157
        %v1179 = vadd.f32 %v1171, %v1157
        %v1180 = vadd.f32 %v1172, %v1157
        %v1181 = vadd.f32 %v1173, %v1157
        %1182 = vst [vmem:[#allocation4] sm:$0xff] %v1174
        %1183 = vst [vmem:[#allocation4 + $0x8] sm:$0xff] %v1175
        %1184 = vst [vmem:[#allocation4 + $0x10] sm:$0xff] %v1176
        %1185 = vst [vmem:[#allocation4 + $0x18] sm:$0xff] %v1177
        %1186 = vst [vmem:[#allocation4 + $0x20] sm:$0xff] %v1178
        %1187 = vst [vmem:[#allocation4 + $0x28] sm:$0xff] %v1179
        %1188 = vst [vmem:[#allocation4 + $0x30] sm:$0xff] %v1180
        %1189 = vst [vmem:[#allocation4 + $0x38] sm:$0xff] %v1181
        %1190 = vadd.xlane.f32.xlu0 %v1111
        %v1191 = vpop.xlane.xlu0 %1190
        %1192 = vadd.xlane.f32.xlu0 %v1113
        %v1193 = vpop.xlane.xlu0 %1192
        %1194 = vadd.xlane.f32.xlu0 %v1115
        %v1195 = vpop.xlane.xlu0 %1194
        %1196 = vadd.xlane.f32.xlu0 %v1117
        %v1197 = vpop.xlane.xlu0 %1196
        %1198 = vadd.xlane.f32.xlu0 %v1119
        %v1199 = vpop.xlane.xlu0 %1198
        %1200 = vadd.xlane.f32.xlu0 %v1121
        %v1201 = vpop.xlane.xlu0 %1200
        %1202 = vadd.xlane.f32.xlu0 %v1123
        %v1203 = vpop.xlane.xlu0 %1202
        %1204 = vadd.xlane.f32.xlu0 %v1125
        %v1205 = vpop.xlane.xlu0 %1204
        %v1206 = vrcp.pop 128.0
        %v1207 = vmul.f32 %v1191, %v1206
        %v1208 = vmul.f32 %v1193, %v1206
        %v1209 = vmul.f32 %v1195, %v1206
        %v1210 = vmul.f32 %v1197, %v1206
        %v1211 = vmul.f32 %v1199, %v1206
        %v1212 = vmul.f32 %v1201, %v1206
        %v1213 = vmul.f32 %v1203, %v1206
        %v1214 = vmul.f32 %v1205, %v1206
        %vm1215 = vcmask 7168
        %1216 = vst.msk [vmem:[#allocation5] sm:$0xff] %vm1215, %v1207
        %1217 = vst.msk [vmem:[#allocation5 + $0x8] sm:$0xff] %vm1215, %v1208
        %1218 = vst.msk [vmem:[#allocation5 + $0x10] sm:$0xff] %vm1215, %v1209
        %1219 = vst.msk [vmem:[#allocation5 + $0x18] sm:$0xff] %vm1215, %v1210
        %1220 = vst.msk [vmem:[#allocation5 + $0x20] sm:$0xff] %vm1215, %v1211
        %1221 = vst.msk [vmem:[#allocation5 + $0x28] sm:$0xff] %vm1215, %v1212
        %1222 = vst.msk [vmem:[#allocation5 + $0x30] sm:$0xff] %vm1215, %v1213
        %1223 = vst.msk [vmem:[#allocation5 + $0x38] sm:$0xff] %vm1215, %v1214
        %1224 = vadd.xlane.f32.xlu0 %v1127
        %v1225 = vpop.xlane.xlu0 %1224
        %1226 = vadd.xlane.f32.xlu0 %v1129
        %v1227 = vpop.xlane.xlu0 %1226
        %1228 = vadd.xlane.f32.xlu0 %v1131
        %v1229 = vpop.xlane.xlu0 %1228
        %1230 = vadd.xlane.f32.xlu0 %v1133
        %v1231 = vpop.xlane.xlu0 %1230
        %1232 = vadd.xlane.f32.xlu0 %v1135
        %v1233 = vpop.xlane.xlu0 %1232
        %1234 = vadd.xlane.f32.xlu0 %v1137
        %v1235 = vpop.xlane.xlu0 %1234
        %1236 = vadd.xlane.f32.xlu0 %v1139
        %v1237 = vpop.xlane.xlu0 %1236
        %1238 = vadd.xlane.f32.xlu0 %v1141
        %v1239 = vpop.xlane.xlu0 %1238
        %1240 = vst.msk [vmem:[#allocation6] sm:$0xff] %vm1215, %v1225
        %1241 = vst.msk [vmem:[#allocation6 + $0x8] sm:$0xff] %vm1215, %v1227
        %1242 = vst.msk [vmem:[#allocation6 + $0x10] sm:$0xff] %vm1215, %v1229
        %1243 = vst.msk [vmem:[#allocation6 + $0x18] sm:$0xff] %vm1215, %v1231
        %1244 = vst.msk [vmem:[#allocation6 + $0x20] sm:$0xff] %vm1215, %v1233
        %1245 = vst.msk [vmem:[#allocation6 + $0x28] sm:$0xff] %vm1215, %v1235
        %1246 = vst.msk [vmem:[#allocation6 + $0x30] sm:$0xff] %vm1215, %v1237
        %1247 = vst.msk [vmem:[#allocation6 + $0x38] sm:$0xff] %vm1215, %v1239
        %v1248 = vld [vmem:[#allocation5] sm:$0xff]
        %v1249 = vmul.f32 %v1248, 0.0
        %v1250 = vld [vmem:[#allocation6] sm:$0xff]
        %v1251 = vadd.f32 %v1249, %v1250
        %v1252 = vld [vmem:[#allocation3] sm:$0xff]
        %v1253 = vmul.f32 %v1252, 0.0
        %v1254 = vld [vmem:[#allocation4] sm:$0xff]
        %v1255 = vadd.f32 %v1253, %v1254
        %v1256 = vadd.f32 %v1251, 1e-08
        %v1257 = vrcp.pop %v1256
        %v1258 = vmul.f32 %v1256, %v1257
        %v1259 = vsub.f32 2.0, %v1258
        %v1260 = vmul.f32 %v1257, %v1259
        %1262 = vset.pattern.permute.xlu0 0
        %1263 = vperm.xlu0 %1262, %v1260
        %v1264 = vpop.permute.xlu0 %1263
        %v1266 = vmul.f32 %v1255, %v1264
        %1267 = vst [vmem:[#allocation4] sm:$0xff] %v1266
        %s1268 = scalar_lea.vmem [#allocation5], 8
        %v1269 = vld [vmem:[%s1268] sm:$0xff]
        %v1270 = vmul.f32 %v1269, %v1251
        %s1271 = scalar_lea.vmem [#allocation6], 8
        %v1272 = vld [vmem:[%s1271] sm:$0xff]
        %v1273 = vadd.f32 %v1270, %v1272
        %s1274 = scalar_lea.vmem [#allocation3], 8
        %v1275 = vld [vmem:[%s1274] sm:$0xff]
        %v1276 = vmul.f32 %v1275, %v1255
        %s1277 = scalar_lea.vmem [#allocation4], 8
        %v1278 = vld [vmem:[%s1277] sm:$0xff]
        %v1279 = vadd.f32 %v1276, %v1278
        %v1280 = vadd.f32 %v1273, 1e-08
        %v1281 = vrcp.pop %v1280
        %v1282 = vmul.f32 %v1280, %v1281
        %v1283 = vsub.f32 2.0, %v1282
        %v1284 = vmul.f32 %v1281, %v1283
        %1286 = vset.pattern.permute.xlu0 0
        %1287 = vperm.xlu0 %1286, %v1284
        %v1288 = vpop.permute.xlu0 %1287
        %v1290 = vmul.f32 %v1279, %v1288
        %1291 = vst [vmem:[%s1277] sm:$0xff] %v1290
        %s1292 = scalar_lea.vmem [#allocation5], 16
        %v1293 = vld [vmem:[%s1292] sm:$0xff]
        %v1294 = vmul.f32 %v1293, %v1273
        %s1295 = scalar_lea.vmem [#allocation6], 16
        %v1296 = vld [vmem:[%s1295] sm:$0xff]
        %v1297 = vadd.f32 %v1294, %v1296
        %s1298 = scalar_lea.vmem [#allocation3], 16
        %v1299 = vld [vmem:[%s1298] sm:$0xff]
        %v1300 = vmul.f32 %v1299, %v1279
        %s1301 = scalar_lea.vmem [#allocation4], 16
        %v1302 = vld [vmem:[%s1301] sm:$0xff]
        %v1303 = vadd.f32 %v1300, %v1302
        %v1304 = vadd.f32 %v1297, 1e-08
        %v1305 = vrcp.pop %v1304
        %v1306 = vmul.f32 %v1304, %v1305
        %v1307 = vsub.f32 2.0, %v1306
        %v1308 = vmul.f32 %v1305, %v1307
        %1310 = vset.pattern.permute.xlu0 0
        %1311 = vperm.xlu0 %1310, %v1308
        %v1312 = vpop.permute.xlu0 %1311
        %v1314 = vmul.f32 %v1303, %v1312
        %1315 = vst [vmem:[%s1301] sm:$0xff] %v1314
        %s1316 = scalar_lea.vmem [#allocation5], 24
        %v1317 = vld [vmem:[%s1316] sm:$0xff]
        %v1318 = vmul.f32 %v1317, %v1297
        %s1319 = scalar_lea.vmem [#allocation6], 24
        %v1320 = vld [vmem:[%s1319] sm:$0xff]
        %v1321 = vadd.f32 %v1318, %v1320
        %s1322 = scalar_lea.vmem [#allocation3], 24
        %v1323 = vld [vmem:[%s1322] sm:$0xff]
        %v1324 = vmul.f32 %v1323, %v1303
        %s1325 = scalar_lea.vmem [#allocation4], 24
        %v1326 = vld [vmem:[%s1325] sm:$0xff]
        %v1327 = vadd.f32 %v1324, %v1326
        %v1328 = vadd.f32 %v1321, 1e-08
        %v1329 = vrcp.pop %v1328
        %v1330 = vmul.f32 %v1328, %v1329
        %v1331 = vsub.f32 2.0, %v1330
        %v1332 = vmul.f32 %v1329, %v1331
        %1334 = vset.pattern.permute.xlu0 0
        %1335 = vperm.xlu0 %1334, %v1332
        %v1336 = vpop.permute.xlu0 %1335
        %v1338 = vmul.f32 %v1327, %v1336
        %1339 = vst [vmem:[%s1325] sm:$0xff] %v1338
        %s1340 = scalar_lea.vmem [#allocation5], 32
        %v1341 = vld [vmem:[%s1340] sm:$0xff]
        %v1342 = vmul.f32 %v1341, %v1321
        %s1343 = scalar_lea.vmem [#allocation6], 32
        %v1344 = vld [vmem:[%s1343] sm:$0xff]
        %v1345 = vadd.f32 %v1342, %v1344
        %s1346 = scalar_lea.vmem [#allocation3], 32
        %v1347 = vld [vmem:[%s1346] sm:$0xff]
        %v1348 = vmul.f32 %v1347, %v1327
        %s1349 = scalar_lea.vmem [#allocation4], 32
        %v1350 = vld [vmem:[%s1349] sm:$0xff]
        %v1351 = vadd.f32 %v1348, %v1350
        %v1352 = vadd.f32 %v1345, 1e-08
        %v1353 = vrcp.pop %v1352
        %v1354 = vmul.f32 %v1352, %v1353
        %v1355 = vsub.f32 2.0, %v1354
        %v1356 = vmul.f32 %v1353, %v1355
        %1358 = vset.pattern.permute.xlu0 0
        %1359 = vperm.xlu0 %1358, %v1356
        %v1360 = vpop.permute.xlu0 %1359
        %v1362 = vmul.f32 %v1351, %v1360
        %1363 = vst [vmem:[%s1349] sm:$0xff] %v1362
        %s1364 = scalar_lea.vmem [#allocation5], 40
        %v1365 = vld [vmem:[%s1364] sm:$0xff]
        %v1366 = vmul.f32 %v1365, %v1345
        %s1367 = scalar_lea.vmem [#allocation6], 40
        %v1368 = vld [vmem:[%s1367] sm:$0xff]
        %v1369 = vadd.f32 %v1366, %v1368
        %s1370 = scalar_lea.vmem [#allocation3], 40
        %v1371 = vld [vmem:[%s1370] sm:$0xff]
        %v1372 = vmul.f32 %v1371, %v1351
        %s1373 = scalar_lea.vmem [#allocation4], 40
        %v1374 = vld [vmem:[%s1373] sm:$0xff]
        %v1375 = vadd.f32 %v1372, %v1374
        %v1376 = vadd.f32 %v1369, 1e-08
        %v1377 = vrcp.pop %v1376
        %v1378 = vmul.f32 %v1376, %v1377
        %v1379 = vsub.f32 2.0, %v1378
        %v1380 = vmul.f32 %v1377, %v1379
        %1382 = vset.pattern.permute.xlu0 0
        %1383 = vperm.xlu0 %1382, %v1380
        %v1384 = vpop.permute.xlu0 %1383
        %v1386 = vmul.f32 %v1375, %v1384
        %1387 = vst [vmem:[%s1373] sm:$0xff] %v1386
        %s1388 = scalar_lea.vmem [#allocation5], 48
        %v1389 = vld [vmem:[%s1388] sm:$0xff]
        %v1390 = vmul.f32 %v1389, %v1369
        %s1391 = scalar_lea.vmem [#allocation6], 48
        %v1392 = vld [vmem:[%s1391] sm:$0xff]
        %v1393 = vadd.f32 %v1390, %v1392
        %s1394 = scalar_lea.vmem [#allocation3], 48
        %v1395 = vld [vmem:[%s1394] sm:$0xff]
        %v1396 = vmul.f32 %v1395, %v1375
        %s1397 = scalar_lea.vmem [#allocation4], 48
        %v1398 = vld [vmem:[%s1397] sm:$0xff]
        %v1399 = vadd.f32 %v1396, %v1398
        %v1400 = vadd.f32 %v1393, 1e-08
        %v1401 = vrcp.pop %v1400
        %v1402 = vmul.f32 %v1400, %v1401
        %v1403 = vsub.f32 2.0, %v1402
        %v1404 = vmul.f32 %v1401, %v1403
        %1406 = vset.pattern.permute.xlu0 0
        %1407 = vperm.xlu0 %1406, %v1404
        %v1408 = vpop.permute.xlu0 %1407
        %v1410 = vmul.f32 %v1399, %v1408
        %1411 = vst [vmem:[%s1397] sm:$0xff] %v1410
        %s1412 = scalar_lea.vmem [#allocation5], 56
        %v1413 = vld [vmem:[%s1412] sm:$0xff]
        %v1414 = vmul.f32 %v1413, %v1393
        %s1415 = scalar_lea.vmem [#allocation6], 56
        %v1416 = vld [vmem:[%s1415] sm:$0xff]
        %v1417 = vadd.f32 %v1414, %v1416
        %s1418 = scalar_lea.vmem [#allocation3], 56
        %v1419 = vld [vmem:[%s1418] sm:$0xff]
        %v1420 = vmul.f32 %v1419, %v1399
        %s1421 = scalar_lea.vmem [#allocation4], 56
        %v1422 = vld [vmem:[%s1421] sm:$0xff]
        %v1423 = vadd.f32 %v1420, %v1422
        %v1424 = vadd.f32 %v1417, 1e-08
        %v1425 = vrcp.pop %v1424
        %v1426 = vmul.f32 %v1424, %v1425
        %v1427 = vsub.f32 2.0, %v1426
        %v1428 = vmul.f32 %v1425, %v1427
        %1430 = vset.pattern.permute.xlu0 0
        %1431 = vperm.xlu0 %1430, %v1428
        %v1432 = vpop.permute.xlu0 %1431
        %v1434 = vmul.f32 %v1423, %v1432
        %1435 = vst [vmem:[%s1421] sm:$0xff] %v1434
        %v1436 = vld [vmem:[#allocation4] sm:$0xff]
        %v1437 = vld [vmem:[#allocation4 + $0x8] sm:$0xff]
        %v1438 = vld [vmem:[#allocation4 + $0x10] sm:$0xff]
        %v1439 = vld [vmem:[#allocation4 + $0x18] sm:$0xff]
        %v1440 = vld [vmem:[#allocation4 + $0x20] sm:$0xff]
        %v1441 = vld [vmem:[#allocation4 + $0x28] sm:$0xff]
        %v1442 = vld [vmem:[#allocation4 + $0x30] sm:$0xff]
        %v1443 = vld [vmem:[#allocation4 + $0x38] sm:$0xff]
        %v1444 = vld [vmem:[%s6] sm:$0x1]
        %v1445 = vld [vmem:[%s7] sm:$0x1]
        %1446 = vadd.xlane.f32.xlu0 %v1436
        %v1447 = vpop.xlane.xlu0 %1446
        %1448 = vadd.xlane.f32.xlu0 %v1437
        %v1449 = vpop.xlane.xlu0 %1448
        %1450 = vadd.xlane.f32.xlu0 %v1438
        %v1451 = vpop.xlane.xlu0 %1450
        %1452 = vadd.xlane.f32.xlu0 %v1439
        %v1453 = vpop.xlane.xlu0 %1452
        %1454 = vadd.xlane.f32.xlu0 %v1440
        %v1455 = vpop.xlane.xlu0 %1454
        %1456 = vadd.xlane.f32.xlu0 %v1441
        %v1457 = vpop.xlane.xlu0 %1456
        %1458 = vadd.xlane.f32.xlu0 %v1442
        %v1459 = vpop.xlane.xlu0 %1458
        %1460 = vadd.xlane.f32.xlu0 %v1443
        %v1461 = vpop.xlane.xlu0 %1460
        %v1462 = vmul.f32 %v1436, %v1436
        %v1463 = vmul.f32 %v1437, %v1437
        %v1464 = vmul.f32 %v1438, %v1438
        %v1465 = vmul.f32 %v1439, %v1439
        %v1466 = vmul.f32 %v1440, %v1440
        %v1467 = vmul.f32 %v1441, %v1441
        %v1468 = vmul.f32 %v1442, %v1442
        %v1469 = vmul.f32 %v1443, %v1443
        %1470 = vadd.xlane.f32.xlu0 %v1462
        %v1471 = vpop.xlane.xlu0 %1470
        %1472 = vadd.xlane.f32.xlu0 %v1463
        %v1473 = vpop.xlane.xlu0 %1472
        %1474 = vadd.xlane.f32.xlu0 %v1464
        %v1475 = vpop.xlane.xlu0 %1474
        %1476 = vadd.xlane.f32.xlu0 %v1465
        %v1477 = vpop.xlane.xlu0 %1476
        %1478 = vadd.xlane.f32.xlu0 %v1466
        %v1479 = vpop.xlane.xlu0 %1478
        %1480 = vadd.xlane.f32.xlu0 %v1467
        %v1481 = vpop.xlane.xlu0 %1480
        %1482 = vadd.xlane.f32.xlu0 %v1468
        %v1483 = vpop.xlane.xlu0 %1482
        %1484 = vadd.xlane.f32.xlu0 %v1469
        %v1485 = vpop.xlane.xlu0 %1484
        %v1486 = vmul.f32 %v1447, 0.0078125
        %v1487 = vmul.f32 %v1449, 0.0078125
        %v1488 = vmul.f32 %v1451, 0.0078125
        %v1489 = vmul.f32 %v1453, 0.0078125
        %v1490 = vmul.f32 %v1455, 0.0078125
        %v1491 = vmul.f32 %v1457, 0.0078125
        %v1492 = vmul.f32 %v1459, 0.0078125
        %v1493 = vmul.f32 %v1461, 0.0078125
        %v1494 = vmul.f32 %v1471, 0.0078125
        %v1495 = vmul.f32 %v1473, 0.0078125
        %v1496 = vmul.f32 %v1475, 0.0078125
        %v1497 = vmul.f32 %v1477, 0.0078125
        %v1498 = vmul.f32 %v1479, 0.0078125
        %v1499 = vmul.f32 %v1481, 0.0078125
        %v1500 = vmul.f32 %v1483, 0.0078125
        %v1501 = vmul.f32 %v1485, 0.0078125
        %v1502 = vmul.f32 %v1486, %v1486
        %v1503 = vmul.f32 %v1487, %v1487
        %v1504 = vmul.f32 %v1488, %v1488
        %v1505 = vmul.f32 %v1489, %v1489
        %v1506 = vmul.f32 %v1490, %v1490
        %v1507 = vmul.f32 %v1491, %v1491
        %v1508 = vmul.f32 %v1492, %v1492
        %v1509 = vmul.f32 %v1493, %v1493
        %v1510 = vsub.f32 %v1494, %v1502
        %v1511 = vsub.f32 %v1495, %v1503
        %v1512 = vsub.f32 %v1496, %v1504
        %v1513 = vsub.f32 %v1497, %v1505
        %v1514 = vsub.f32 %v1498, %v1506
        %v1515 = vsub.f32 %v1499, %v1507
        %v1516 = vsub.f32 %v1500, %v1508
        %v1517 = vsub.f32 %v1501, %v1509
        %v1518 = vmax.f32 %v1510, 0.0
        %v1519 = vmax.f32 %v1511, 0.0
        %v1520 = vmax.f32 %v1512, 0.0
        %v1521 = vmax.f32 %v1513, 0.0
        %v1522 = vmax.f32 %v1514, 0.0
        %v1523 = vmax.f32 %v1515, 0.0
        %v1524 = vmax.f32 %v1516, 0.0
        %v1525 = vmax.f32 %v1517, 0.0
        %v1526 = vsub.f32 %v1436, %v1486
        %v1527 = vsub.f32 %v1437, %v1487
        %v1528 = vsub.f32 %v1438, %v1488
        %v1529 = vsub.f32 %v1439, %v1489
        %v1530 = vsub.f32 %v1440, %v1490
        %v1531 = vsub.f32 %v1441, %v1491
        %v1532 = vsub.f32 %v1442, %v1492
        %v1533 = vsub.f32 %v1443, %v1493
        %v1534 = vadd.f32 %v1518, 1e-05
        %v1535 = vadd.f32 %v1519, 1e-05
        %v1536 = vadd.f32 %v1520, 1e-05
        %v1537 = vadd.f32 %v1521, 1e-05
        %v1538 = vadd.f32 %v1522, 1e-05
        %v1539 = vadd.f32 %v1523, 1e-05
        %v1540 = vadd.f32 %v1524, 1e-05
        %v1541 = vadd.f32 %v1525, 1e-05
        %v1542 = vrsqrt.pop %v1534
        %v1543 = vrsqrt.pop %v1535
        %v1544 = vrsqrt.pop %v1536
        %v1545 = vrsqrt.pop %v1537
        %v1546 = vrsqrt.pop %v1538
        %v1547 = vrsqrt.pop %v1539
        %v1548 = vrsqrt.pop %v1540
        %v1549 = vrsqrt.pop %v1541
        %v1550 = vmul.f32 %v1526, %v1542
        %v1551 = vmul.f32 %v1527, %v1543
        %v1552 = vmul.f32 %v1528, %v1544
        %v1553 = vmul.f32 %v1529, %v1545
        %v1554 = vmul.f32 %v1530, %v1546
        %v1555 = vmul.f32 %v1531, %v1547
        %v1556 = vmul.f32 %v1532, %v1548
        %v1557 = vmul.f32 %v1533, %v1549
        %v1559 = vlaneseq
        %v1560 = vshrl.u32 %v1559, 7
        %v1561 = vsub.s32 0, %v1560
        %v1562 = vrot.slane %v1444, %v1561
        %v1564 = vmul.f32 %v1550, %v1562
        %v1565 = vmul.f32 %v1551, %v1562
        %v1566 = vmul.f32 %v1552, %v1562
        %v1567 = vmul.f32 %v1553, %v1562
        %v1568 = vmul.f32 %v1554, %v1562
        %v1569 = vmul.f32 %v1555, %v1562
        %v1570 = vmul.f32 %v1556, %v1562
        %v1571 = vmul.f32 %v1557, %v1562
        %v1573 = vlaneseq
        %v1574 = vshrl.u32 %v1573, 7
        %v1575 = vsub.s32 0, %v1574
        %v1576 = vrot.slane %v1445, %v1575
        %v1578 = vadd.f32 %v1564, %v1576
        %v1579 = vadd.f32 %v1565, %v1576
        %v1580 = vadd.f32 %v1566, %v1576
        %v1581 = vadd.f32 %v1567, %v1576
        %v1582 = vadd.f32 %v1568, %v1576
        %v1583 = vadd.f32 %v1569, %v1576
        %v1584 = vadd.f32 %v1570, %v1576
        %v1585 = vadd.f32 %v1571, %v1576
        %v1586 = vld [vmem:[#allocation14] sm:$0xff]
        %v1587 = vld [vmem:[#allocation14 + $0x8] sm:$0xff]
        %v1588 = vld [vmem:[#allocation14 + $0x10] sm:$0xff]
        %v1589 = vld [vmem:[#allocation14 + $0x18] sm:$0xff]
        %v1590 = vld [vmem:[#allocation14 + $0x20] sm:$0xff]
        %v1591 = vld [vmem:[#allocation14 + $0x28] sm:$0xff]
        %v1592 = vld [vmem:[#allocation14 + $0x30] sm:$0xff]
        %v1593 = vld [vmem:[#allocation14 + $0x38] sm:$0xff]
        %v1594 = vld [vmem:[#allocation14 + $0x40] sm:$0xff]
        %v1595 = vld [vmem:[#allocation14 + $0x48] sm:$0xff]
        %v1596 = vld [vmem:[#allocation14 + $0x50] sm:$0xff]
        %v1597 = vld [vmem:[#allocation14 + $0x58] sm:$0xff]
        %v1598 = vld [vmem:[#allocation14 + $0x60] sm:$0xff]
        %v1599 = vld [vmem:[#allocation14 + $0x68] sm:$0xff]
        %v1600 = vld [vmem:[#allocation14 + $0x70] sm:$0xff]
        %v1601 = vld [vmem:[#allocation14 + $0x78] sm:$0xff]
        %v1602 = vld [vmem:[#allocation14 + $0x80] sm:$0xff]
        %v1603 = vld [vmem:[#allocation14 + $0x88] sm:$0xff]
        %v1604 = vld [vmem:[#allocation14 + $0x90] sm:$0xff]
        %v1605 = vld [vmem:[#allocation14 + $0x98] sm:$0xff]
        %v1606 = vld [vmem:[#allocation14 + $0xa0] sm:$0xff]
        %v1607 = vld [vmem:[#allocation14 + $0xa8] sm:$0xff]
        %v1608 = vld [vmem:[#allocation14 + $0xb0] sm:$0xff]
        %v1609 = vld [vmem:[#allocation14 + $0xb8] sm:$0xff]
        %v1610 = vld [vmem:[#allocation14 + $0xc0] sm:$0xff]
        %v1611 = vld [vmem:[#allocation14 + $0xc8] sm:$0xff]
        %v1612 = vld [vmem:[#allocation14 + $0xd0] sm:$0xff]
        %v1613 = vld [vmem:[#allocation14 + $0xd8] sm:$0xff]
        %v1614 = vld [vmem:[#allocation14 + $0xe0] sm:$0xff]
        %v1615 = vld [vmem:[#allocation14 + $0xe8] sm:$0xff]
        %v1616 = vld [vmem:[#allocation14 + $0xf0] sm:$0xff]
        %v1617 = vld [vmem:[#allocation14 + $0xf8] sm:$0xff]
        %v1618 = vld [vmem:[%s9] sm:$0x3]
        %v1620 = vlaneseq
        %v1621 = vshrl.u32 %v1620, 7
        %v1622 = vsub.s32 0, %v1621
        %v1623 = vrot.slane %v1618, %v1622
        %v1624 = vlaneseq
        %v1625 = vshrl.u32 %v1624, 7
        %v1626 = vsub.s32 1, %v1625
        %v1627 = vrot.slane %v1618, %v1626
        %1630 = vmatprep.subr.mxu0 %v1617
        %1631 = vmatpush1.msra.mxu0 %v1616
        %1632 = vmatprep.subr.mxu0 %v1615
        %1633 = vmatpush1.msra.mxu0 %v1614
        %1634 = vmatprep.subr.mxu0 %v1613
        %1635 = vmatpush1.msra.mxu0 %v1612
        %1636 = vmatprep.subr.mxu0 %v1611
        %1637 = vmatpush1.msra.mxu0 %v1610
        %1638 = vmatprep.subr.mxu0 %v1609
        %1639 = vmatpush1.msra.mxu0 %v1608
        %1640 = vmatprep.subr.mxu0 %v1607
        %1641 = vmatpush1.msra.mxu0 %v1606
        %1642 = vmatprep.subr.mxu0 %v1605
        %1643 = vmatpush1.msra.mxu0 %v1604
        %1644 = vmatprep.subr.mxu0 %v1603
        %1645 = vmatpush1.msra.mxu0 %v1602
        %1646 = vmatprep.subr.mxu0 %v1601
        %1647 = vmatpush1.msra.mxu0 %v1600
        %1648 = vmatprep.subr.mxu0 %v1599
        %1649 = vmatpush1.msra.mxu0 %v1598
        %1650 = vmatprep.subr.mxu0 %v1597
        %1651 = vmatpush1.msra.mxu0 %v1596
        %1652 = vmatprep.subr.mxu0 %v1595
        %1653 = vmatpush1.msra.mxu0 %v1594
        %1654 = vmatprep.subr.mxu0 %v1593
        %1655 = vmatpush1.msra.mxu0 %v1592
        %1656 = vmatprep.subr.mxu0 %v1591
        %1657 = vmatpush1.msra.mxu0 %v1590
        %1658 = vmatprep.subr.mxu0 %v1589
        %1659 = vmatpush1.msra.mxu0 %v1588
        %1660 = vmatprep.subr.mxu0 %v1587
        %1661 = vmatpush1.msra.mxu0 %v1586
        %1662 = vmatprep.subr.mxu0 0.0
        %1663 = vmatpush2.msra.mxu0 0.0
        %1664 = vmatprep.subr.mxu0 0.0
        %1665 = vmatpush2.msra.mxu0 0.0
        %1666 = vmatprep.subr.mxu0 0.0
        %1667 = vmatpush2.msra.mxu0 0.0
        %1668 = vmatprep.subr.mxu0 0.0
        %1669 = vmatpush2.msra.mxu0 0.0
        %1670 = vmatprep.subr.mxu0 0.0
        %1671 = vmatpush2.msra.mxu0 0.0
        %1672 = vmatprep.subr.mxu0 0.0
        %1673 = vmatpush2.msra.mxu0 0.0
        %1674 = vmatprep.subr.mxu0 0.0
        %1675 = vmatpush2.msra.mxu0 0.0
        %1676 = vmatprep.subr.mxu0 0.0
        %1677 = vmatpush2.msra.mxu0 0.0
        %1678 = vmatprep.subr.mxu0 0.0
        %1679 = vmatpush2.msra.mxu0 0.0
        %1680 = vmatprep.subr.mxu0 0.0
        %1681 = vmatpush2.msra.mxu0 0.0
        %1682 = vmatprep.subr.mxu0 0.0
        %1683 = vmatpush2.msra.mxu0 0.0
        %1684 = vmatprep.subr.mxu0 0.0
        %1685 = vmatpush2.msra.mxu0 0.0
        %1686 = vmatprep.subr.mxu0 0.0
        %1687 = vmatpush2.msra.mxu0 0.0
        %1688 = vmatprep.subr.mxu0 0.0
        %1689 = vmatpush2.msra.mxu0 0.0
        %1690 = vmatprep.subr.mxu0 0.0
        %1691 = vmatpush2.msra.mxu0 0.0
        %1692 = vmatprep.subr.mxu0 0.0
        %1693 = vmatpush2.msra.mxu0 0.0
        %1694 = vmatprep.mubr.f32.mxu0 0.0
        %1695 = vmatmul.mubr.f32.gmra.mxu0 %v1578
        %v1696 = vpop.f32.mrf.mxu0
        %v1697 = vadd.f32 %v1623, %v1696
        %v1698 = vpop.f32.mrf.mxu0
        %v1699 = vadd.f32 %v1627, %v1698
        %1700 = vmatprep.mubr.f32.mxu0 0.0
        %1701 = vmatmul.mubr.f32.gmra.mxu0 %v1579
        %v1702 = vpop.f32.mrf.mxu0
        %v1703 = vadd.f32 %v1623, %v1702
        %v1704 = vpop.f32.mrf.mxu0
        %v1705 = vadd.f32 %v1627, %v1704
        %1706 = vmatprep.mubr.f32.mxu0 0.0
        %1707 = vmatmul.mubr.f32.gmra.mxu0 %v1580
        %v1708 = vpop.f32.mrf.mxu0
        %v1709 = vadd.f32 %v1623, %v1708
        %v1710 = vpop.f32.mrf.mxu0
        %v1711 = vadd.f32 %v1627, %v1710
        %1712 = vmatprep.mubr.f32.mxu0 0.0
        %1713 = vmatmul.mubr.f32.gmra.mxu0 %v1581
        %v1714 = vpop.f32.mrf.mxu0
        %v1715 = vadd.f32 %v1623, %v1714
        %v1716 = vpop.f32.mrf.mxu0
        %v1717 = vadd.f32 %v1627, %v1716
        %1718 = vmatprep.mubr.f32.mxu0 0.0
        %1719 = vmatmul.mubr.f32.gmra.mxu0 %v1582
        %v1720 = vpop.f32.mrf.mxu0
        %v1721 = vadd.f32 %v1623, %v1720
        %v1722 = vpop.f32.mrf.mxu0
        %v1723 = vadd.f32 %v1627, %v1722
        %1724 = vmatprep.mubr.f32.mxu0 0.0
        %1725 = vmatmul.mubr.f32.gmra.mxu0 %v1583
        %v1726 = vpop.f32.mrf.mxu0
        %v1727 = vadd.f32 %v1623, %v1726
        %v1728 = vpop.f32.mrf.mxu0
        %v1729 = vadd.f32 %v1627, %v1728
        %1730 = vmatprep.mubr.f32.mxu0 0.0
        %1731 = vmatmul.mubr.f32.gmra.mxu0 %v1584
        %v1732 = vpop.f32.mrf.mxu0
        %v1733 = vadd.f32 %v1623, %v1732
        %v1734 = vpop.f32.mrf.mxu0
        %v1735 = vadd.f32 %v1627, %v1734
        %1736 = vmatprep.mubr.f32.mxu0 0.0
        %1737 = vmatmul.mubr.f32.gmra.mxu0 %v1585
        %v1738 = vpop.f32.mrf.mxu0
        %v1739 = vadd.f32 %v1623, %v1738
        %v1740 = vpop.f32.mrf.mxu0
        %v1741 = vadd.f32 %v1627, %v1740
        %1742 = vdwg.mxu0
        %v1743 = vxor.u32 %v1697, 2147483648
        %v1744 = vxor.u32 %v1703, 2147483648
        %v1745 = vxor.u32 %v1709, 2147483648
        %v1746 = vxor.u32 %v1715, 2147483648
        %v1747 = vxor.u32 %v1721, 2147483648
        %v1748 = vxor.u32 %v1727, 2147483648
        %v1749 = vxor.u32 %v1733, 2147483648
        %v1750 = vxor.u32 %v1739, 2147483648
        %v1751 = vmul.f32 %v1743, 1.442695
        %v1752 = vpow.pop %v1751
        %v1753 = vmul.f32 %v1744, 1.442695
        %v1754 = vpow.pop %v1753
        %v1755 = vmul.f32 %v1745, 1.442695
        %v1756 = vpow.pop %v1755
        %v1757 = vmul.f32 %v1746, 1.442695
        %v1758 = vpow.pop %v1757
        %v1759 = vmul.f32 %v1747, 1.442695
        %v1760 = vpow.pop %v1759
        %v1761 = vmul.f32 %v1748, 1.442695
        %v1762 = vpow.pop %v1761
        %v1763 = vmul.f32 %v1749, 1.442695
        %v1764 = vpow.pop %v1763
        %v1765 = vmul.f32 %v1750, 1.442695
        %v1766 = vpow.pop %v1765
        %v1767 = vadd.f32 %v1752, 1.0
        %v1768 = vadd.f32 %v1754, 1.0
        %v1769 = vadd.f32 %v1756, 1.0
        %v1770 = vadd.f32 %v1758, 1.0
        %v1771 = vadd.f32 %v1760, 1.0
        %v1772 = vadd.f32 %v1762, 1.0
        %v1773 = vadd.f32 %v1764, 1.0
        %v1774 = vadd.f32 %v1766, 1.0
        %v1775 = vrcp.pop %v1767
        %v1776 = vmul.f32 1.0, %v1775
        %v1777 = vrcp.pop %v1768
        %v1778 = vmul.f32 1.0, %v1777
        %v1779 = vrcp.pop %v1769
        %v1780 = vmul.f32 1.0, %v1779
        %v1781 = vrcp.pop %v1770
        %v1782 = vmul.f32 1.0, %v1781
        %v1783 = vrcp.pop %v1771
        %v1784 = vmul.f32 1.0, %v1783
        %v1785 = vrcp.pop %v1772
        %v1786 = vmul.f32 1.0, %v1785
        %v1787 = vrcp.pop %v1773
        %v1788 = vmul.f32 1.0, %v1787
        %v1789 = vrcp.pop %v1774
        %v1790 = vmul.f32 1.0, %v1789
        %v1791 = vmul.f32 %v1776, %v1699
        %v1792 = vmul.f32 %v1778, %v1705
        %v1793 = vmul.f32 %v1780, %v1711
        %v1794 = vmul.f32 %v1782, %v1717
        %v1795 = vmul.f32 %v1784, %v1723
        %v1796 = vmul.f32 %v1786, %v1729
        %v1797 = vmul.f32 %v1788, %v1735
        %v1798 = vmul.f32 %v1790, %v1741
        %v1799 = vld [vmem:[%s10] sm:$0x1]
        %v1800 = vld [vmem:[%s11] sm:$0x1]
        %1801 = vadd.xlane.f32.xlu0 %v1791
        %v1802 = vpop.xlane.xlu0 %1801
        %1803 = vadd.xlane.f32.xlu0 %v1792
        %v1804 = vpop.xlane.xlu0 %1803
        %1805 = vadd.xlane.f32.xlu0 %v1793
        %v1806 = vpop.xlane.xlu0 %1805
        %1807 = vadd.xlane.f32.xlu0 %v1794
        %v1808 = vpop.xlane.xlu0 %1807
        %1809 = vadd.xlane.f32.xlu0 %v1795
        %v1810 = vpop.xlane.xlu0 %1809
        %1811 = vadd.xlane.f32.xlu0 %v1796
        %v1812 = vpop.xlane.xlu0 %1811
        %1813 = vadd.xlane.f32.xlu0 %v1797
        %v1814 = vpop.xlane.xlu0 %1813
        %1815 = vadd.xlane.f32.xlu0 %v1798
        %v1816 = vpop.xlane.xlu0 %1815
        %v1817 = vmul.f32 %v1791, %v1791
        %v1818 = vmul.f32 %v1792, %v1792
        %v1819 = vmul.f32 %v1793, %v1793
        %v1820 = vmul.f32 %v1794, %v1794
        %v1821 = vmul.f32 %v1795, %v1795
        %v1822 = vmul.f32 %v1796, %v1796
        %v1823 = vmul.f32 %v1797, %v1797
        %v1824 = vmul.f32 %v1798, %v1798
        %1825 = vadd.xlane.f32.xlu0 %v1817
        %v1826 = vpop.xlane.xlu0 %1825
        %1827 = vadd.xlane.f32.xlu0 %v1818
        %v1828 = vpop.xlane.xlu0 %1827
        %1829 = vadd.xlane.f32.xlu0 %v1819
        %v1830 = vpop.xlane.xlu0 %1829
        %1831 = vadd.xlane.f32.xlu0 %v1820
        %v1832 = vpop.xlane.xlu0 %1831
        %1833 = vadd.xlane.f32.xlu0 %v1821
        %v1834 = vpop.xlane.xlu0 %1833
        %1835 = vadd.xlane.f32.xlu0 %v1822
        %v1836 = vpop.xlane.xlu0 %1835
        %1837 = vadd.xlane.f32.xlu0 %v1823
        %v1838 = vpop.xlane.xlu0 %1837
        %1839 = vadd.xlane.f32.xlu0 %v1824
        %v1840 = vpop.xlane.xlu0 %1839
        %v1841 = vmul.f32 %v1802, 0.0078125
        %v1842 = vmul.f32 %v1804, 0.0078125
        %v1843 = vmul.f32 %v1806, 0.0078125
        %v1844 = vmul.f32 %v1808, 0.0078125
        %v1845 = vmul.f32 %v1810, 0.0078125
        %v1846 = vmul.f32 %v1812, 0.0078125
        %v1847 = vmul.f32 %v1814, 0.0078125
        %v1848 = vmul.f32 %v1816, 0.0078125
        %v1849 = vmul.f32 %v1826, 0.0078125
        %v1850 = vmul.f32 %v1828, 0.0078125
        %v1851 = vmul.f32 %v1830, 0.0078125
        %v1852 = vmul.f32 %v1832, 0.0078125
        %v1853 = vmul.f32 %v1834, 0.0078125
        %v1854 = vmul.f32 %v1836, 0.0078125
        %v1855 = vmul.f32 %v1838, 0.0078125
        %v1856 = vmul.f32 %v1840, 0.0078125
        %v1857 = vmul.f32 %v1841, %v1841
        %v1858 = vmul.f32 %v1842, %v1842
        %v1859 = vmul.f32 %v1843, %v1843
        %v1860 = vmul.f32 %v1844, %v1844
        %v1861 = vmul.f32 %v1845, %v1845
        %v1862 = vmul.f32 %v1846, %v1846
        %v1863 = vmul.f32 %v1847, %v1847
        %v1864 = vmul.f32 %v1848, %v1848
        %v1865 = vsub.f32 %v1849, %v1857
        %v1866 = vsub.f32 %v1850, %v1858
        %v1867 = vsub.f32 %v1851, %v1859
        %v1868 = vsub.f32 %v1852, %v1860
        %v1869 = vsub.f32 %v1853, %v1861
        %v1870 = vsub.f32 %v1854, %v1862
        %v1871 = vsub.f32 %v1855, %v1863
        %v1872 = vsub.f32 %v1856, %v1864
        %v1873 = vmax.f32 %v1865, 0.0
        %v1874 = vmax.f32 %v1866, 0.0
        %v1875 = vmax.f32 %v1867, 0.0
        %v1876 = vmax.f32 %v1868, 0.0
        %v1877 = vmax.f32 %v1869, 0.0
        %v1878 = vmax.f32 %v1870, 0.0
        %v1879 = vmax.f32 %v1871, 0.0
        %v1880 = vmax.f32 %v1872, 0.0
        %v1881 = vsub.f32 %v1791, %v1841
        %v1882 = vsub.f32 %v1792, %v1842
        %v1883 = vsub.f32 %v1793, %v1843
        %v1884 = vsub.f32 %v1794, %v1844
        %v1885 = vsub.f32 %v1795, %v1845
        %v1886 = vsub.f32 %v1796, %v1846
        %v1887 = vsub.f32 %v1797, %v1847
        %v1888 = vsub.f32 %v1798, %v1848
        %v1889 = vadd.f32 %v1873, 1e-05
        %v1890 = vadd.f32 %v1874, 1e-05
        %v1891 = vadd.f32 %v1875, 1e-05
        %v1892 = vadd.f32 %v1876, 1e-05
        %v1893 = vadd.f32 %v1877, 1e-05
        %v1894 = vadd.f32 %v1878, 1e-05
        %v1895 = vadd.f32 %v1879, 1e-05
        %v1896 = vadd.f32 %v1880, 1e-05
        %v1897 = vrsqrt.pop %v1889
        %v1898 = vrsqrt.pop %v1890
        %v1899 = vrsqrt.pop %v1891
        %v1900 = vrsqrt.pop %v1892
        %v1901 = vrsqrt.pop %v1893
        %v1902 = vrsqrt.pop %v1894
        %v1903 = vrsqrt.pop %v1895
        %v1904 = vrsqrt.pop %v1896
        %v1905 = vmul.f32 %v1881, %v1897
        %v1906 = vmul.f32 %v1882, %v1898
        %v1907 = vmul.f32 %v1883, %v1899
        %v1908 = vmul.f32 %v1884, %v1900
        %v1909 = vmul.f32 %v1885, %v1901
        %v1910 = vmul.f32 %v1886, %v1902
        %v1911 = vmul.f32 %v1887, %v1903
        %v1912 = vmul.f32 %v1888, %v1904
        %v1914 = vlaneseq
        %v1915 = vshrl.u32 %v1914, 7
        %v1916 = vsub.s32 0, %v1915
        %v1917 = vrot.slane %v1799, %v1916
        %v1919 = vmul.f32 %v1905, %v1917
        %v1920 = vmul.f32 %v1906, %v1917
        %v1921 = vmul.f32 %v1907, %v1917
        %v1922 = vmul.f32 %v1908, %v1917
        %v1923 = vmul.f32 %v1909, %v1917
        %v1924 = vmul.f32 %v1910, %v1917
        %v1925 = vmul.f32 %v1911, %v1917
        %v1926 = vmul.f32 %v1912, %v1917
        %v1928 = vlaneseq
        %v1929 = vshrl.u32 %v1928, 7
        %v1930 = vsub.s32 0, %v1929
        %v1931 = vrot.slane %v1800, %v1930
        %v1933 = vadd.f32 %v1919, %v1931
        %v1934 = vadd.f32 %v1920, %v1931
        %v1935 = vadd.f32 %v1921, %v1931
        %v1936 = vadd.f32 %v1922, %v1931
        %v1937 = vadd.f32 %v1923, %v1931
        %v1938 = vadd.f32 %v1924, %v1931
        %v1939 = vadd.f32 %v1925, %v1931
        %v1940 = vadd.f32 %v1926, %v1931
        %v1941 = vld [vmem:[#allocation2] sm:$0xff]
        %v1942 = vadd.f32 %v1941, %v1933
        %v1944 = vcombine.high %v1942, %v1942
        %v1946 = vunpack.c.l.s4 1966171168
        %v1947 = vunpack.c.0.s8 %v1946
        %v1948 = vlaneseq
        %v1949 = vshrl.u32 %v1948, 7
        %v1950 = vsub.s32 %v1947, %v1949
        %v1951 = vrot.slane %v1942, %v1950
        %v1953 = vunpack.c.l.s4 1966171168
        %v1954 = vunpack.c.0.s8 %v1953
        %v1955 = vlaneseq
        %v1956 = vshrl.u32 %v1955, 7
        %v1957 = vsub.s32 %v1954, %v1956
        %v1958 = vrot.slane %v1944, %v1957
        %v1959 = vcombine.high %v1951, %v1951
        %v1960 = vcombine.high %v1958, %v1958
        %v1962 = vunpack.c.l.s4 1966171168
        %v1963 = vunpack.c.0.s8 %v1962
        %v1964 = vlaneseq
        %v1965 = vshrl.u32 %v1964, 7
        %v1966 = vsub.s32 %v1963, %v1965
        %v1967 = vrot.slane %v1951, %v1966
        %v1969 = vunpack.c.l.s4 1966171168
        %v1970 = vunpack.c.0.s8 %v1969
        %v1971 = vlaneseq
        %v1972 = vshrl.u32 %v1971, 7
        %v1973 = vsub.s32 %v1970, %v1972
        %v1974 = vrot.slane %v1958, %v1973
        %v1976 = vunpack.c.l.s4 1966171168
        %v1977 = vunpack.c.0.s8 %v1976
        %v1978 = vlaneseq
        %v1979 = vshrl.u32 %v1978, 7
        %v1980 = vsub.s32 %v1977, %v1979
        %v1981 = vrot.slane %v1959, %v1980
        %v1983 = vunpack.c.l.s4 1966171168
        %v1984 = vunpack.c.0.s8 %v1983
        %v1985 = vlaneseq
        %v1986 = vshrl.u32 %v1985, 7
        %v1987 = vsub.s32 %v1984, %v1986
        %v1988 = vrot.slane %v1960, %v1987
        %v1989 = vcombine.high %v1967, %v1967
        %v1990 = vcombine.high %v1974, %v1974
        %v1991 = vcombine.high %v1981, %v1981
        %v1992 = vcombine.high %v1988, %v1988
        %2001 = vst [vmem:[%s521] sm:$0x1] %v1967
        %2002 = vst [vmem:[%s521 + $0x8] sm:$0x1] %v1981
        %2003 = vst [vmem:[%s521 + $0x10] sm:$0x1] %v1989
        %2004 = vst [vmem:[%s521 + $0x18] sm:$0x1] %v1991
        %2005 = vst [vmem:[%s521 + $0x20] sm:$0x1] %v1974
        %2006 = vst [vmem:[%s521 + $0x28] sm:$0x1] %v1988
        %2007 = vst [vmem:[%s521 + $0x30] sm:$0x1] %v1990
        %2008 = vst [vmem:[%s521 + $0x38] sm:$0x1] %v1992
        %v2009 = vld [vmem:[%s663] sm:$0xff]
        %v2010 = vadd.f32 %v2009, %v1934
        %v2012 = vcombine.high %v2010, %v2010
        %v2014 = vunpack.c.l.s4 1966171168
        %v2015 = vunpack.c.0.s8 %v2014
        %v2016 = vlaneseq
        %v2017 = vshrl.u32 %v2016, 7
        %v2018 = vsub.s32 %v2015, %v2017
        %v2019 = vrot.slane %v2010, %v2018
        %v2021 = vunpack.c.l.s4 1966171168
        %v2022 = vunpack.c.0.s8 %v2021
        %v2023 = vlaneseq
        %v2024 = vshrl.u32 %v2023, 7
        %v2025 = vsub.s32 %v2022, %v2024
        %v2026 = vrot.slane %v2012, %v2025
        %v2027 = vcombine.high %v2019, %v2019
        %v2028 = vcombine.high %v2026, %v2026
        %v2030 = vunpack.c.l.s4 1966171168
        %v2031 = vunpack.c.0.s8 %v2030
        %v2032 = vlaneseq
        %v2033 = vshrl.u32 %v2032, 7
        %v2034 = vsub.s32 %v2031, %v2033
        %v2035 = vrot.slane %v2019, %v2034
        %v2037 = vunpack.c.l.s4 1966171168
        %v2038 = vunpack.c.0.s8 %v2037
        %v2039 = vlaneseq
        %v2040 = vshrl.u32 %v2039, 7
        %v2041 = vsub.s32 %v2038, %v2040
        %v2042 = vrot.slane %v2026, %v2041
        %v2044 = vunpack.c.l.s4 1966171168
        %v2045 = vunpack.c.0.s8 %v2044
        %v2046 = vlaneseq
        %v2047 = vshrl.u32 %v2046, 7
        %v2048 = vsub.s32 %v2045, %v2047
        %v2049 = vrot.slane %v2027, %v2048
        %v2051 = vunpack.c.l.s4 1966171168
        %v2052 = vunpack.c.0.s8 %v2051
        %v2053 = vlaneseq
        %v2054 = vshrl.u32 %v2053, 7
        %v2055 = vsub.s32 %v2052, %v2054
        %v2056 = vrot.slane %v2028, %v2055
        %v2057 = vcombine.high %v2035, %v2035
        %v2058 = vcombine.high %v2042, %v2042
        %v2059 = vcombine.high %v2049, %v2049
        %v2060 = vcombine.high %v2056, %v2056
        %2069 = vst [vmem:[%s521 + $0x1] sm:$0x1] %v2035
        %2070 = vst [vmem:[%s521 + $0x9] sm:$0x1] %v2049
        %2071 = vst [vmem:[%s521 + $0x11] sm:$0x1] %v2057
        %2072 = vst [vmem:[%s521 + $0x19] sm:$0x1] %v2059
        %2073 = vst [vmem:[%s521 + $0x21] sm:$0x1] %v2042
        %2074 = vst [vmem:[%s521 + $0x29] sm:$0x1] %v2056
        %2075 = vst [vmem:[%s521 + $0x31] sm:$0x1] %v2058
        %2076 = vst [vmem:[%s521 + $0x39] sm:$0x1] %v2060
        %v2077 = vld [vmem:[%s728] sm:$0xff]
        %v2078 = vadd.f32 %v2077, %v1935
        %v2080 = vcombine.high %v2078, %v2078
        %v2082 = vunpack.c.l.s4 1966171168
        %v2083 = vunpack.c.0.s8 %v2082
        %v2084 = vlaneseq
        %v2085 = vshrl.u32 %v2084, 7
        %v2086 = vsub.s32 %v2083, %v2085
        %v2087 = vrot.slane %v2078, %v2086
        %v2089 = vunpack.c.l.s4 1966171168
        %v2090 = vunpack.c.0.s8 %v2089
        %v2091 = vlaneseq
        %v2092 = vshrl.u32 %v2091, 7
        %v2093 = vsub.s32 %v2090, %v2092
        %v2094 = vrot.slane %v2080, %v2093
        %v2095 = vcombine.high %v2087, %v2087
        %v2096 = vcombine.high %v2094, %v2094
        %v2098 = vunpack.c.l.s4 1966171168
        %v2099 = vunpack.c.0.s8 %v2098
        %v2100 = vlaneseq
        %v2101 = vshrl.u32 %v2100, 7
        %v2102 = vsub.s32 %v2099, %v2101
        %v2103 = vrot.slane %v2087, %v2102
        %v2105 = vunpack.c.l.s4 1966171168
        %v2106 = vunpack.c.0.s8 %v2105
        %v2107 = vlaneseq
        %v2108 = vshrl.u32 %v2107, 7
        %v2109 = vsub.s32 %v2106, %v2108
        %v2110 = vrot.slane %v2094, %v2109
        %v2112 = vunpack.c.l.s4 1966171168
        %v2113 = vunpack.c.0.s8 %v2112
        %v2114 = vlaneseq
        %v2115 = vshrl.u32 %v2114, 7
        %v2116 = vsub.s32 %v2113, %v2115
        %v2117 = vrot.slane %v2095, %v2116
        %v2119 = vunpack.c.l.s4 1966171168
        %v2120 = vunpack.c.0.s8 %v2119
        %v2121 = vlaneseq
        %v2122 = vshrl.u32 %v2121, 7
        %v2123 = vsub.s32 %v2120, %v2122
        %v2124 = vrot.slane %v2096, %v2123
        %v2125 = vcombine.high %v2103, %v2103
        %v2126 = vcombine.high %v2110, %v2110
        %v2127 = vcombine.high %v2117, %v2117
        %v2128 = vcombine.high %v2124, %v2124
        %2137 = vst [vmem:[%s521 + $0x2] sm:$0x1] %v2103
        %2138 = vst [vmem:[%s521 + $0xa] sm:$0x1] %v2117
        %2139 = vst [vmem:[%s521 + $0x12] sm:$0x1] %v2125
        %2140 = vst [vmem:[%s521 + $0x1a] sm:$0x1] %v2127
        %2141 = vst [vmem:[%s521 + $0x22] sm:$0x1] %v2110
        %2142 = vst [vmem:[%s521 + $0x2a] sm:$0x1] %v2124
        %2143 = vst [vmem:[%s521 + $0x32] sm:$0x1] %v2126
        %2144 = vst [vmem:[%s521 + $0x3a] sm:$0x1] %v2128
        %v2145 = vld [vmem:[%s793] sm:$0xff]
        %v2146 = vadd.f32 %v2145, %v1936
        %v2148 = vcombine.high %v2146, %v2146
        %v2150 = vunpack.c.l.s4 1966171168
        %v2151 = vunpack.c.0.s8 %v2150
        %v2152 = vlaneseq
        %v2153 = vshrl.u32 %v2152, 7
        %v2154 = vsub.s32 %v2151, %v2153
        %v2155 = vrot.slane %v2146, %v2154
        %v2157 = vunpack.c.l.s4 1966171168
        %v2158 = vunpack.c.0.s8 %v2157
        %v2159 = vlaneseq
        %v2160 = vshrl.u32 %v2159, 7
        %v2161 = vsub.s32 %v2158, %v2160
        %v2162 = vrot.slane %v2148, %v2161
        %v2163 = vcombine.high %v2155, %v2155
        %v2164 = vcombine.high %v2162, %v2162
        %v2166 = vunpack.c.l.s4 1966171168
        %v2167 = vunpack.c.0.s8 %v2166
        %v2168 = vlaneseq
        %v2169 = vshrl.u32 %v2168, 7
        %v2170 = vsub.s32 %v2167, %v2169
        %v2171 = vrot.slane %v2155, %v2170
        %v2173 = vunpack.c.l.s4 1966171168
        %v2174 = vunpack.c.0.s8 %v2173
        %v2175 = vlaneseq
        %v2176 = vshrl.u32 %v2175, 7
        %v2177 = vsub.s32 %v2174, %v2176
        %v2178 = vrot.slane %v2162, %v2177
        %v2180 = vunpack.c.l.s4 1966171168
        %v2181 = vunpack.c.0.s8 %v2180
        %v2182 = vlaneseq
        %v2183 = vshrl.u32 %v2182, 7
        %v2184 = vsub.s32 %v2181, %v2183
        %v2185 = vrot.slane %v2163, %v2184
        %v2187 = vunpack.c.l.s4 1966171168
        %v2188 = vunpack.c.0.s8 %v2187
        %v2189 = vlaneseq
        %v2190 = vshrl.u32 %v2189, 7
        %v2191 = vsub.s32 %v2188, %v2190
        %v2192 = vrot.slane %v2164, %v2191
        %v2193 = vcombine.high %v2171, %v2171
        %v2194 = vcombine.high %v2178, %v2178
        %v2195 = vcombine.high %v2185, %v2185
        %v2196 = vcombine.high %v2192, %v2192
        %2205 = vst [vmem:[%s521 + $0x3] sm:$0x1] %v2171
        %2206 = vst [vmem:[%s521 + $0xb] sm:$0x1] %v2185
        %2207 = vst [vmem:[%s521 + $0x13] sm:$0x1] %v2193
        %2208 = vst [vmem:[%s521 + $0x1b] sm:$0x1] %v2195
        %2209 = vst [vmem:[%s521 + $0x23] sm:$0x1] %v2178
        %2210 = vst [vmem:[%s521 + $0x2b] sm:$0x1] %v2192
        %2211 = vst [vmem:[%s521 + $0x33] sm:$0x1] %v2194
        %2212 = vst [vmem:[%s521 + $0x3b] sm:$0x1] %v2196
        %v2213 = vld [vmem:[%s858] sm:$0xff]
        %v2214 = vadd.f32 %v2213, %v1937
        %v2216 = vcombine.high %v2214, %v2214
        %v2218 = vunpack.c.l.s4 1966171168
        %v2219 = vunpack.c.0.s8 %v2218
        %v2220 = vlaneseq
        %v2221 = vshrl.u32 %v2220, 7
        %v2222 = vsub.s32 %v2219, %v2221
        %v2223 = vrot.slane %v2214, %v2222
        %v2225 = vunpack.c.l.s4 1966171168
        %v2226 = vunpack.c.0.s8 %v2225
        %v2227 = vlaneseq
        %v2228 = vshrl.u32 %v2227, 7
        %v2229 = vsub.s32 %v2226, %v2228
        %v2230 = vrot.slane %v2216, %v2229
        %v2231 = vcombine.high %v2223, %v2223
        %v2232 = vcombine.high %v2230, %v2230
        %v2234 = vunpack.c.l.s4 1966171168
        %v2235 = vunpack.c.0.s8 %v2234
        %v2236 = vlaneseq
        %v2237 = vshrl.u32 %v2236, 7
        %v2238 = vsub.s32 %v2235, %v2237
        %v2239 = vrot.slane %v2223, %v2238
        %v2241 = vunpack.c.l.s4 1966171168
        %v2242 = vunpack.c.0.s8 %v2241
        %v2243 = vlaneseq
        %v2244 = vshrl.u32 %v2243, 7
        %v2245 = vsub.s32 %v2242, %v2244
        %v2246 = vrot.slane %v2230, %v2245
        %v2248 = vunpack.c.l.s4 1966171168
        %v2249 = vunpack.c.0.s8 %v2248
        %v2250 = vlaneseq
        %v2251 = vshrl.u32 %v2250, 7
        %v2252 = vsub.s32 %v2249, %v2251
        %v2253 = vrot.slane %v2231, %v2252
        %v2255 = vunpack.c.l.s4 1966171168
        %v2256 = vunpack.c.0.s8 %v2255
        %v2257 = vlaneseq
        %v2258 = vshrl.u32 %v2257, 7
        %v2259 = vsub.s32 %v2256, %v2258
        %v2260 = vrot.slane %v2232, %v2259
        %v2261 = vcombine.high %v2239, %v2239
        %v2262 = vcombine.high %v2246, %v2246
        %v2263 = vcombine.high %v2253, %v2253
        %v2264 = vcombine.high %v2260, %v2260
        %2273 = vst [vmem:[%s521 + $0x4] sm:$0x1] %v2239
        %2274 = vst [vmem:[%s521 + $0xc] sm:$0x1] %v2253
        %2275 = vst [vmem:[%s521 + $0x14] sm:$0x1] %v2261
        %2276 = vst [vmem:[%s521 + $0x1c] sm:$0x1] %v2263
        %2277 = vst [vmem:[%s521 + $0x24] sm:$0x1] %v2246
        %2278 = vst [vmem:[%s521 + $0x2c] sm:$0x1] %v2260
        %2279 = vst [vmem:[%s521 + $0x34] sm:$0x1] %v2262
        %2280 = vst [vmem:[%s521 + $0x3c] sm:$0x1] %v2264
        %v2281 = vld [vmem:[%s923] sm:$0xff]
        %v2282 = vadd.f32 %v2281, %v1938
        %v2284 = vcombine.high %v2282, %v2282
        %v2286 = vunpack.c.l.s4 1966171168
        %v2287 = vunpack.c.0.s8 %v2286
        %v2288 = vlaneseq
        %v2289 = vshrl.u32 %v2288, 7
        %v2290 = vsub.s32 %v2287, %v2289
        %v2291 = vrot.slane %v2282, %v2290
        %v2293 = vunpack.c.l.s4 1966171168
        %v2294 = vunpack.c.0.s8 %v2293
        %v2295 = vlaneseq
        %v2296 = vshrl.u32 %v2295, 7
        %v2297 = vsub.s32 %v2294, %v2296
        %v2298 = vrot.slane %v2284, %v2297
        %v2299 = vcombine.high %v2291, %v2291
        %v2300 = vcombine.high %v2298, %v2298
        %v2302 = vunpack.c.l.s4 1966171168
        %v2303 = vunpack.c.0.s8 %v2302
        %v2304 = vlaneseq
        %v2305 = vshrl.u32 %v2304, 7
        %v2306 = vsub.s32 %v2303, %v2305
        %v2307 = vrot.slane %v2291, %v2306
        %v2309 = vunpack.c.l.s4 1966171168
        %v2310 = vunpack.c.0.s8 %v2309
        %v2311 = vlaneseq
        %v2312 = vshrl.u32 %v2311, 7
        %v2313 = vsub.s32 %v2310, %v2312
        %v2314 = vrot.slane %v2298, %v2313
        %v2316 = vunpack.c.l.s4 1966171168
        %v2317 = vunpack.c.0.s8 %v2316
        %v2318 = vlaneseq
        %v2319 = vshrl.u32 %v2318, 7
        %v2320 = vsub.s32 %v2317, %v2319
        %v2321 = vrot.slane %v2299, %v2320
        %v2323 = vunpack.c.l.s4 1966171168
        %v2324 = vunpack.c.0.s8 %v2323
        %v2325 = vlaneseq
        %v2326 = vshrl.u32 %v2325, 7
        %v2327 = vsub.s32 %v2324, %v2326
        %v2328 = vrot.slane %v2300, %v2327
        %v2329 = vcombine.high %v2307, %v2307
        %v2330 = vcombine.high %v2314, %v2314
        %v2331 = vcombine.high %v2321, %v2321
        %v2332 = vcombine.high %v2328, %v2328
        %2341 = vst [vmem:[%s521 + $0x5] sm:$0x1] %v2307
        %2342 = vst [vmem:[%s521 + $0xd] sm:$0x1] %v2321
        %2343 = vst [vmem:[%s521 + $0x15] sm:$0x1] %v2329
        %2344 = vst [vmem:[%s521 + $0x1d] sm:$0x1] %v2331
        %2345 = vst [vmem:[%s521 + $0x25] sm:$0x1] %v2314
        %2346 = vst [vmem:[%s521 + $0x2d] sm:$0x1] %v2328
        %2347 = vst [vmem:[%s521 + $0x35] sm:$0x1] %v2330
        %2348 = vst [vmem:[%s521 + $0x3d] sm:$0x1] %v2332
        %v2349 = vld [vmem:[%s988] sm:$0xff]
        %v2350 = vadd.f32 %v2349, %v1939
        %v2352 = vcombine.high %v2350, %v2350
        %v2354 = vunpack.c.l.s4 1966171168
        %v2355 = vunpack.c.0.s8 %v2354
        %v2356 = vlaneseq
        %v2357 = vshrl.u32 %v2356, 7
        %v2358 = vsub.s32 %v2355, %v2357
        %v2359 = vrot.slane %v2350, %v2358
        %v2361 = vunpack.c.l.s4 1966171168
        %v2362 = vunpack.c.0.s8 %v2361
        %v2363 = vlaneseq
        %v2364 = vshrl.u32 %v2363, 7
        %v2365 = vsub.s32 %v2362, %v2364
        %v2366 = vrot.slane %v2352, %v2365
        %v2367 = vcombine.high %v2359, %v2359
        %v2368 = vcombine.high %v2366, %v2366
        %v2370 = vunpack.c.l.s4 1966171168
        %v2371 = vunpack.c.0.s8 %v2370
        %v2372 = vlaneseq
        %v2373 = vshrl.u32 %v2372, 7
        %v2374 = vsub.s32 %v2371, %v2373
        %v2375 = vrot.slane %v2359, %v2374
        %v2377 = vunpack.c.l.s4 1966171168
        %v2378 = vunpack.c.0.s8 %v2377
        %v2379 = vlaneseq
        %v2380 = vshrl.u32 %v2379, 7
        %v2381 = vsub.s32 %v2378, %v2380
        %v2382 = vrot.slane %v2366, %v2381
        %v2384 = vunpack.c.l.s4 1966171168
        %v2385 = vunpack.c.0.s8 %v2384
        %v2386 = vlaneseq
        %v2387 = vshrl.u32 %v2386, 7
        %v2388 = vsub.s32 %v2385, %v2387
        %v2389 = vrot.slane %v2367, %v2388
        %v2391 = vunpack.c.l.s4 1966171168
        %v2392 = vunpack.c.0.s8 %v2391
        %v2393 = vlaneseq
        %v2394 = vshrl.u32 %v2393, 7
        %v2395 = vsub.s32 %v2392, %v2394
        %v2396 = vrot.slane %v2368, %v2395
        %v2397 = vcombine.high %v2375, %v2375
        %v2398 = vcombine.high %v2382, %v2382
        %v2399 = vcombine.high %v2389, %v2389
        %v2400 = vcombine.high %v2396, %v2396
        %2409 = vst [vmem:[%s521 + $0x6] sm:$0x1] %v2375
        %2410 = vst [vmem:[%s521 + $0xe] sm:$0x1] %v2389
        %2411 = vst [vmem:[%s521 + $0x16] sm:$0x1] %v2397
        %2412 = vst [vmem:[%s521 + $0x1e] sm:$0x1] %v2399
        %2413 = vst [vmem:[%s521 + $0x26] sm:$0x1] %v2382
        %2414 = vst [vmem:[%s521 + $0x2e] sm:$0x1] %v2396
        %2415 = vst [vmem:[%s521 + $0x36] sm:$0x1] %v2398
        %2416 = vst [vmem:[%s521 + $0x3e] sm:$0x1] %v2400
        %v2417 = vld [vmem:[%s1053] sm:$0xff]
        %v2418 = vadd.f32 %v2417, %v1940
        %v2420 = vcombine.high %v2418, %v2418
        %v2422 = vunpack.c.l.s4 1966171168
        %v2423 = vunpack.c.0.s8 %v2422
        %v2424 = vlaneseq
        %v2425 = vshrl.u32 %v2424, 7
        %v2426 = vsub.s32 %v2423, %v2425
        %v2427 = vrot.slane %v2418, %v2426
        %v2429 = vunpack.c.l.s4 1966171168
        %v2430 = vunpack.c.0.s8 %v2429
        %v2431 = vlaneseq
        %v2432 = vshrl.u32 %v2431, 7
        %v2433 = vsub.s32 %v2430, %v2432
        %v2434 = vrot.slane %v2420, %v2433
        %v2435 = vcombine.high %v2427, %v2427
        %v2436 = vcombine.high %v2434, %v2434
        %v2438 = vunpack.c.l.s4 1966171168
        %v2439 = vunpack.c.0.s8 %v2438
        %v2440 = vlaneseq
        %v2441 = vshrl.u32 %v2440, 7
        %v2442 = vsub.s32 %v2439, %v2441
        %v2443 = vrot.slane %v2427, %v2442
        %v2445 = vunpack.c.l.s4 1966171168
        %v2446 = vunpack.c.0.s8 %v2445
        %v2447 = vlaneseq
        %v2448 = vshrl.u32 %v2447, 7
        %v2449 = vsub.s32 %v2446, %v2448
        %v2450 = vrot.slane %v2434, %v2449
        %v2452 = vunpack.c.l.s4 1966171168
        %v2453 = vunpack.c.0.s8 %v2452
        %v2454 = vlaneseq
        %v2455 = vshrl.u32 %v2454, 7
        %v2456 = vsub.s32 %v2453, %v2455
        %v2457 = vrot.slane %v2435, %v2456
        %v2459 = vunpack.c.l.s4 1966171168
        %v2460 = vunpack.c.0.s8 %v2459
        %v2461 = vlaneseq
        %v2462 = vshrl.u32 %v2461, 7
        %v2463 = vsub.s32 %v2460, %v2462
        %v2464 = vrot.slane %v2436, %v2463
        %v2465 = vcombine.high %v2443, %v2443
        %v2466 = vcombine.high %v2450, %v2450
        %v2467 = vcombine.high %v2457, %v2457
        %v2468 = vcombine.high %v2464, %v2464
        %2477 = vst [vmem:[%s521 + $0x7] sm:$0x1] %v2443
        %2478 = vst [vmem:[%s521 + $0xf] sm:$0x1] %v2457
        %2479 = vst [vmem:[%s521 + $0x17] sm:$0x1] %v2465
        %2480 = vst [vmem:[%s521 + $0x1f] sm:$0x1] %v2467
        %2481 = vst [vmem:[%s521 + $0x27] sm:$0x1] %v2450
        %2482 = vst [vmem:[%s521 + $0x2f] sm:$0x1] %v2464
        %2483 = vst [vmem:[%s521 + $0x37] sm:$0x1] %v2466
        %2484 = vst [vmem:[%s521 + $0x3f] sm:$0x1] %v2468
        %s2485 = sand.u32 %s309, 1
        %s2486 = scalar_lea.sflag [#allocation10], %s2485
        %s2487 = sand.u32 %s309, 1
        %s2488 = smul.addr %s2487, 64
        %s2489 = scalar_lea.vmem [#allocation16], %s2488
        // Predicated region
        $region85: #{tpu_custom_call.1} parent=67 // pred_check
          %p2490 = pneg %p319
        $region86: #{tpu_custom_call.1} parent=67 // pred_check_branch
          %2492 = sbr.rel (%p2490) target = $region88
        $region87: #{tpu_custom_call.1} parent=67 // pred_region
          %s2493 = smul.u32 8, %s34
          %s2495 = ssub.s32 1024, 1024
          %2496 = vsyncadd %s2486, %s2495
          %s2497 = smul.addr %s2493, 128
          %s2498 = scalar_lea.hbm %s12, %s2497
          %s2499 = sshll.u32 %s2489, 4
          %s2500 = int_to_ptr.vmem [resolvable:$true] %s2499
          %2505 = dma.vmem_to_hbm [thread:$0]  %s2500, 1024, %s2498, %s2486, 128, 128, 8
        $region88: #{tpu_custom_call.1} parent=67 // pred_fallthru
          _
      $region68: #{tpu_custom_call.1} parent=5 // pred_fallthru
        _
      %p2506 = scmp.le.s32.totalorder 2, %s29
      // Predicated region
      $region89: #{tpu_custom_call.1} parent=5 // pred_check
        %p2507 = pneg %p2506
      $region90: #{tpu_custom_call.1} parent=5 // pred_check_branch
        %2509 = sbr.rel (%p2507) target = $region92
      $region91: #{tpu_custom_call.1} parent=5 // pred_region
        %s2510 = ssub.s32 %s29, 2
        // Predicated region
        $region93: #{tpu_custom_call.1} parent=91 // pred_check
          %p2511 = pneg %p325
        $region94: #{tpu_custom_call.1} parent=91 // pred_check_branch
          %2513 = sbr.rel (%p2511) target = $region96
        $region95: #{tpu_custom_call.1} parent=91 // pred_region
          %s2514 = sand.u32 %s310, 1
          %s2515 = scalar_lea.sflag [#allocation10], %s2514
          %s2516 = sand.u32 %s310, 1
          %s2517 = smul.addr %s2516, 64
          %s2518 = scalar_lea.vmem [#allocation16], %s2517
          %2519 = dma.done %s2515, 1024
        $region96: #{tpu_custom_call.1} parent=91 // pred_fallthru
          _
      $region92: #{tpu_custom_call.1} parent=5 // pred_fallthru
        _
    $region6: #{tpu_custom_call.1} parent=1 // loop_footer
      %s33 = sadd.s32 1, %s29
    $region7: #{tpu_custom_call.1} parent=1 // loop_footer_branch
      %28 = sbr.rel target = $region3
    $region8: #{tpu_custom_call.1} parent=1 // loop_exit
      _
    %2520 = vsyncpa [#allocation9], 1
    %s2521 = scalar_lea.sflag [#allocation9], 1
    %2522 = vsyncpa %s2521, 1
    %2523 = vsyncpa [#allocation12], 1
    %s2524 = scalar_lea.sflag [#allocation12], 1
    %2525 = vsyncpa %s2524, 1
    %2526 = vsyncpa [#allocation15], 1
    %2527 = vsyncpa [#allocation10], 1
    %s2528 = scalar_lea.sflag [#allocation10], 1
    %2529 = vsyncpa %s2528, 1

</llo_original>
